<compile_context>
chip_gen: v7x
topology: tpu7x:2x2x1
jax: 0.10.0
libtpu: 0.0.40
codegen_flags: <defaults>
</compile_context>

<pallas_src>
import functools

import jax
import jax.numpy as jnp
from jax import lax
from jax.experimental import pallas as pl
from jax.experimental.pallas import tpu as pltpu


def _likelihood_mse_kernel(u_ref, cov_ref, tgt_ref, out_ref, l_ref,
                           *, gamma, regular_cov):
    """One grid step: BLOCK_B independent N x N problems, batch on lanes.

    u_ref/tgt_ref: (N, BLOCK_B)      cov_ref: (N, N, BLOCK_B)
    out_ref:       (1, BLOCK_B)      l_ref:   VMEM scratch (N, N, BLOCK_B)
    cov_ref[j] is column j of every lane's covariance (cov is symmetric).
    l_ref[j] holds column j of L; its diagonal entry stores 1/L[j,j].
    """
    N = cov_ref.shape[0]
    bt = cov_ref.shape[-1]
    f32 = jnp.float32

    row_iota = lax.broadcasted_iota(jnp.int32, (N, bt), 0)   # hoisted

    logdet = jnp.zeros((1, bt), f32)

    # ---- Cholesky, column by column, fully unrolled; all lanes in lockstep.
    for j in range(N):
        c = cov_ref[j].astype(f32)                        # (N, bt) col j of A
        d = cov_ref[j, pl.ds(j, 1), :].astype(f32)        # (1, bt) A[j, j]
        for k in range(j):
            colk = l_ref[k]                               # (N, bt)  vld
            ljk = l_ref[k, pl.ds(j, 1), :]                # (1, bt)  vld
            c = c - colk * ljk
            d = d - ljk * ljk
        # TODO(synk): extra_add=True (eps*I jitter) is not implemented; a
        # non-SPD cov would make rsqrt/log produce NaN, as in the reference.
        inv_sqrt = lax.rsqrt(d)                           # EUP; 1/L[j,j]
        if regular_cov:
            logdet = logdet + jnp.log(d)                  # logdet = sum log d_j
        col_j = jnp.where(row_iota > j, c * inv_sqrt,
                          jnp.where(row_iota == j, inv_sqrt, 0.0))
        l_ref[j] = col_j                                  # store column j

    # ---- Forward solve L y = (u - target); quad = y . y -------------------
    quad = jnp.zeros((1, bt), f32)
    ys = []
    for i in range(N):
        acc = (u_ref[pl.ds(i, 1), :] - tgt_ref[pl.ds(i, 1), :]).astype(f32)
        for k in range(i):
            acc = acc - l_ref[k, pl.ds(i, 1), :] * ys[k]
        yi = acc * l_ref[i, pl.ds(i, 1), :]               # * 1/L[i,i]
        ys.append(yi)
        quad = quad + yi * yi

    loss = quad
    if regular_cov:
        loss = loss + f32(gamma) * logdet
    out_ref[...] = loss.astype(out_ref.dtype)


def likelihood_mse(u, cov, target, *, gamma=1.0, regular_cov=True,
                   reduction='mean', block_b=256):
    """Pallas implementation of LikelihoodMSE.forward with default options.

    u: [B, N], cov: [B, N, N], target: [B, N]. Returns a scalar float32 loss.
    """
    # TODO(synk): normalize=True path (functional.normalize_mean_cov),
    # extra_add=True (eps*I) and is_classify/LabelSmoothing path are not
    # implemented — defaults turn them off.
    assert block_b % 128 == 0
    B, N = u.shape
    assert cov.shape == (B, N, N) and target.shape == (B, N)

    # Lane-batched layout: batch -> lanes.
    cov_t = jnp.transpose(cov, (1, 2, 0)).astype(jnp.float32)   # (N, N, B)
    u_t = jnp.transpose(u, (1, 0)).astype(jnp.float32)          # (N, B)
    t_t = jnp.transpose(target, (1, 0)).astype(jnp.float32)     # (N, B)

    b_pad = ((B + block_b - 1) // block_b) * block_b
    pad = b_pad - B
    if pad:
        # Pad covariances with identity (keeps Cholesky NaN-free); padded
        # lanes are sliced off before the reduction anyway.
        eye_pad = jnp.broadcast_to(
            jnp.eye(N, dtype=jnp.float32)[:, :, None], (N, N, pad))
        cov_t = jnp.concatenate([cov_t, eye_pad], axis=-1)
        u_t = jnp.pad(u_t, ((0, 0), (0, pad)))
        t_t = jnp.pad(t_t, ((0, 0), (0, pad)))

    kern = functools.partial(_likelihood_mse_kernel, gamma=float(gamma),
                             regular_cov=regular_cov)

    out = pl.pallas_call(
        kern,
        out_shape=jax.ShapeDtypeStruct((1, b_pad), jnp.float32),
        grid_spec=pltpu.PrefetchScalarGridSpec(
            num_scalar_prefetch=0,
            grid=(b_pad // block_b,),
            in_specs=[
                pl.BlockSpec((N, block_b), lambda b: (0, b)),       # u
                pl.BlockSpec((N, N, block_b), lambda b: (0, 0, b)), # cov
                pl.BlockSpec((N, block_b), lambda b: (0, b)),       # target
            ],
            out_specs=pl.BlockSpec((1, block_b), lambda b: (0, b)),
            scratch_shapes=[pltpu.VMEM((N, N, block_b), jnp.float32)],
        ),
        compiler_params=pltpu.CompilerParams(
            dimension_semantics=("parallel",)),
    )(u_t, cov_t, t_t)

    losses = out[0, :B]
    if reduction == 'mean':
        return jnp.mean(losses)
    return jnp.sum(losses)


if __name__ == "__main__":
    key = jax.random.PRNGKey(0)
    k1, k2, k3 = jax.random.split(key, 3)

    B, N = 300, 10  # num_class = 10 (default); B exercises 2 blocks + padding
    u = jax.random.normal(k1, (B, N), dtype=jnp.float32)
    target = jax.random.normal(k2, (B, N), dtype=jnp.float32)
    A = jax.random.normal(k3, (B, N, N), dtype=jnp.float32)
    # SPD covariance (as a real covariance matrix would be)
    cov = jnp.einsum('bij,bkj->bik', A, A) / N + 0.5 * jnp.eye(N, dtype=jnp.float32)

    loss = likelihood_mse(u, cov, target, gamma=1.0, regular_cov=True,
                          reduction='mean')
    loss = jax.block_until_ready(loss)

    # Pure-JAX reference matching the PyTorch forward.
    temp = u - target
    inv = jnp.linalg.inv(cov)
    quad = jnp.einsum('bi,bij,bj->b', temp, inv, temp)
    _, logdet = jnp.linalg.slogdet(cov)
    ref = jnp.mean(quad + 1.0 * logdet)

    assert jnp.allclose(loss, ref, rtol=1e-3, atol=1e-3), (loss, ref)
    print("KERNEL_OK")
</pallas_src>

<mosaic_0001>
module attributes {stable_mosaic.version = 11 : i64} {
  func.func @_likelihood_mse_kernel(%arg0: i32, %arg1: memref<10x256xf32, #tpu.memory_space<vmem>>, %arg2: memref<10x10x256xf32, #tpu.memory_space<vmem>>, %arg3: memref<10x256xf32, #tpu.memory_space<vmem>>, %arg4: memref<1x256xf32, #tpu.memory_space<vmem>>, %arg5: memref<10x10x256xf32, #tpu.memory_space<vmem>>) attributes {dimension_semantics = [#tpu.dimension_semantics<parallel>], iteration_bounds = array<i64: 2>, scalar_prefetch = 0 : i64, scratch_operands = 1 : i64, tpu.core_type = #tpu.core_type<tc>, window_params = [{transform_indices = @transform_0, window_bounds = array<i64: 10, 256>}, {transform_indices = @transform_1, window_bounds = array<i64: 10, 10, 256>}, {transform_indices = @transform_2, window_bounds = array<i64: 10, 256>}, {transform_indices = @transform_3, window_bounds = array<i64: 1, 256>}]} {
    %0 = tpu.iota {dimensions = array<i32: 0>} : vector<10x256xi32>
    %cst = arith.constant 0.000000e+00 : f32
    %1 = vector.broadcast %cst : f32 to vector<1x256xf32>
    %c0 = arith.constant 0 : index
    %c0_0 = arith.constant 0 : index
    %c0_1 = arith.constant 0 : index
    %2 = vector.load %arg2[%c0, %c0_0, %c0_1] : memref<10x10x256xf32, #tpu.memory_space<vmem>>, vector<1x10x256xf32>
    %3 = vector.shape_cast %2 : vector<1x10x256xf32> to vector<10x256xf32>
    %c0_2 = arith.constant 0 : index
    %c0_3 = arith.constant 0 : index
    %c0_4 = arith.constant 0 : index
    %4 = vector.load %arg2[%c0_2, %c0_3, %c0_4] : memref<10x10x256xf32, #tpu.memory_space<vmem>>, vector<1x1x256xf32>
    %5 = vector.shape_cast %4 : vector<1x1x256xf32> to vector<1x256xf32>
    %6 = math.rsqrt %5 : vector<1x256xf32>
    %7 = math.log %5 : vector<1x256xf32>
    %8 = arith.addf %1, %7 : vector<1x256xf32>
    %c0_i32 = arith.constant 0 : i32
    %9 = vector.broadcast %c0_i32 : i32 to vector<10x256xi32>
    %10 = arith.cmpi sgt, %0, %9 : vector<10x256xi32>
    %11 = vector.broadcast %6 : vector<1x256xf32> to vector<10x256xf32>
    %12 = arith.mulf %3, %11 : vector<10x256xf32>
    %c0_i32_5 = arith.constant 0 : i32
    %13 = vector.broadcast %c0_i32_5 : i32 to vector<10x256xi32>
    %14 = arith.cmpi eq, %0, %13 : vector<10x256xi32>
    %cst_6 = arith.constant 0.000000e+00 : f32
    %15 = vector.shape_cast %6 : vector<1x256xf32> to vector<1x256xf32>
    %16 = vector.broadcast %15 : vector<1x256xf32> to vector<10x256xf32>
    %17 = vector.broadcast %cst_6 : f32 to vector<10x256xf32>
    %18 = arith.select %14, %16, %17 : vector<10x256xi1>, vector<10x256xf32>
    %19 = arith.select %10, %12, %18 : vector<10x256xi1>, vector<10x256xf32>
    %c0_7 = arith.constant 0 : index
    %c0_8 = arith.constant 0 : index
    %c0_9 = arith.constant 0 : index
    %20 = vector.load %arg5[%c0_7, %c0_8, %c0_9] : memref<10x10x256xf32, #tpu.memory_space<vmem>>, vector<1x10x256xf32>
    %21 = vector.shape_cast %20 : vector<1x10x256xf32> to vector<10x256xf32>
    %22 = vector.shape_cast %19 : vector<10x256xf32> to vector<1x10x256xf32>
    tpu.vector_store %arg5[%c0_7, %c0_8, %c0_9], %22 {strides = array<i32>} : memref<10x10x256xf32, #tpu.memory_space<vmem>>, vector<1x10x256xf32>,
    %c1 = arith.constant 1 : index
    %c0_10 = arith.constant 0 : index
    %c0_11 = arith.constant 0 : index
    %23 = vector.load %arg2[%c1, %c0_10, %c0_11] : memref<10x10x256xf32, #tpu.memory_space<vmem>>, vector<1x10x256xf32>
    %24 = vector.shape_cast %23 : vector<1x10x256xf32> to vector<10x256xf32>
    %c1_12 = arith.constant 1 : index
    %c1_13 = arith.constant 1 : index
    %c0_14 = arith.constant 0 : index
    %25 = vector.load %arg2[%c1_12, %c1_13, %c0_14] : memref<10x10x256xf32, #tpu.memory_space<vmem>>, vector<1x1x256xf32>
    %26 = vector.shape_cast %25 : vector<1x1x256xf32> to vector<1x256xf32>
    %c0_15 = arith.constant 0 : index
    %c0_16 = arith.constant 0 : index
    %c0_17 = arith.constant 0 : index
    %27 = vector.load %arg5[%c0_15, %c0_16, %c0_17] : memref<10x10x256xf32, #tpu.memory_space<vmem>>, vector<1x10x256xf32>
    %28 = vector.shape_cast %27 : vector<1x10x256xf32> to vector<10x256xf32>
    %c0_18 = arith.constant 0 : index
    %c1_19 = arith.constant 1 : index
    %c0_20 = arith.constant 0 : index
    %29 = vector.load %arg5[%c0_18, %c1_19, %c0_20] : memref<10x10x256xf32, #tpu.memory_space<vmem>>, vector<1x1x256xf32>
    %30 = vector.shape_cast %29 : vector<1x1x256xf32> to vector<1x256xf32>
    %31 = vector.broadcast %30 : vector<1x256xf32> to vector<10x256xf32>
    %32 = arith.mulf %28, %31 : vector<10x256xf32>
    %33 = arith.subf %24, %32 : vector<10x256xf32>
    %34 = arith.mulf %30, %30 : vector<1x256xf32>
    %35 = arith.subf %26, %34 : vector<1x256xf32>
    %36 = math.rsqrt %35 : vector<1x256xf32>
    %37 = math.log %35 : vector<1x256xf32>
    %38 = arith.addf %8, %37 : vector<1x256xf32>
    %c1_i32 = arith.constant 1 : i32
    %39 = vector.broadcast %c1_i32 : i32 to vector<10x256xi32>
    %40 = arith.cmpi sgt, %0, %39 : vector<10x256xi32>
    %41 = vector.broadcast %36 : vector<1x256xf32> to vector<10x256xf32>
    %42 = arith.mulf %33, %41 : vector<10x256xf32>
    %c1_i32_21 = arith.constant 1 : i32
    %43 = vector.broadcast %c1_i32_21 : i32 to vector<10x256xi32>
    %44 = arith.cmpi eq, %0, %43 : vector<10x256xi32>
    %cst_22 = arith.constant 0.000000e+00 : f32
    %45 = vector.shape_cast %36 : vector<1x256xf32> to vector<1x256xf32>
    %46 = vector.broadcast %45 : vector<1x256xf32> to vector<10x256xf32>
    %47 = vector.broadcast %cst_22 : f32 to vector<10x256xf32>
    %48 = arith.select %44, %46, %47 : vector<10x256xi1>, vector<10x256xf32>
    %49 = arith.select %40, %42, %48 : vector<10x256xi1>, vector<10x256xf32>
    %c1_23 = arith.constant 1 : index
    %c0_24 = arith.constant 0 : index
    %c0_25 = arith.constant 0 : index
    %50 = vector.load %arg5[%c1_23, %c0_24, %c0_25] : memref<10x10x256xf32, #tpu.memory_space<vmem>>, vector<1x10x256xf32>
    %51 = vector.shape_cast %50 : vector<1x10x256xf32> to vector<10x256xf32>
    %52 = vector.shape_cast %49 : vector<10x256xf32> to vector<1x10x256xf32>
    tpu.vector_store %arg5[%c1_23, %c0_24, %c0_25], %52 {strides = array<i32>} : memref<10x10x256xf32, #tpu.memory_space<vmem>>, vector<1x10x256xf32>,
    %c2 = arith.constant 2 : index
    %c0_26 = arith.constant 0 : index
    %c0_27 = arith.constant 0 : index
    %53 = vector.load %arg2[%c2, %c0_26, %c0_27] : memref<10x10x256xf32, #tpu.memory_space<vmem>>, vector<1x10x256xf32>
    %54 = vector.shape_cast %53 : vector<1x10x256xf32> to vector<10x256xf32>
    %c2_28 = arith.constant 2 : index
    %c2_29 = arith.constant 2 : index
    %c0_30 = arith.constant 0 : index
    %55 = vector.load %arg2[%c2_28, %c2_29, %c0_30] : memref<10x10x256xf32, #tpu.memory_space<vmem>>, vector<1x1x256xf32>
    %56 = vector.shape_cast %55 : vector<1x1x256xf32> to vector<1x256xf32>
    %c0_31 = arith.constant 0 : index
    %c0_32 = arith.constant 0 : index
    %c0_33 = arith.constant 0 : index
    %57 = vector.load %arg5[%c0_31, %c0_32, %c0_33] : memref<10x10x256xf32, #tpu.memory_space<vmem>>, vector<1x10x256xf32>
    %58 = vector.shape_cast %57 : vector<1x10x256xf32> to vector<10x256xf32>
    %c0_34 = arith.constant 0 : index
    %c2_35 = arith.constant 2 : index
    %c0_36 = arith.constant 0 : index
    %59 = vector.load %arg5[%c0_34, %c2_35, %c0_36] : memref<10x10x256xf32, #tpu.memory_space<vmem>>, vector<1x1x256xf32>
    %60 = vector.shape_cast %59 : vector<1x1x256xf32> to vector<1x256xf32>
    %61 = vector.broadcast %60 : vector<1x256xf32> to vector<10x256xf32>
    %62 = arith.mulf %58, %61 : vector<10x256xf32>
    %63 = arith.subf %54, %62 : vector<10x256xf32>
    %64 = arith.mulf %60, %60 : vector<1x256xf32>
    %65 = arith.subf %56, %64 : vector<1x256xf32>
    %c1_37 = arith.constant 1 : index
    %c0_38 = arith.constant 0 : index
    %c0_39 = arith.constant 0 : index
    %66 = vector.load %arg5[%c1_37, %c0_38, %c0_39] : memref<10x10x256xf32, #tpu.memory_space<vmem>>, vector<1x10x256xf32>
    %67 = vector.shape_cast %66 : vector<1x10x256xf32> to vector<10x256xf32>
    %c1_40 = arith.constant 1 : index
    %c2_41 = arith.constant 2 : index
    %c0_42 = arith.constant 0 : index
    %68 = vector.load %arg5[%c1_40, %c2_41, %c0_42] : memref<10x10x256xf32, #tpu.memory_space<vmem>>, vector<1x1x256xf32>
    %69 = vector.shape_cast %68 : vector<1x1x256xf32> to vector<1x256xf32>
    %70 = vector.broadcast %69 : vector<1x256xf32> to vector<10x256xf32>
    %71 = arith.mulf %67, %70 : vector<10x256xf32>
    %72 = arith.subf %63, %71 : vector<10x256xf32>
    %73 = arith.mulf %69, %69 : vector<1x256xf32>
    %74 = arith.subf %65, %73 : vector<1x256xf32>
    %75 = math.rsqrt %74 : vector<1x256xf32>
    %76 = math.log %74 : vector<1x256xf32>
    %77 = arith.addf %38, %76 : vector<1x256xf32>
    %c2_i32 = arith.constant 2 : i32
    %78 = vector.broadcast %c2_i32 : i32 to vector<10x256xi32>
    %79 = arith.cmpi sgt, %0, %78 : vector<10x256xi32>
    %80 = vector.broadcast %75 : vector<1x256xf32> to vector<10x256xf32>
    %81 = arith.mulf %72, %80 : vector<10x256xf32>
    %c2_i32_43 = arith.constant 2 : i32
    %82 = vector.broadcast %c2_i32_43 : i32 to vector<10x256xi32>
    %83 = arith.cmpi eq, %0, %82 : vector<10x256xi32>
    %cst_44 = arith.constant 0.000000e+00 : f32
    %84 = vector.shape_cast %75 : vector<1x256xf32> to vector<1x256xf32>
    %85 = vector.broadcast %84 : vector<1x256xf32> to vector<10x256xf32>
    %86 = vector.broadcast %cst_44 : f32 to vector<10x256xf32>
    %87 = arith.select %83, %85, %86 : vector<10x256xi1>, vector<10x256xf32>
    %88 = arith.select %79, %81, %87 : vector<10x256xi1>, vector<10x256xf32>
    %c2_45 = arith.constant 2 : index
    %c0_46 = arith.constant 0 : index
    %c0_47 = arith.constant 0 : index
    %89 = vector.load %arg5[%c2_45, %c0_46, %c0_47] : memref<10x10x256xf32, #tpu.memory_space<vmem>>, vector<1x10x256xf32>
    %90 = vector.shape_cast %89 : vector<1x10x256xf32> to vector<10x256xf32>
    %91 = vector.shape_cast %88 : vector<10x256xf32> to vector<1x10x256xf32>
    tpu.vector_store %arg5[%c2_45, %c0_46, %c0_47], %91 {strides = array<i32>} : memref<10x10x256xf32, #tpu.memory_space<vmem>>, vector<1x10x256xf32>,
    %c3 = arith.constant 3 : index
    %c0_48 = arith.constant 0 : index
    %c0_49 = arith.constant 0 : index
    %92 = vector.load %arg2[%c3, %c0_48, %c0_49] : memref<10x10x256xf32, #tpu.memory_space<vmem>>, vector<1x10x256xf32>
    %93 = vector.shape_cast %92 : vector<1x10x256xf32> to vector<10x256xf32>
    %c3_50 = arith.constant 3 : index
    %c3_51 = arith.constant 3 : index
    %c0_52 = arith.constant 0 : index
    %94 = vector.load %arg2[%c3_50, %c3_51, %c0_52] : memref<10x10x256xf32, #tpu.memory_space<vmem>>, vector<1x1x256xf32>
    %95 = vector.shape_cast %94 : vector<1x1x256xf32> to vector<1x256xf32>
    %c0_53 = arith.constant 0 : index
    %c0_54 = arith.constant 0 : index
    %c0_55 = arith.constant 0 : index
    %96 = vector.load %arg5[%c0_53, %c0_54, %c0_55] : memref<10x10x256xf32, #tpu.memory_space<vmem>>, vector<1x10x256xf32>
    %97 = vector.shape_cast %96 : vector<1x10x256xf32> to vector<10x256xf32>
    %c0_56 = arith.constant 0 : index
    %c3_57 = arith.constant 3 : index
    %c0_58 = arith.constant 0 : index
    %98 = vector.load %arg5[%c0_56, %c3_57, %c0_58] : memref<10x10x256xf32, #tpu.memory_space<vmem>>, vector<1x1x256xf32>
    %99 = vector.shape_cast %98 : vector<1x1x256xf32> to vector<1x256xf32>
    %100 = vector.broadcast %99 : vector<1x256xf32> to vector<10x256xf32>
    %101 = arith.mulf %97, %100 : vector<10x256xf32>
    %102 = arith.subf %93, %101 : vector<10x256xf32>
    %103 = arith.mulf %99, %99 : vector<1x256xf32>
    %104 = arith.subf %95, %103 : vector<1x256xf32>
    %c1_59 = arith.constant 1 : index
    %c0_60 = arith.constant 0 : index
    %c0_61 = arith.constant 0 : index
    %105 = vector.load %arg5[%c1_59, %c0_60, %c0_61] : memref<10x10x256xf32, #tpu.memory_space<vmem>>, vector<1x10x256xf32>
    %106 = vector.shape_cast %105 : vector<1x10x256xf32> to vector<10x256xf32>
    %c1_62 = arith.constant 1 : index
    %c3_63 = arith.constant 3 : index
    %c0_64 = arith.constant 0 : index
    %107 = vector.load %arg5[%c1_62, %c3_63, %c0_64] : memref<10x10x256xf32, #tpu.memory_space<vmem>>, vector<1x1x256xf32>
    %108 = vector.shape_cast %107 : vector<1x1x256xf32> to vector<1x256xf32>
    %109 = vector.broadcast %108 : vector<1x256xf32> to vector<10x256xf32>
    %110 = arith.mulf %106, %109 : vector<10x256xf32>
    %111 = arith.subf %102, %110 : vector<10x256xf32>
    %112 = arith.mulf %108, %108 : vector<1x256xf32>
    %113 = arith.subf %104, %112 : vector<1x256xf32>
    %c2_65 = arith.constant 2 : index
    %c0_66 = arith.constant 0 : index
    %c0_67 = arith.constant 0 : index
    %114 = vector.load %arg5[%c2_65, %c0_66, %c0_67] : memref<10x10x256xf32, #tpu.memory_space<vmem>>, vector<1x10x256xf32>
    %115 = vector.shape_cast %114 : vector<1x10x256xf32> to vector<10x256xf32>
    %c2_68 = arith.constant 2 : index
    %c3_69 = arith.constant 3 : index
    %c0_70 = arith.constant 0 : index
    %116 = vector.load %arg5[%c2_68, %c3_69, %c0_70] : memref<10x10x256xf32, #tpu.memory_space<vmem>>, vector<1x1x256xf32>
    %117 = vector.shape_cast %116 : vector<1x1x256xf32> to vector<1x256xf32>
    %118 = vector.broadcast %117 : vector<1x256xf32> to vector<10x256xf32>
    %119 = arith.mulf %115, %118 : vector<10x256xf32>
    %120 = arith.subf %111, %119 : vector<10x256xf32>
    %121 = arith.mulf %117, %117 : vector<1x256xf32>
    %122 = arith.subf %113, %121 : vector<1x256xf32>
    %123 = math.rsqrt %122 : vector<1x256xf32>
    %124 = math.log %122 : vector<1x256xf32>
    %125 = arith.addf %77, %124 : vector<1x256xf32>
    %c3_i32 = arith.constant 3 : i32
    %126 = vector.broadcast %c3_i32 : i32 to vector<10x256xi32>
    %127 = arith.cmpi sgt, %0, %126 : vector<10x256xi32>
    %128 = vector.broadcast %123 : vector<1x256xf32> to vector<10x256xf32>
    %129 = arith.mulf %120, %128 : vector<10x256xf32>
    %c3_i32_71 = arith.constant 3 : i32
    %130 = vector.broadcast %c3_i32_71 : i32 to vector<10x256xi32>
    %131 = arith.cmpi eq, %0, %130 : vector<10x256xi32>
    %cst_72 = arith.constant 0.000000e+00 : f32
    %132 = vector.shape_cast %123 : vector<1x256xf32> to vector<1x256xf32>
    %133 = vector.broadcast %132 : vector<1x256xf32> to vector<10x256xf32>
    %134 = vector.broadcast %cst_72 : f32 to vector<10x256xf32>
    %135 = arith.select %131, %133, %134 : vector<10x256xi1>, vector<10x256xf32>
    %136 = arith.select %127, %129, %135 : vector<10x256xi1>, vector<10x256xf32>
    %c3_73 = arith.constant 3 : index
    %c0_74 = arith.constant 0 : index
    %c0_75 = arith.constant 0 : index
    %137 = vector.load %arg5[%c3_73, %c0_74, %c0_75] : memref<10x10x256xf32, #tpu.memory_space<vmem>>, vector<1x10x256xf32>
    %138 = vector.shape_cast %137 : vector<1x10x256xf32> to vector<10x256xf32>
    %139 = vector.shape_cast %136 : vector<10x256xf32> to vector<1x10x256xf32>
    tpu.vector_store %arg5[%c3_73, %c0_74, %c0_75], %139 {strides = array<i32>} : memref<10x10x256xf32, #tpu.memory_space<vmem>>, vector<1x10x256xf32>,
    %c4 = arith.constant 4 : index
    %c0_76 = arith.constant 0 : index
    %c0_77 = arith.constant 0 : index
    %140 = vector.load %arg2[%c4, %c0_76, %c0_77] : memref<10x10x256xf32, #tpu.memory_space<vmem>>, vector<1x10x256xf32>
    %141 = vector.shape_cast %140 : vector<1x10x256xf32> to vector<10x256xf32>
    %c4_78 = arith.constant 4 : index
    %c4_79 = arith.constant 4 : index
    %c0_80 = arith.constant 0 : index
    %142 = vector.load %arg2[%c4_78, %c4_79, %c0_80] : memref<10x10x256xf32, #tpu.memory_space<vmem>>, vector<1x1x256xf32>
    %143 = vector.shape_cast %142 : vector<1x1x256xf32> to vector<1x256xf32>
    %c0_81 = arith.constant 0 : index
    %c0_82 = arith.constant 0 : index
    %c0_83 = arith.constant 0 : index
    %144 = vector.load %arg5[%c0_81, %c0_82, %c0_83] : memref<10x10x256xf32, #tpu.memory_space<vmem>>, vector<1x10x256xf32>
    %145 = vector.shape_cast %144 : vector<1x10x256xf32> to vector<10x256xf32>
    %c0_84 = arith.constant 0 : index
    %c4_85 = arith.constant 4 : index
    %c0_86 = arith.constant 0 : index
    %146 = vector.load %arg5[%c0_84, %c4_85, %c0_86] : memref<10x10x256xf32, #tpu.memory_space<vmem>>, vector<1x1x256xf32>
    %147 = vector.shape_cast %146 : vector<1x1x256xf32> to vector<1x256xf32>
    %148 = vector.broadcast %147 : vector<1x256xf32> to vector<10x256xf32>
    %149 = arith.mulf %145, %148 : vector<10x256xf32>
    %150 = arith.subf %141, %149 : vector<10x256xf32>
    %151 = arith.mulf %147, %147 : vector<1x256xf32>
    %152 = arith.subf %143, %151 : vector<1x256xf32>
    %c1_87 = arith.constant 1 : index
    %c0_88 = arith.constant 0 : index
    %c0_89 = arith.constant 0 : index
    %153 = vector.load %arg5[%c1_87, %c0_88, %c0_89] : memref<10x10x256xf32, #tpu.memory_space<vmem>>, vector<1x10x256xf32>
    %154 = vector.shape_cast %153 : vector<1x10x256xf32> to vector<10x256xf32>
    %c1_90 = arith.constant 1 : index
    %c4_91 = arith.constant 4 : index
    %c0_92 = arith.constant 0 : index
    %155 = vector.load %arg5[%c1_90, %c4_91, %c0_92] : memref<10x10x256xf32, #tpu.memory_space<vmem>>, vector<1x1x256xf32>
    %156 = vector.shape_cast %155 : vector<1x1x256xf32> to vector<1x256xf32>
    %157 = vector.broadcast %156 : vector<1x256xf32> to vector<10x256xf32>
    %158 = arith.mulf %154, %157 : vector<10x256xf32>
    %159 = arith.subf %150, %158 : vector<10x256xf32>
    %160 = arith.mulf %156, %156 : vector<1x256xf32>
    %161 = arith.subf %152, %160 : vector<1x256xf32>
    %c2_93 = arith.constant 2 : index
    %c0_94 = arith.constant 0 : index
    %c0_95 = arith.constant 0 : index
    %162 = vector.load %arg5[%c2_93, %c0_94, %c0_95] : memref<10x10x256xf32, #tpu.memory_space<vmem>>, vector<1x10x256xf32>
    %163 = vector.shape_cast %162 : vector<1x10x256xf32> to vector<10x256xf32>
    %c2_96 = arith.constant 2 : index
    %c4_97 = arith.constant 4 : index
    %c0_98 = arith.constant 0 : index
    %164 = vector.load %arg5[%c2_96, %c4_97, %c0_98] : memref<10x10x256xf32, #tpu.memory_space<vmem>>, vector<1x1x256xf32>
    %165 = vector.shape_cast %164 : vector<1x1x256xf32> to vector<1x256xf32>
    %166 = vector.broadcast %165 : vector<1x256xf32> to vector<10x256xf32>
    %167 = arith.mulf %163, %166 : vector<10x256xf32>
    %168 = arith.subf %159, %167 : vector<10x256xf32>
    %169 = arith.mulf %165, %165 : vector<1x256xf32>
    %170 = arith.subf %161, %169 : vector<1x256xf32>
    %c3_99 = arith.constant 3 : index
    %c0_100 = arith.constant 0 : index
    %c0_101 = arith.constant 0 : index
    %171 = vector.load %arg5[%c3_99, %c0_100, %c0_101] : memref<10x10x256xf32, #tpu.memory_space<vmem>>, vector<1x10x256xf32>
    %172 = vector.shape_cast %171 : vector<1x10x256xf32> to vector<10x256xf32>
    %c3_102 = arith.constant 3 : index
    %c4_103 = arith.constant 4 : index
    %c0_104 = arith.constant 0 : index
    %173 = vector.load %arg5[%c3_102, %c4_103, %c0_104] : memref<10x10x256xf32, #tpu.memory_space<vmem>>, vector<1x1x256xf32>
    %174 = vector.shape_cast %173 : vector<1x1x256xf32> to vector<1x256xf32>
    %175 = vector.broadcast %174 : vector<1x256xf32> to vector<10x256xf32>
    %176 = arith.mulf %172, %175 : vector<10x256xf32>
    %177 = arith.subf %168, %176 : vector<10x256xf32>
    %178 = arith.mulf %174, %174 : vector<1x256xf32>
    %179 = arith.subf %170, %178 : vector<1x256xf32>
    %180 = math.rsqrt %179 : vector<1x256xf32>
    %181 = math.log %179 : vector<1x256xf32>
    %182 = arith.addf %125, %181 : vector<1x256xf32>
    %c4_i32 = arith.constant 4 : i32
    %183 = vector.broadcast %c4_i32 : i32 to vector<10x256xi32>
    %184 = arith.cmpi sgt, %0, %183 : vector<10x256xi32>
    %185 = vector.broadcast %180 : vector<1x256xf32> to vector<10x256xf32>
    %186 = arith.mulf %177, %185 : vector<10x256xf32>
    %c4_i32_105 = arith.constant 4 : i32
    %187 = vector.broadcast %c4_i32_105 : i32 to vector<10x256xi32>
    %188 = arith.cmpi eq, %0, %187 : vector<10x256xi32>
    %cst_106 = arith.constant 0.000000e+00 : f32
    %189 = vector.shape_cast %180 : vector<1x256xf32> to vector<1x256xf32>
    %190 = vector.broadcast %189 : vector<1x256xf32> to vector<10x256xf32>
    %191 = vector.broadcast %cst_106 : f32 to vector<10x256xf32>
    %192 = arith.select %188, %190, %191 : vector<10x256xi1>, vector<10x256xf32>
    %193 = arith.select %184, %186, %192 : vector<10x256xi1>, vector<10x256xf32>
    %c4_107 = arith.constant 4 : index
    %c0_108 = arith.constant 0 : index
    %c0_109 = arith.constant 0 : index
    %194 = vector.load %arg5[%c4_107, %c0_108, %c0_109] : memref<10x10x256xf32, #tpu.memory_space<vmem>>, vector<1x10x256xf32>
    %195 = vector.shape_cast %194 : vector<1x10x256xf32> to vector<10x256xf32>
    %196 = vector.shape_cast %193 : vector<10x256xf32> to vector<1x10x256xf32>
    tpu.vector_store %arg5[%c4_107, %c0_108, %c0_109], %196 {strides = array<i32>} : memref<10x10x256xf32, #tpu.memory_space<vmem>>, vector<1x10x256xf32>,
    %c5 = arith.constant 5 : index
    %c0_110 = arith.constant 0 : index
    %c0_111 = arith.constant 0 : index
    %197 = vector.load %arg2[%c5, %c0_110, %c0_111] : memref<10x10x256xf32, #tpu.memory_space<vmem>>, vector<1x10x256xf32>
    %198 = vector.shape_cast %197 : vector<1x10x256xf32> to vector<10x256xf32>
    %c5_112 = arith.constant 5 : index
    %c5_113 = arith.constant 5 : index
    %c0_114 = arith.constant 0 : index
    %199 = vector.load %arg2[%c5_112, %c5_113, %c0_114] : memref<10x10x256xf32, #tpu.memory_space<vmem>>, vector<1x1x256xf32>
    %200 = vector.shape_cast %199 : vector<1x1x256xf32> to vector<1x256xf32>
    %c0_115 = arith.constant 0 : index
    %c0_116 = arith.constant 0 : index
    %c0_117 = arith.constant 0 : index
    %201 = vector.load %arg5[%c0_115, %c0_116, %c0_117] : memref<10x10x256xf32, #tpu.memory_space<vmem>>, vector<1x10x256xf32>
    %202 = vector.shape_cast %201 : vector<1x10x256xf32> to vector<10x256xf32>
    %c0_118 = arith.constant 0 : index
    %c5_119 = arith.constant 5 : index
    %c0_120 = arith.constant 0 : index
    %203 = vector.load %arg5[%c0_118, %c5_119, %c0_120] : memref<10x10x256xf32, #tpu.memory_space<vmem>>, vector<1x1x256xf32>
    %204 = vector.shape_cast %203 : vector<1x1x256xf32> to vector<1x256xf32>
    %205 = vector.broadcast %204 : vector<1x256xf32> to vector<10x256xf32>
    %206 = arith.mulf %202, %205 : vector<10x256xf32>
    %207 = arith.subf %198, %206 : vector<10x256xf32>
    %208 = arith.mulf %204, %204 : vector<1x256xf32>
    %209 = arith.subf %200, %208 : vector<1x256xf32>
    %c1_121 = arith.constant 1 : index
    %c0_122 = arith.constant 0 : index
    %c0_123 = arith.constant 0 : index
    %210 = vector.load %arg5[%c1_121, %c0_122, %c0_123] : memref<10x10x256xf32, #tpu.memory_space<vmem>>, vector<1x10x256xf32>
    %211 = vector.shape_cast %210 : vector<1x10x256xf32> to vector<10x256xf32>
    %c1_124 = arith.constant 1 : index
    %c5_125 = arith.constant 5 : index
    %c0_126 = arith.constant 0 : index
    %212 = vector.load %arg5[%c1_124, %c5_125, %c0_126] : memref<10x10x256xf32, #tpu.memory_space<vmem>>, vector<1x1x256xf32>
    %213 = vector.shape_cast %212 : vector<1x1x256xf32> to vector<1x256xf32>
    %214 = vector.broadcast %213 : vector<1x256xf32> to vector<10x256xf32>
    %215 = arith.mulf %211, %214 : vector<10x256xf32>
    %216 = arith.subf %207, %215 : vector<10x256xf32>
    %217 = arith.mulf %213, %213 : vector<1x256xf32>
    %218 = arith.subf %209, %217 : vector<1x256xf32>
    %c2_127 = arith.constant 2 : index
    %c0_128 = arith.constant 0 : index
    %c0_129 = arith.constant 0 : index
    %219 = vector.load %arg5[%c2_127, %c0_128, %c0_129] : memref<10x10x256xf32, #tpu.memory_space<vmem>>, vector<1x10x256xf32>
    %220 = vector.shape_cast %219 : vector<1x10x256xf32> to vector<10x256xf32>
    %c2_130 = arith.constant 2 : index
    %c5_131 = arith.constant 5 : index
    %c0_132 = arith.constant 0 : index
    %221 = vector.load %arg5[%c2_130, %c5_131, %c0_132] : memref<10x10x256xf32, #tpu.memory_space<vmem>>, vector<1x1x256xf32>
    %222 = vector.shape_cast %221 : vector<1x1x256xf32> to vector<1x256xf32>
    %223 = vector.broadcast %222 : vector<1x256xf32> to vector<10x256xf32>
    %224 = arith.mulf %220, %223 : vector<10x256xf32>
    %225 = arith.subf %216, %224 : vector<10x256xf32>
    %226 = arith.mulf %222, %222 : vector<1x256xf32>
    %227 = arith.subf %218, %226 : vector<1x256xf32>
    %c3_133 = arith.constant 3 : index
    %c0_134 = arith.constant 0 : index
    %c0_135 = arith.constant 0 : index
    %228 = vector.load %arg5[%c3_133, %c0_134, %c0_135] : memref<10x10x256xf32, #tpu.memory_space<vmem>>, vector<1x10x256xf32>
    %229 = vector.shape_cast %228 : vector<1x10x256xf32> to vector<10x256xf32>
    %c3_136 = arith.constant 3 : index
    %c5_137 = arith.constant 5 : index
    %c0_138 = arith.constant 0 : index
    %230 = vector.load %arg5[%c3_136, %c5_137, %c0_138] : memref<10x10x256xf32, #tpu.memory_space<vmem>>, vector<1x1x256xf32>
    %231 = vector.shape_cast %230 : vector<1x1x256xf32> to vector<1x256xf32>
    %232 = vector.broadcast %231 : vector<1x256xf32> to vector<10x256xf32>
    %233 = arith.mulf %229, %232 : vector<10x256xf32>
    %234 = arith.subf %225, %233 : vector<10x256xf32>
    %235 = arith.mulf %231, %231 : vector<1x256xf32>
    %236 = arith.subf %227, %235 : vector<1x256xf32>
    %c4_139 = arith.constant 4 : index
    %c0_140 = arith.constant 0 : index
    %c0_141 = arith.constant 0 : index
    %237 = vector.load %arg5[%c4_139, %c0_140, %c0_141] : memref<10x10x256xf32, #tpu.memory_space<vmem>>, vector<1x10x256xf32>
    %238 = vector.shape_cast %237 : vector<1x10x256xf32> to vector<10x256xf32>
    %c4_142 = arith.constant 4 : index
    %c5_143 = arith.constant 5 : index
    %c0_144 = arith.constant 0 : index
    %239 = vector.load %arg5[%c4_142, %c5_143, %c0_144] : memref<10x10x256xf32, #tpu.memory_space<vmem>>, vector<1x1x256xf32>
    %240 = vector.shape_cast %239 : vector<1x1x256xf32> to vector<1x256xf32>
    %241 = vector.broadcast %240 : vector<1x256xf32> to vector<10x256xf32>
    %242 = arith.mulf %238, %241 : vector<10x256xf32>
    %243 = arith.subf %234, %242 : vector<10x256xf32>
    %244 = arith.mulf %240, %240 : vector<1x256xf32>
    %245 = arith.subf %236, %244 : vector<1x256xf32>
    %246 = math.rsqrt %245 : vector<1x256xf32>
    %247 = math.log %245 : vector<1x256xf32>
    %248 = arith.addf %182, %247 : vector<1x256xf32>
    %c5_i32 = arith.constant 5 : i32
    %249 = vector.broadcast %c5_i32 : i32 to vector<10x256xi32>
    %250 = arith.cmpi sgt, %0, %249 : vector<10x256xi32>
    %251 = vector.broadcast %246 : vector<1x256xf32> to vector<10x256xf32>
    %252 = arith.mulf %243, %251 : vector<10x256xf32>
    %c5_i32_145 = arith.constant 5 : i32
    %253 = vector.broadcast %c5_i32_145 : i32 to vector<10x256xi32>
    %254 = arith.cmpi eq, %0, %253 : vector<10x256xi32>
    %cst_146 = arith.constant 0.000000e+00 : f32
    %255 = vector.shape_cast %246 : vector<1x256xf32> to vector<1x256xf32>
    %256 = vector.broadcast %255 : vector<1x256xf32> to vector<10x256xf32>
    %257 = vector.broadcast %cst_146 : f32 to vector<10x256xf32>
    %258 = arith.select %254, %256, %257 : vector<10x256xi1>, vector<10x256xf32>
    %259 = arith.select %250, %252, %258 : vector<10x256xi1>, vector<10x256xf32>
    %c5_147 = arith.constant 5 : index
    %c0_148 = arith.constant 0 : index
    %c0_149 = arith.constant 0 : index
    %260 = vector.load %arg5[%c5_147, %c0_148, %c0_149] : memref<10x10x256xf32, #tpu.memory_space<vmem>>, vector<1x10x256xf32>
    %261 = vector.shape_cast %260 : vector<1x10x256xf32> to vector<10x256xf32>
    %262 = vector.shape_cast %259 : vector<10x256xf32> to vector<1x10x256xf32>
    tpu.vector_store %arg5[%c5_147, %c0_148, %c0_149], %262 {strides = array<i32>} : memref<10x10x256xf32, #tpu.memory_space<vmem>>, vector<1x10x256xf32>,
    %c6 = arith.constant 6 : index
    %c0_150 = arith.constant 0 : index
    %c0_151 = arith.constant 0 : index
    %263 = vector.load %arg2[%c6, %c0_150, %c0_151] : memref<10x10x256xf32, #tpu.memory_space<vmem>>, vector<1x10x256xf32>
    %264 = vector.shape_cast %263 : vector<1x10x256xf32> to vector<10x256xf32>
    %c6_152 = arith.constant 6 : index
    %c6_153 = arith.constant 6 : index
    %c0_154 = arith.constant 0 : index
    %265 = vector.load %arg2[%c6_152, %c6_153, %c0_154] : memref<10x10x256xf32, #tpu.memory_space<vmem>>, vector<1x1x256xf32>
    %266 = vector.shape_cast %265 : vector<1x1x256xf32> to vector<1x256xf32>
    %c0_155 = arith.constant 0 : index
    %c0_156 = arith.constant 0 : index
    %c0_157 = arith.constant 0 : index
    %267 = vector.load %arg5[%c0_155, %c0_156, %c0_157] : memref<10x10x256xf32, #tpu.memory_space<vmem>>, vector<1x10x256xf32>
    %268 = vector.shape_cast %267 : vector<1x10x256xf32> to vector<10x256xf32>
    %c0_158 = arith.constant 0 : index
    %c6_159 = arith.constant 6 : index
    %c0_160 = arith.constant 0 : index
    %269 = vector.load %arg5[%c0_158, %c6_159, %c0_160] : memref<10x10x256xf32, #tpu.memory_space<vmem>>, vector<1x1x256xf32>
    %270 = vector.shape_cast %269 : vector<1x1x256xf32> to vector<1x256xf32>
    %271 = vector.broadcast %270 : vector<1x256xf32> to vector<10x256xf32>
    %272 = arith.mulf %268, %271 : vector<10x256xf32>
    %273 = arith.subf %264, %272 : vector<10x256xf32>
    %274 = arith.mulf %270, %270 : vector<1x256xf32>
    %275 = arith.subf %266, %274 : vector<1x256xf32>
    %c1_161 = arith.constant 1 : index
    %c0_162 = arith.constant 0 : index
    %c0_163 = arith.constant 0 : index
    %276 = vector.load %arg5[%c1_161, %c0_162, %c0_163] : memref<10x10x256xf32, #tpu.memory_space<vmem>>, vector<1x10x256xf32>
    %277 = vector.shape_cast %276 : vector<1x10x256xf32> to vector<10x256xf32>
    %c1_164 = arith.constant 1 : index
    %c6_165 = arith.constant 6 : index
    %c0_166 = arith.constant 0 : index
    %278 = vector.load %arg5[%c1_164, %c6_165, %c0_166] : memref<10x10x256xf32, #tpu.memory_space<vmem>>, vector<1x1x256xf32>
    %279 = vector.shape_cast %278 : vector<1x1x256xf32> to vector<1x256xf32>
    %280 = vector.broadcast %279 : vector<1x256xf32> to vector<10x256xf32>
    %281 = arith.mulf %277, %280 : vector<10x256xf32>
    %282 = arith.subf %273, %281 : vector<10x256xf32>
    %283 = arith.mulf %279, %279 : vector<1x256xf32>
    %284 = arith.subf %275, %283 : vector<1x256xf32>
    %c2_167 = arith.constant 2 : index
    %c0_168 = arith.constant 0 : index
    %c0_169 = arith.constant 0 : index
    %285 = vector.load %arg5[%c2_167, %c0_168, %c0_169] : memref<10x10x256xf32, #tpu.memory_space<vmem>>, vector<1x10x256xf32>
    %286 = vector.shape_cast %285 : vector<1x10x256xf32> to vector<10x256xf32>
    %c2_170 = arith.constant 2 : index
    %c6_171 = arith.constant 6 : index
    %c0_172 = arith.constant 0 : index
    %287 = vector.load %arg5[%c2_170, %c6_171, %c0_172] : memref<10x10x256xf32, #tpu.memory_space<vmem>>, vector<1x1x256xf32>
    %288 = vector.shape_cast %287 : vector<1x1x256xf32> to vector<1x256xf32>
    %289 = vector.broadcast %288 : vector<1x256xf32> to vector<10x256xf32>
    %290 = arith.mulf %286, %289 : vector<10x256xf32>
    %291 = arith.subf %282, %290 : vector<10x256xf32>
    %292 = arith.mulf %288, %288 : vector<1x256xf32>
    %293 = arith.subf %284, %292 : vector<1x256xf32>
    %c3_173 = arith.constant 3 : index
    %c0_174 = arith.constant 0 : index
    %c0_175 = arith.constant 0 : index
    %294 = vector.load %arg5[%c3_173, %c0_174, %c0_175] : memref<10x10x256xf32, #tpu.memory_space<vmem>>, vector<1x10x256xf32>
    %295 = vector.shape_cast %294 : vector<1x10x256xf32> to vector<10x256xf32>
    %c3_176 = arith.constant 3 : index
    %c6_177 = arith.constant 6 : index
    %c0_178 = arith.constant 0 : index
    %296 = vector.load %arg5[%c3_176, %c6_177, %c0_178] : memref<10x10x256xf32, #tpu.memory_space<vmem>>, vector<1x1x256xf32>
    %297 = vector.shape_cast %296 : vector<1x1x256xf32> to vector<1x256xf32>
    %298 = vector.broadcast %297 : vector<1x256xf32> to vector<10x256xf32>
    %299 = arith.mulf %295, %298 : vector<10x256xf32>
    %300 = arith.subf %291, %299 : vector<10x256xf32>
    %301 = arith.mulf %297, %297 : vector<1x256xf32>
    %302 = arith.subf %293, %301 : vector<1x256xf32>
    %c4_179 = arith.constant 4 : index
    %c0_180 = arith.constant 0 : index
    %c0_181 = arith.constant 0 : index
    %303 = vector.load %arg5[%c4_179, %c0_180, %c0_181] : memref<10x10x256xf32, #tpu.memory_space<vmem>>, vector<1x10x256xf32>
    %304 = vector.shape_cast %303 : vector<1x10x256xf32> to vector<10x256xf32>
    %c4_182 = arith.constant 4 : index
    %c6_183 = arith.constant 6 : index
    %c0_184 = arith.constant 0 : index
    %305 = vector.load %arg5[%c4_182, %c6_183, %c0_184] : memref<10x10x256xf32, #tpu.memory_space<vmem>>, vector<1x1x256xf32>
    %306 = vector.shape_cast %305 : vector<1x1x256xf32> to vector<1x256xf32>
    %307 = vector.broadcast %306 : vector<1x256xf32> to vector<10x256xf32>
    %308 = arith.mulf %304, %307 : vector<10x256xf32>
    %309 = arith.subf %300, %308 : vector<10x256xf32>
    %310 = arith.mulf %306, %306 : vector<1x256xf32>
    %311 = arith.subf %302, %310 : vector<1x256xf32>
    %c5_185 = arith.constant 5 : index
    %c0_186 = arith.constant 0 : index
    %c0_187 = arith.constant 0 : index
    %312 = vector.load %arg5[%c5_185, %c0_186, %c0_187] : memref<10x10x256xf32, #tpu.memory_space<vmem>>, vector<1x10x256xf32>
    %313 = vector.shape_cast %312 : vector<1x10x256xf32> to vector<10x256xf32>
    %c5_188 = arith.constant 5 : index
    %c6_189 = arith.constant 6 : index
    %c0_190 = arith.constant 0 : index
    %314 = vector.load %arg5[%c5_188, %c6_189, %c0_190] : memref<10x10x256xf32, #tpu.memory_space<vmem>>, vector<1x1x256xf32>
    %315 = vector.shape_cast %314 : vector<1x1x256xf32> to vector<1x256xf32>
    %316 = vector.broadcast %315 : vector<1x256xf32> to vector<10x256xf32>
    %317 = arith.mulf %313, %316 : vector<10x256xf32>
    %318 = arith.subf %309, %317 : vector<10x256xf32>
    %319 = arith.mulf %315, %315 : vector<1x256xf32>
    %320 = arith.subf %311, %319 : vector<1x256xf32>
    %321 = math.rsqrt %320 : vector<1x256xf32>
    %322 = math.log %320 : vector<1x256xf32>
    %323 = arith.addf %248, %322 : vector<1x256xf32>
    %c6_i32 = arith.constant 6 : i32
    %324 = vector.broadcast %c6_i32 : i32 to vector<10x256xi32>
    %325 = arith.cmpi sgt, %0, %324 : vector<10x256xi32>
    %326 = vector.broadcast %321 : vector<1x256xf32> to vector<10x256xf32>
    %327 = arith.mulf %318, %326 : vector<10x256xf32>
    %c6_i32_191 = arith.constant 6 : i32
    %328 = vector.broadcast %c6_i32_191 : i32 to vector<10x256xi32>
    %329 = arith.cmpi eq, %0, %328 : vector<10x256xi32>
    %cst_192 = arith.constant 0.000000e+00 : f32
    %330 = vector.shape_cast %321 : vector<1x256xf32> to vector<1x256xf32>
    %331 = vector.broadcast %330 : vector<1x256xf32> to vector<10x256xf32>
    %332 = vector.broadcast %cst_192 : f32 to vector<10x256xf32>
    %333 = arith.select %329, %331, %332 : vector<10x256xi1>, vector<10x256xf32>
    %334 = arith.select %325, %327, %333 : vector<10x256xi1>, vector<10x256xf32>
    %c6_193 = arith.constant 6 : index
    %c0_194 = arith.constant 0 : index
    %c0_195 = arith.constant 0 : index
    %335 = vector.load %arg5[%c6_193, %c0_194, %c0_195] : memref<10x10x256xf32, #tpu.memory_space<vmem>>, vector<1x10x256xf32>
    %336 = vector.shape_cast %335 : vector<1x10x256xf32> to vector<10x256xf32>
    %337 = vector.shape_cast %334 : vector<10x256xf32> to vector<1x10x256xf32>
    tpu.vector_store %arg5[%c6_193, %c0_194, %c0_195], %337 {strides = array<i32>} : memref<10x10x256xf32, #tpu.memory_space<vmem>>, vector<1x10x256xf32>,
    %c7 = arith.constant 7 : index
    %c0_196 = arith.constant 0 : index
    %c0_197 = arith.constant 0 : index
    %338 = vector.load %arg2[%c7, %c0_196, %c0_197] : memref<10x10x256xf32, #tpu.memory_space<vmem>>, vector<1x10x256xf32>
    %339 = vector.shape_cast %338 : vector<1x10x256xf32> to vector<10x256xf32>
    %c7_198 = arith.constant 7 : index
    %c7_199 = arith.constant 7 : index
    %c0_200 = arith.constant 0 : index
    %340 = vector.load %arg2[%c7_198, %c7_199, %c0_200] : memref<10x10x256xf32, #tpu.memory_space<vmem>>, vector<1x1x256xf32>
    %341 = vector.shape_cast %340 : vector<1x1x256xf32> to vector<1x256xf32>
    %c0_201 = arith.constant 0 : index
    %c0_202 = arith.constant 0 : index
    %c0_203 = arith.constant 0 : index
    %342 = vector.load %arg5[%c0_201, %c0_202, %c0_203] : memref<10x10x256xf32, #tpu.memory_space<vmem>>, vector<1x10x256xf32>
    %343 = vector.shape_cast %342 : vector<1x10x256xf32> to vector<10x256xf32>
    %c0_204 = arith.constant 0 : index
    %c7_205 = arith.constant 7 : index
    %c0_206 = arith.constant 0 : index
    %344 = vector.load %arg5[%c0_204, %c7_205, %c0_206] : memref<10x10x256xf32, #tpu.memory_space<vmem>>, vector<1x1x256xf32>
    %345 = vector.shape_cast %344 : vector<1x1x256xf32> to vector<1x256xf32>
    %346 = vector.broadcast %345 : vector<1x256xf32> to vector<10x256xf32>
    %347 = arith.mulf %343, %346 : vector<10x256xf32>
    %348 = arith.subf %339, %347 : vector<10x256xf32>
    %349 = arith.mulf %345, %345 : vector<1x256xf32>
    %350 = arith.subf %341, %349 : vector<1x256xf32>
    %c1_207 = arith.constant 1 : index
    %c0_208 = arith.constant 0 : index
    %c0_209 = arith.constant 0 : index
    %351 = vector.load %arg5[%c1_207, %c0_208, %c0_209] : memref<10x10x256xf32, #tpu.memory_space<vmem>>, vector<1x10x256xf32>
    %352 = vector.shape_cast %351 : vector<1x10x256xf32> to vector<10x256xf32>
    %c1_210 = arith.constant 1 : index
    %c7_211 = arith.constant 7 : index
    %c0_212 = arith.constant 0 : index
    %353 = vector.load %arg5[%c1_210, %c7_211, %c0_212] : memref<10x10x256xf32, #tpu.memory_space<vmem>>, vector<1x1x256xf32>
    %354 = vector.shape_cast %353 : vector<1x1x256xf32> to vector<1x256xf32>
    %355 = vector.broadcast %354 : vector<1x256xf32> to vector<10x256xf32>
    %356 = arith.mulf %352, %355 : vector<10x256xf32>
    %357 = arith.subf %348, %356 : vector<10x256xf32>
    %358 = arith.mulf %354, %354 : vector<1x256xf32>
    %359 = arith.subf %350, %358 : vector<1x256xf32>
    %c2_213 = arith.constant 2 : index
    %c0_214 = arith.constant 0 : index
    %c0_215 = arith.constant 0 : index
    %360 = vector.load %arg5[%c2_213, %c0_214, %c0_215] : memref<10x10x256xf32, #tpu.memory_space<vmem>>, vector<1x10x256xf32>
    %361 = vector.shape_cast %360 : vector<1x10x256xf32> to vector<10x256xf32>
    %c2_216 = arith.constant 2 : index
    %c7_217 = arith.constant 7 : index
    %c0_218 = arith.constant 0 : index
    %362 = vector.load %arg5[%c2_216, %c7_217, %c0_218] : memref<10x10x256xf32, #tpu.memory_space<vmem>>, vector<1x1x256xf32>
    %363 = vector.shape_cast %362 : vector<1x1x256xf32> to vector<1x256xf32>
    %364 = vector.broadcast %363 : vector<1x256xf32> to vector<10x256xf32>
    %365 = arith.mulf %361, %364 : vector<10x256xf32>
    %366 = arith.subf %357, %365 : vector<10x256xf32>
    %367 = arith.mulf %363, %363 : vector<1x256xf32>
    %368 = arith.subf %359, %367 : vector<1x256xf32>
    %c3_219 = arith.constant 3 : index
    %c0_220 = arith.constant 0 : index
    %c0_221 = arith.constant 0 : index
    %369 = vector.load %arg5[%c3_219, %c0_220, %c0_221] : memref<10x10x256xf32, #tpu.memory_space<vmem>>, vector<1x10x256xf32>
    %370 = vector.shape_cast %369 : vector<1x10x256xf32> to vector<10x256xf32>
    %c3_222 = arith.constant 3 : index
    %c7_223 = arith.constant 7 : index
    %c0_224 = arith.constant 0 : index
    %371 = vector.load %arg5[%c3_222, %c7_223, %c0_224] : memref<10x10x256xf32, #tpu.memory_space<vmem>>, vector<1x1x256xf32>
    %372 = vector.shape_cast %371 : vector<1x1x256xf32> to vector<1x256xf32>
    %373 = vector.broadcast %372 : vector<1x256xf32> to vector<10x256xf32>
    %374 = arith.mulf %370, %373 : vector<10x256xf32>
    %375 = arith.subf %366, %374 : vector<10x256xf32>
    %376 = arith.mulf %372, %372 : vector<1x256xf32>
    %377 = arith.subf %368, %376 : vector<1x256xf32>
    %c4_225 = arith.constant 4 : index
    %c0_226 = arith.constant 0 : index
    %c0_227 = arith.constant 0 : index
    %378 = vector.load %arg5[%c4_225, %c0_226, %c0_227] : memref<10x10x256xf32, #tpu.memory_space<vmem>>, vector<1x10x256xf32>
    %379 = vector.shape_cast %378 : vector<1x10x256xf32> to vector<10x256xf32>
    %c4_228 = arith.constant 4 : index
    %c7_229 = arith.constant 7 : index
    %c0_230 = arith.constant 0 : index
    %380 = vector.load %arg5[%c4_228, %c7_229, %c0_230] : memref<10x10x256xf32, #tpu.memory_space<vmem>>, vector<1x1x256xf32>
    %381 = vector.shape_cast %380 : vector<1x1x256xf32> to vector<1x256xf32>
    %382 = vector.broadcast %381 : vector<1x256xf32> to vector<10x256xf32>
    %383 = arith.mulf %379, %382 : vector<10x256xf32>
    %384 = arith.subf %375, %383 : vector<10x256xf32>
    %385 = arith.mulf %381, %381 : vector<1x256xf32>
    %386 = arith.subf %377, %385 : vector<1x256xf32>
    %c5_231 = arith.constant 5 : index
    %c0_232 = arith.constant 0 : index
    %c0_233 = arith.constant 0 : index
    %387 = vector.load %arg5[%c5_231, %c0_232, %c0_233] : memref<10x10x256xf32, #tpu.memory_space<vmem>>, vector<1x10x256xf32>
    %388 = vector.shape_cast %387 : vector<1x10x256xf32> to vector<10x256xf32>
    %c5_234 = arith.constant 5 : index
    %c7_235 = arith.constant 7 : index
    %c0_236 = arith.constant 0 : index
    %389 = vector.load %arg5[%c5_234, %c7_235, %c0_236] : memref<10x10x256xf32, #tpu.memory_space<vmem>>, vector<1x1x256xf32>
    %390 = vector.shape_cast %389 : vector<1x1x256xf32> to vector<1x256xf32>
    %391 = vector.broadcast %390 : vector<1x256xf32> to vector<10x256xf32>
    %392 = arith.mulf %388, %391 : vector<10x256xf32>
    %393 = arith.subf %384, %392 : vector<10x256xf32>
    %394 = arith.mulf %390, %390 : vector<1x256xf32>
    %395 = arith.subf %386, %394 : vector<1x256xf32>
    %c6_237 = arith.constant 6 : index
    %c0_238 = arith.constant 0 : index
    %c0_239 = arith.constant 0 : index
    %396 = vector.load %arg5[%c6_237, %c0_238, %c0_239] : memref<10x10x256xf32, #tpu.memory_space<vmem>>, vector<1x10x256xf32>
    %397 = vector.shape_cast %396 : vector<1x10x256xf32> to vector<10x256xf32>
    %c6_240 = arith.constant 6 : index
    %c7_241 = arith.constant 7 : index
    %c0_242 = arith.constant 0 : index
    %398 = vector.load %arg5[%c6_240, %c7_241, %c0_242] : memref<10x10x256xf32, #tpu.memory_space<vmem>>, vector<1x1x256xf32>
    %399 = vector.shape_cast %398 : vector<1x1x256xf32> to vector<1x256xf32>
    %400 = vector.broadcast %399 : vector<1x256xf32> to vector<10x256xf32>
    %401 = arith.mulf %397, %400 : vector<10x256xf32>
    %402 = arith.subf %393, %401 : vector<10x256xf32>
    %403 = arith.mulf %399, %399 : vector<1x256xf32>
    %404 = arith.subf %395, %403 : vector<1x256xf32>
    %405 = math.rsqrt %404 : vector<1x256xf32>
    %406 = math.log %404 : vector<1x256xf32>
    %407 = arith.addf %323, %406 : vector<1x256xf32>
    %c7_i32 = arith.constant 7 : i32
    %408 = vector.broadcast %c7_i32 : i32 to vector<10x256xi32>
    %409 = arith.cmpi sgt, %0, %408 : vector<10x256xi32>
    %410 = vector.broadcast %405 : vector<1x256xf32> to vector<10x256xf32>
    %411 = arith.mulf %402, %410 : vector<10x256xf32>
    %c7_i32_243 = arith.constant 7 : i32
    %412 = vector.broadcast %c7_i32_243 : i32 to vector<10x256xi32>
    %413 = arith.cmpi eq, %0, %412 : vector<10x256xi32>
    %cst_244 = arith.constant 0.000000e+00 : f32
    %414 = vector.shape_cast %405 : vector<1x256xf32> to vector<1x256xf32>
    %415 = vector.broadcast %414 : vector<1x256xf32> to vector<10x256xf32>
    %416 = vector.broadcast %cst_244 : f32 to vector<10x256xf32>
    %417 = arith.select %413, %415, %416 : vector<10x256xi1>, vector<10x256xf32>
    %418 = arith.select %409, %411, %417 : vector<10x256xi1>, vector<10x256xf32>
    %c7_245 = arith.constant 7 : index
    %c0_246 = arith.constant 0 : index
    %c0_247 = arith.constant 0 : index
    %419 = vector.load %arg5[%c7_245, %c0_246, %c0_247] : memref<10x10x256xf32, #tpu.memory_space<vmem>>, vector<1x10x256xf32>
    %420 = vector.shape_cast %419 : vector<1x10x256xf32> to vector<10x256xf32>
    %421 = vector.shape_cast %418 : vector<10x256xf32> to vector<1x10x256xf32>
    tpu.vector_store %arg5[%c7_245, %c0_246, %c0_247], %421 {strides = array<i32>} : memref<10x10x256xf32, #tpu.memory_space<vmem>>, vector<1x10x256xf32>,
    %c8 = arith.constant 8 : index
    %c0_248 = arith.constant 0 : index
    %c0_249 = arith.constant 0 : index
    %422 = vector.load %arg2[%c8, %c0_248, %c0_249] : memref<10x10x256xf32, #tpu.memory_space<vmem>>, vector<1x10x256xf32>
    %423 = vector.shape_cast %422 : vector<1x10x256xf32> to vector<10x256xf32>
    %c8_250 = arith.constant 8 : index
    %c8_251 = arith.constant 8 : index
    %c0_252 = arith.constant 0 : index
    %424 = vector.load %arg2[%c8_250, %c8_251, %c0_252] : memref<10x10x256xf32, #tpu.memory_space<vmem>>, vector<1x1x256xf32>
    %425 = vector.shape_cast %424 : vector<1x1x256xf32> to vector<1x256xf32>
    %c0_253 = arith.constant 0 : index
    %c0_254 = arith.constant 0 : index
    %c0_255 = arith.constant 0 : index
    %426 = vector.load %arg5[%c0_253, %c0_254, %c0_255] : memref<10x10x256xf32, #tpu.memory_space<vmem>>, vector<1x10x256xf32>
    %427 = vector.shape_cast %426 : vector<1x10x256xf32> to vector<10x256xf32>
    %c0_256 = arith.constant 0 : index
    %c8_257 = arith.constant 8 : index
    %c0_258 = arith.constant 0 : index
    %428 = vector.load %arg5[%c0_256, %c8_257, %c0_258] : memref<10x10x256xf32, #tpu.memory_space<vmem>>, vector<1x1x256xf32>
    %429 = vector.shape_cast %428 : vector<1x1x256xf32> to vector<1x256xf32>
    %430 = vector.broadcast %429 : vector<1x256xf32> to vector<10x256xf32>
    %431 = arith.mulf %427, %430 : vector<10x256xf32>
    %432 = arith.subf %423, %431 : vector<10x256xf32>
    %433 = arith.mulf %429, %429 : vector<1x256xf32>
    %434 = arith.subf %425, %433 : vector<1x256xf32>
    %c1_259 = arith.constant 1 : index
    %c0_260 = arith.constant 0 : index
    %c0_261 = arith.constant 0 : index
    %435 = vector.load %arg5[%c1_259, %c0_260, %c0_261] : memref<10x10x256xf32, #tpu.memory_space<vmem>>, vector<1x10x256xf32>
    %436 = vector.shape_cast %435 : vector<1x10x256xf32> to vector<10x256xf32>
    %c1_262 = arith.constant 1 : index
    %c8_263 = arith.constant 8 : index
    %c0_264 = arith.constant 0 : index
    %437 = vector.load %arg5[%c1_262, %c8_263, %c0_264] : memref<10x10x256xf32, #tpu.memory_space<vmem>>, vector<1x1x256xf32>
    %438 = vector.shape_cast %437 : vector<1x1x256xf32> to vector<1x256xf32>
    %439 = vector.broadcast %438 : vector<1x256xf32> to vector<10x256xf32>
    %440 = arith.mulf %436, %439 : vector<10x256xf32>
    %441 = arith.subf %432, %440 : vector<10x256xf32>
    %442 = arith.mulf %438, %438 : vector<1x256xf32>
    %443 = arith.subf %434, %442 : vector<1x256xf32>
    %c2_265 = arith.constant 2 : index
    %c0_266 = arith.constant 0 : index
    %c0_267 = arith.constant 0 : index
    %444 = vector.load %arg5[%c2_265, %c0_266, %c0_267] : memref<10x10x256xf32, #tpu.memory_space<vmem>>, vector<1x10x256xf32>
    %445 = vector.shape_cast %444 : vector<1x10x256xf32> to vector<10x256xf32>
    %c2_268 = arith.constant 2 : index
    %c8_269 = arith.constant 8 : index
    %c0_270 = arith.constant 0 : index
    %446 = vector.load %arg5[%c2_268, %c8_269, %c0_270] : memref<10x10x256xf32, #tpu.memory_space<vmem>>, vector<1x1x256xf32>
    %447 = vector.shape_cast %446 : vector<1x1x256xf32> to vector<1x256xf32>
    %448 = vector.broadcast %447 : vector<1x256xf32> to vector<10x256xf32>
    %449 = arith.mulf %445, %448 : vector<10x256xf32>
    %450 = arith.subf %441, %449 : vector<10x256xf32>
    %451 = arith.mulf %447, %447 : vector<1x256xf32>
    %452 = arith.subf %443, %451 : vector<1x256xf32>
    %c3_271 = arith.constant 3 : index
    %c0_272 = arith.constant 0 : index
    %c0_273 = arith.constant 0 : index
    %453 = vector.load %arg5[%c3_271, %c0_272, %c0_273] : memref<10x10x256xf32, #tpu.memory_space<vmem>>, vector<1x10x256xf32>
    %454 = vector.shape_cast %453 : vector<1x10x256xf32> to vector<10x256xf32>
    %c3_274 = arith.constant 3 : index
    %c8_275 = arith.constant 8 : index
    %c0_276 = arith.constant 0 : index
    %455 = vector.load %arg5[%c3_274, %c8_275, %c0_276] : memref<10x10x256xf32, #tpu.memory_space<vmem>>, vector<1x1x256xf32>
    %456 = vector.shape_cast %455 : vector<1x1x256xf32> to vector<1x256xf32>
    %457 = vector.broadcast %456 : vector<1x256xf32> to vector<10x256xf32>
    %458 = arith.mulf %454, %457 : vector<10x256xf32>
    %459 = arith.subf %450, %458 : vector<10x256xf32>
    %460 = arith.mulf %456, %456 : vector<1x256xf32>
    %461 = arith.subf %452, %460 : vector<1x256xf32>
    %c4_277 = arith.constant 4 : index
    %c0_278 = arith.constant 0 : index
    %c0_279 = arith.constant 0 : index
    %462 = vector.load %arg5[%c4_277, %c0_278, %c0_279] : memref<10x10x256xf32, #tpu.memory_space<vmem>>, vector<1x10x256xf32>
    %463 = vector.shape_cast %462 : vector<1x10x256xf32> to vector<10x256xf32>
    %c4_280 = arith.constant 4 : index
    %c8_281 = arith.constant 8 : index
    %c0_282 = arith.constant 0 : index
    %464 = vector.load %arg5[%c4_280, %c8_281, %c0_282] : memref<10x10x256xf32, #tpu.memory_space<vmem>>, vector<1x1x256xf32>
    %465 = vector.shape_cast %464 : vector<1x1x256xf32> to vector<1x256xf32>
    %466 = vector.broadcast %465 : vector<1x256xf32> to vector<10x256xf32>
    %467 = arith.mulf %463, %466 : vector<10x256xf32>
    %468 = arith.subf %459, %467 : vector<10x256xf32>
    %469 = arith.mulf %465, %465 : vector<1x256xf32>
    %470 = arith.subf %461, %469 : vector<1x256xf32>
    %c5_283 = arith.constant 5 : index
    %c0_284 = arith.constant 0 : index
    %c0_285 = arith.constant 0 : index
    %471 = vector.load %arg5[%c5_283, %c0_284, %c0_285] : memref<10x10x256xf32, #tpu.memory_space<vmem>>, vector<1x10x256xf32>
    %472 = vector.shape_cast %471 : vector<1x10x256xf32> to vector<10x256xf32>
    %c5_286 = arith.constant 5 : index
    %c8_287 = arith.constant 8 : index
    %c0_288 = arith.constant 0 : index
    %473 = vector.load %arg5[%c5_286, %c8_287, %c0_288] : memref<10x10x256xf32, #tpu.memory_space<vmem>>, vector<1x1x256xf32>
    %474 = vector.shape_cast %473 : vector<1x1x256xf32> to vector<1x256xf32>
    %475 = vector.broadcast %474 : vector<1x256xf32> to vector<10x256xf32>
    %476 = arith.mulf %472, %475 : vector<10x256xf32>
    %477 = arith.subf %468, %476 : vector<10x256xf32>
    %478 = arith.mulf %474, %474 : vector<1x256xf32>
    %479 = arith.subf %470, %478 : vector<1x256xf32>
    %c6_289 = arith.constant 6 : index
    %c0_290 = arith.constant 0 : index
    %c0_291 = arith.constant 0 : index
    %480 = vector.load %arg5[%c6_289, %c0_290, %c0_291] : memref<10x10x256xf32, #tpu.memory_space<vmem>>, vector<1x10x256xf32>
    %481 = vector.shape_cast %480 : vector<1x10x256xf32> to vector<10x256xf32>
    %c6_292 = arith.constant 6 : index
    %c8_293 = arith.constant 8 : index
    %c0_294 = arith.constant 0 : index
    %482 = vector.load %arg5[%c6_292, %c8_293, %c0_294] : memref<10x10x256xf32, #tpu.memory_space<vmem>>, vector<1x1x256xf32>
    %483 = vector.shape_cast %482 : vector<1x1x256xf32> to vector<1x256xf32>
    %484 = vector.broadcast %483 : vector<1x256xf32> to vector<10x256xf32>
    %485 = arith.mulf %481, %484 : vector<10x256xf32>
    %486 = arith.subf %477, %485 : vector<10x256xf32>
    %487 = arith.mulf %483, %483 : vector<1x256xf32>
    %488 = arith.subf %479, %487 : vector<1x256xf32>
    %c7_295 = arith.constant 7 : index
    %c0_296 = arith.constant 0 : index
    %c0_297 = arith.constant 0 : index
    %489 = vector.load %arg5[%c7_295, %c0_296, %c0_297] : memref<10x10x256xf32, #tpu.memory_space<vmem>>, vector<1x10x256xf32>
    %490 = vector.shape_cast %489 : vector<1x10x256xf32> to vector<10x256xf32>
    %c7_298 = arith.constant 7 : index
    %c8_299 = arith.constant 8 : index
    %c0_300 = arith.constant 0 : index
    %491 = vector.load %arg5[%c7_298, %c8_299, %c0_300] : memref<10x10x256xf32, #tpu.memory_space<vmem>>, vector<1x1x256xf32>
    %492 = vector.shape_cast %491 : vector<1x1x256xf32> to vector<1x256xf32>
    %493 = vector.broadcast %492 : vector<1x256xf32> to vector<10x256xf32>
    %494 = arith.mulf %490, %493 : vector<10x256xf32>
    %495 = arith.subf %486, %494 : vector<10x256xf32>
    %496 = arith.mulf %492, %492 : vector<1x256xf32>
    %497 = arith.subf %488, %496 : vector<1x256xf32>
    %498 = math.rsqrt %497 : vector<1x256xf32>
    %499 = math.log %497 : vector<1x256xf32>
    %500 = arith.addf %407, %499 : vector<1x256xf32>
    %c8_i32 = arith.constant 8 : i32
    %501 = vector.broadcast %c8_i32 : i32 to vector<10x256xi32>
    %502 = arith.cmpi sgt, %0, %501 : vector<10x256xi32>
    %503 = vector.broadcast %498 : vector<1x256xf32> to vector<10x256xf32>
    %504 = arith.mulf %495, %503 : vector<10x256xf32>
    %c8_i32_301 = arith.constant 8 : i32
    %505 = vector.broadcast %c8_i32_301 : i32 to vector<10x256xi32>
    %506 = arith.cmpi eq, %0, %505 : vector<10x256xi32>
    %cst_302 = arith.constant 0.000000e+00 : f32
    %507 = vector.shape_cast %498 : vector<1x256xf32> to vector<1x256xf32>
    %508 = vector.broadcast %507 : vector<1x256xf32> to vector<10x256xf32>
    %509 = vector.broadcast %cst_302 : f32 to vector<10x256xf32>
    %510 = arith.select %506, %508, %509 : vector<10x256xi1>, vector<10x256xf32>
    %511 = arith.select %502, %504, %510 : vector<10x256xi1>, vector<10x256xf32>
    %c8_303 = arith.constant 8 : index
    %c0_304 = arith.constant 0 : index
    %c0_305 = arith.constant 0 : index
    %512 = vector.load %arg5[%c8_303, %c0_304, %c0_305] : memref<10x10x256xf32, #tpu.memory_space<vmem>>, vector<1x10x256xf32>
    %513 = vector.shape_cast %512 : vector<1x10x256xf32> to vector<10x256xf32>
    %514 = vector.shape_cast %511 : vector<10x256xf32> to vector<1x10x256xf32>
    tpu.vector_store %arg5[%c8_303, %c0_304, %c0_305], %514 {strides = array<i32>} : memref<10x10x256xf32, #tpu.memory_space<vmem>>, vector<1x10x256xf32>,
    %c9 = arith.constant 9 : index
    %c0_306 = arith.constant 0 : index
    %c0_307 = arith.constant 0 : index
    %515 = vector.load %arg2[%c9, %c0_306, %c0_307] : memref<10x10x256xf32, #tpu.memory_space<vmem>>, vector<1x10x256xf32>
    %516 = vector.shape_cast %515 : vector<1x10x256xf32> to vector<10x256xf32>
    %c9_308 = arith.constant 9 : index
    %c9_309 = arith.constant 9 : index
    %c0_310 = arith.constant 0 : index
    %517 = vector.load %arg2[%c9_308, %c9_309, %c0_310] : memref<10x10x256xf32, #tpu.memory_space<vmem>>, vector<1x1x256xf32>
    %518 = vector.shape_cast %517 : vector<1x1x256xf32> to vector<1x256xf32>
    %c0_311 = arith.constant 0 : index
    %c0_312 = arith.constant 0 : index
    %c0_313 = arith.constant 0 : index
    %519 = vector.load %arg5[%c0_311, %c0_312, %c0_313] : memref<10x10x256xf32, #tpu.memory_space<vmem>>, vector<1x10x256xf32>
    %520 = vector.shape_cast %519 : vector<1x10x256xf32> to vector<10x256xf32>
    %c0_314 = arith.constant 0 : index
    %c9_315 = arith.constant 9 : index
    %c0_316 = arith.constant 0 : index
    %521 = vector.load %arg5[%c0_314, %c9_315, %c0_316] : memref<10x10x256xf32, #tpu.memory_space<vmem>>, vector<1x1x256xf32>
    %522 = vector.shape_cast %521 : vector<1x1x256xf32> to vector<1x256xf32>
    %523 = vector.broadcast %522 : vector<1x256xf32> to vector<10x256xf32>
    %524 = arith.mulf %520, %523 : vector<10x256xf32>
    %525 = arith.subf %516, %524 : vector<10x256xf32>
    %526 = arith.mulf %522, %522 : vector<1x256xf32>
    %527 = arith.subf %518, %526 : vector<1x256xf32>
    %c1_317 = arith.constant 1 : index
    %c0_318 = arith.constant 0 : index
    %c0_319 = arith.constant 0 : index
    %528 = vector.load %arg5[%c1_317, %c0_318, %c0_319] : memref<10x10x256xf32, #tpu.memory_space<vmem>>, vector<1x10x256xf32>
    %529 = vector.shape_cast %528 : vector<1x10x256xf32> to vector<10x256xf32>
    %c1_320 = arith.constant 1 : index
    %c9_321 = arith.constant 9 : index
    %c0_322 = arith.constant 0 : index
    %530 = vector.load %arg5[%c1_320, %c9_321, %c0_322] : memref<10x10x256xf32, #tpu.memory_space<vmem>>, vector<1x1x256xf32>
    %531 = vector.shape_cast %530 : vector<1x1x256xf32> to vector<1x256xf32>
    %532 = vector.broadcast %531 : vector<1x256xf32> to vector<10x256xf32>
    %533 = arith.mulf %529, %532 : vector<10x256xf32>
    %534 = arith.subf %525, %533 : vector<10x256xf32>
    %535 = arith.mulf %531, %531 : vector<1x256xf32>
    %536 = arith.subf %527, %535 : vector<1x256xf32>
    %c2_323 = arith.constant 2 : index
    %c0_324 = arith.constant 0 : index
    %c0_325 = arith.constant 0 : index
    %537 = vector.load %arg5[%c2_323, %c0_324, %c0_325] : memref<10x10x256xf32, #tpu.memory_space<vmem>>, vector<1x10x256xf32>
    %538 = vector.shape_cast %537 : vector<1x10x256xf32> to vector<10x256xf32>
    %c2_326 = arith.constant 2 : index
    %c9_327 = arith.constant 9 : index
    %c0_328 = arith.constant 0 : index
    %539 = vector.load %arg5[%c2_326, %c9_327, %c0_328] : memref<10x10x256xf32, #tpu.memory_space<vmem>>, vector<1x1x256xf32>
    %540 = vector.shape_cast %539 : vector<1x1x256xf32> to vector<1x256xf32>
    %541 = vector.broadcast %540 : vector<1x256xf32> to vector<10x256xf32>
    %542 = arith.mulf %538, %541 : vector<10x256xf32>
    %543 = arith.subf %534, %542 : vector<10x256xf32>
    %544 = arith.mulf %540, %540 : vector<1x256xf32>
    %545 = arith.subf %536, %544 : vector<1x256xf32>
    %c3_329 = arith.constant 3 : index
    %c0_330 = arith.constant 0 : index
    %c0_331 = arith.constant 0 : index
    %546 = vector.load %arg5[%c3_329, %c0_330, %c0_331] : memref<10x10x256xf32, #tpu.memory_space<vmem>>, vector<1x10x256xf32>
    %547 = vector.shape_cast %546 : vector<1x10x256xf32> to vector<10x256xf32>
    %c3_332 = arith.constant 3 : index
    %c9_333 = arith.constant 9 : index
    %c0_334 = arith.constant 0 : index
    %548 = vector.load %arg5[%c3_332, %c9_333, %c0_334] : memref<10x10x256xf32, #tpu.memory_space<vmem>>, vector<1x1x256xf32>
    %549 = vector.shape_cast %548 : vector<1x1x256xf32> to vector<1x256xf32>
    %550 = vector.broadcast %549 : vector<1x256xf32> to vector<10x256xf32>
    %551 = arith.mulf %547, %550 : vector<10x256xf32>
    %552 = arith.subf %543, %551 : vector<10x256xf32>
    %553 = arith.mulf %549, %549 : vector<1x256xf32>
    %554 = arith.subf %545, %553 : vector<1x256xf32>
    %c4_335 = arith.constant 4 : index
    %c0_336 = arith.constant 0 : index
    %c0_337 = arith.constant 0 : index
    %555 = vector.load %arg5[%c4_335, %c0_336, %c0_337] : memref<10x10x256xf32, #tpu.memory_space<vmem>>, vector<1x10x256xf32>
    %556 = vector.shape_cast %555 : vector<1x10x256xf32> to vector<10x256xf32>
    %c4_338 = arith.constant 4 : index
    %c9_339 = arith.constant 9 : index
    %c0_340 = arith.constant 0 : index
    %557 = vector.load %arg5[%c4_338, %c9_339, %c0_340] : memref<10x10x256xf32, #tpu.memory_space<vmem>>, vector<1x1x256xf32>
    %558 = vector.shape_cast %557 : vector<1x1x256xf32> to vector<1x256xf32>
    %559 = vector.broadcast %558 : vector<1x256xf32> to vector<10x256xf32>
    %560 = arith.mulf %556, %559 : vector<10x256xf32>
    %561 = arith.subf %552, %560 : vector<10x256xf32>
    %562 = arith.mulf %558, %558 : vector<1x256xf32>
    %563 = arith.subf %554, %562 : vector<1x256xf32>
    %c5_341 = arith.constant 5 : index
    %c0_342 = arith.constant 0 : index
    %c0_343 = arith.constant 0 : index
    %564 = vector.load %arg5[%c5_341, %c0_342, %c0_343] : memref<10x10x256xf32, #tpu.memory_space<vmem>>, vector<1x10x256xf32>
    %565 = vector.shape_cast %564 : vector<1x10x256xf32> to vector<10x256xf32>
    %c5_344 = arith.constant 5 : index
    %c9_345 = arith.constant 9 : index
    %c0_346 = arith.constant 0 : index
    %566 = vector.load %arg5[%c5_344, %c9_345, %c0_346] : memref<10x10x256xf32, #tpu.memory_space<vmem>>, vector<1x1x256xf32>
    %567 = vector.shape_cast %566 : vector<1x1x256xf32> to vector<1x256xf32>
    %568 = vector.broadcast %567 : vector<1x256xf32> to vector<10x256xf32>
    %569 = arith.mulf %565, %568 : vector<10x256xf32>
    %570 = arith.subf %561, %569 : vector<10x256xf32>
    %571 = arith.mulf %567, %567 : vector<1x256xf32>
    %572 = arith.subf %563, %571 : vector<1x256xf32>
    %c6_347 = arith.constant 6 : index
    %c0_348 = arith.constant 0 : index
    %c0_349 = arith.constant 0 : index
    %573 = vector.load %arg5[%c6_347, %c0_348, %c0_349] : memref<10x10x256xf32, #tpu.memory_space<vmem>>, vector<1x10x256xf32>
    %574 = vector.shape_cast %573 : vector<1x10x256xf32> to vector<10x256xf32>
    %c6_350 = arith.constant 6 : index
    %c9_351 = arith.constant 9 : index
    %c0_352 = arith.constant 0 : index
    %575 = vector.load %arg5[%c6_350, %c9_351, %c0_352] : memref<10x10x256xf32, #tpu.memory_space<vmem>>, vector<1x1x256xf32>
    %576 = vector.shape_cast %575 : vector<1x1x256xf32> to vector<1x256xf32>
    %577 = vector.broadcast %576 : vector<1x256xf32> to vector<10x256xf32>
    %578 = arith.mulf %574, %577 : vector<10x256xf32>
    %579 = arith.subf %570, %578 : vector<10x256xf32>
    %580 = arith.mulf %576, %576 : vector<1x256xf32>
    %581 = arith.subf %572, %580 : vector<1x256xf32>
    %c7_353 = arith.constant 7 : index
    %c0_354 = arith.constant 0 : index
    %c0_355 = arith.constant 0 : index
    %582 = vector.load %arg5[%c7_353, %c0_354, %c0_355] : memref<10x10x256xf32, #tpu.memory_space<vmem>>, vector<1x10x256xf32>
    %583 = vector.shape_cast %582 : vector<1x10x256xf32> to vector<10x256xf32>
    %c7_356 = arith.constant 7 : index
    %c9_357 = arith.constant 9 : index
    %c0_358 = arith.constant 0 : index
    %584 = vector.load %arg5[%c7_356, %c9_357, %c0_358] : memref<10x10x256xf32, #tpu.memory_space<vmem>>, vector<1x1x256xf32>
    %585 = vector.shape_cast %584 : vector<1x1x256xf32> to vector<1x256xf32>
    %586 = vector.broadcast %585 : vector<1x256xf32> to vector<10x256xf32>
    %587 = arith.mulf %583, %586 : vector<10x256xf32>
    %588 = arith.subf %579, %587 : vector<10x256xf32>
    %589 = arith.mulf %585, %585 : vector<1x256xf32>
    %590 = arith.subf %581, %589 : vector<1x256xf32>
    %c8_359 = arith.constant 8 : index
    %c0_360 = arith.constant 0 : index
    %c0_361 = arith.constant 0 : index
    %591 = vector.load %arg5[%c8_359, %c0_360, %c0_361] : memref<10x10x256xf32, #tpu.memory_space<vmem>>, vector<1x10x256xf32>
    %592 = vector.shape_cast %591 : vector<1x10x256xf32> to vector<10x256xf32>
    %c8_362 = arith.constant 8 : index
    %c9_363 = arith.constant 9 : index
    %c0_364 = arith.constant 0 : index
    %593 = vector.load %arg5[%c8_362, %c9_363, %c0_364] : memref<10x10x256xf32, #tpu.memory_space<vmem>>, vector<1x1x256xf32>
    %594 = vector.shape_cast %593 : vector<1x1x256xf32> to vector<1x256xf32>
    %595 = vector.broadcast %594 : vector<1x256xf32> to vector<10x256xf32>
    %596 = arith.mulf %592, %595 : vector<10x256xf32>
    %597 = arith.subf %588, %596 : vector<10x256xf32>
    %598 = arith.mulf %594, %594 : vector<1x256xf32>
    %599 = arith.subf %590, %598 : vector<1x256xf32>
    %600 = math.rsqrt %599 : vector<1x256xf32>
    %601 = math.log %599 : vector<1x256xf32>
    %602 = arith.addf %500, %601 : vector<1x256xf32>
    %c9_i32 = arith.constant 9 : i32
    %603 = vector.broadcast %c9_i32 : i32 to vector<10x256xi32>
    %604 = arith.cmpi sgt, %0, %603 : vector<10x256xi32>
    %605 = vector.broadcast %600 : vector<1x256xf32> to vector<10x256xf32>
    %606 = arith.mulf %597, %605 : vector<10x256xf32>
    %c9_i32_365 = arith.constant 9 : i32
    %607 = vector.broadcast %c9_i32_365 : i32 to vector<10x256xi32>
    %608 = arith.cmpi eq, %0, %607 : vector<10x256xi32>
    %cst_366 = arith.constant 0.000000e+00 : f32
    %609 = vector.shape_cast %600 : vector<1x256xf32> to vector<1x256xf32>
    %610 = vector.broadcast %609 : vector<1x256xf32> to vector<10x256xf32>
    %611 = vector.broadcast %cst_366 : f32 to vector<10x256xf32>
    %612 = arith.select %608, %610, %611 : vector<10x256xi1>, vector<10x256xf32>
    %613 = arith.select %604, %606, %612 : vector<10x256xi1>, vector<10x256xf32>
    %c9_367 = arith.constant 9 : index
    %c0_368 = arith.constant 0 : index
    %c0_369 = arith.constant 0 : index
    %614 = vector.load %arg5[%c9_367, %c0_368, %c0_369] : memref<10x10x256xf32, #tpu.memory_space<vmem>>, vector<1x10x256xf32>
    %615 = vector.shape_cast %614 : vector<1x10x256xf32> to vector<10x256xf32>
    %616 = vector.shape_cast %613 : vector<10x256xf32> to vector<1x10x256xf32>
    tpu.vector_store %arg5[%c9_367, %c0_368, %c0_369], %616 {strides = array<i32>} : memref<10x10x256xf32, #tpu.memory_space<vmem>>, vector<1x10x256xf32>,
    %cst_370 = arith.constant 0.000000e+00 : f32
    %617 = vector.broadcast %cst_370 : f32 to vector<1x256xf32>
    %c0_371 = arith.constant 0 : index
    %c0_372 = arith.constant 0 : index
    %618 = vector.load %arg1[%c0_371, %c0_372] : memref<10x256xf32, #tpu.memory_space<vmem>>, vector<1x256xf32>
    %c0_373 = arith.constant 0 : index
    %c0_374 = arith.constant 0 : index
    %619 = vector.load %arg3[%c0_373, %c0_374] : memref<10x256xf32, #tpu.memory_space<vmem>>, vector<1x256xf32>
    %620 = arith.subf %618, %619 : vector<1x256xf32>
    %c0_375 = arith.constant 0 : index
    %c0_376 = arith.constant 0 : index
    %c0_377 = arith.constant 0 : index
    %621 = vector.load %arg5[%c0_375, %c0_376, %c0_377] : memref<10x10x256xf32, #tpu.memory_space<vmem>>, vector<1x1x256xf32>
    %622 = vector.shape_cast %621 : vector<1x1x256xf32> to vector<1x256xf32>
    %623 = arith.mulf %620, %622 : vector<1x256xf32>
    %624 = arith.mulf %623, %623 : vector<1x256xf32>
    %625 = arith.addf %617, %624 : vector<1x256xf32>
    %c1_378 = arith.constant 1 : index
    %c0_379 = arith.constant 0 : index
    %626 = vector.load %arg1[%c1_378, %c0_379] : memref<10x256xf32, #tpu.memory_space<vmem>>, vector<1x256xf32>
    %c1_380 = arith.constant 1 : index
    %c0_381 = arith.constant 0 : index
    %627 = vector.load %arg3[%c1_380, %c0_381] : memref<10x256xf32, #tpu.memory_space<vmem>>, vector<1x256xf32>
    %628 = arith.subf %626, %627 : vector<1x256xf32>
    %c0_382 = arith.constant 0 : index
    %c1_383 = arith.constant 1 : index
    %c0_384 = arith.constant 0 : index
    %629 = vector.load %arg5[%c0_382, %c1_383, %c0_384] : memref<10x10x256xf32, #tpu.memory_space<vmem>>, vector<1x1x256xf32>
    %630 = vector.shape_cast %629 : vector<1x1x256xf32> to vector<1x256xf32>
    %631 = arith.mulf %630, %623 : vector<1x256xf32>
    %632 = arith.subf %628, %631 : vector<1x256xf32>
    %c1_385 = arith.constant 1 : index
    %c1_386 = arith.constant 1 : index
    %c0_387 = arith.constant 0 : index
    %633 = vector.load %arg5[%c1_385, %c1_386, %c0_387] : memref<10x10x256xf32, #tpu.memory_space<vmem>>, vector<1x1x256xf32>
    %634 = vector.shape_cast %633 : vector<1x1x256xf32> to vector<1x256xf32>
    %635 = arith.mulf %632, %634 : vector<1x256xf32>
    %636 = arith.mulf %635, %635 : vector<1x256xf32>
    %637 = arith.addf %625, %636 : vector<1x256xf32>
    %c2_388 = arith.constant 2 : index
    %c0_389 = arith.constant 0 : index
    %638 = vector.load %arg1[%c2_388, %c0_389] : memref<10x256xf32, #tpu.memory_space<vmem>>, vector<1x256xf32>
    %c2_390 = arith.constant 2 : index
    %c0_391 = arith.constant 0 : index
    %639 = vector.load %arg3[%c2_390, %c0_391] : memref<10x256xf32, #tpu.memory_space<vmem>>, vector<1x256xf32>
    %640 = arith.subf %638, %639 : vector<1x256xf32>
    %c0_392 = arith.constant 0 : index
    %c2_393 = arith.constant 2 : index
    %c0_394 = arith.constant 0 : index
    %641 = vector.load %arg5[%c0_392, %c2_393, %c0_394] : memref<10x10x256xf32, #tpu.memory_space<vmem>>, vector<1x1x256xf32>
    %642 = vector.shape_cast %641 : vector<1x1x256xf32> to vector<1x256xf32>
    %643 = arith.mulf %642, %623 : vector<1x256xf32>
    %644 = arith.subf %640, %643 : vector<1x256xf32>
    %c1_395 = arith.constant 1 : index
    %c2_396 = arith.constant 2 : index
    %c0_397 = arith.constant 0 : index
    %645 = vector.load %arg5[%c1_395, %c2_396, %c0_397] : memref<10x10x256xf32, #tpu.memory_space<vmem>>, vector<1x1x256xf32>
    %646 = vector.shape_cast %645 : vector<1x1x256xf32> to vector<1x256xf32>
    %647 = arith.mulf %646, %635 : vector<1x256xf32>
    %648 = arith.subf %644, %647 : vector<1x256xf32>
    %c2_398 = arith.constant 2 : index
    %c2_399 = arith.constant 2 : index
    %c0_400 = arith.constant 0 : index
    %649 = vector.load %arg5[%c2_398, %c2_399, %c0_400] : memref<10x10x256xf32, #tpu.memory_space<vmem>>, vector<1x1x256xf32>
    %650 = vector.shape_cast %649 : vector<1x1x256xf32> to vector<1x256xf32>
    %651 = arith.mulf %648, %650 : vector<1x256xf32>
    %652 = arith.mulf %651, %651 : vector<1x256xf32>
    %653 = arith.addf %637, %652 : vector<1x256xf32>
    %c3_401 = arith.constant 3 : index
    %c0_402 = arith.constant 0 : index
    %654 = vector.load %arg1[%c3_401, %c0_402] : memref<10x256xf32, #tpu.memory_space<vmem>>, vector<1x256xf32>
    %c3_403 = arith.constant 3 : index
    %c0_404 = arith.constant 0 : index
    %655 = vector.load %arg3[%c3_403, %c0_404] : memref<10x256xf32, #tpu.memory_space<vmem>>, vector<1x256xf32>
    %656 = arith.subf %654, %655 : vector<1x256xf32>
    %c0_405 = arith.constant 0 : index
    %c3_406 = arith.constant 3 : index
    %c0_407 = arith.constant 0 : index
    %657 = vector.load %arg5[%c0_405, %c3_406, %c0_407] : memref<10x10x256xf32, #tpu.memory_space<vmem>>, vector<1x1x256xf32>
    %658 = vector.shape_cast %657 : vector<1x1x256xf32> to vector<1x256xf32>
    %659 = arith.mulf %658, %623 : vector<1x256xf32>
    %660 = arith.subf %656, %659 : vector<1x256xf32>
    %c1_408 = arith.constant 1 : index
    %c3_409 = arith.constant 3 : index
    %c0_410 = arith.constant 0 : index
    %661 = vector.load %arg5[%c1_408, %c3_409, %c0_410] : memref<10x10x256xf32, #tpu.memory_space<vmem>>, vector<1x1x256xf32>
    %662 = vector.shape_cast %661 : vector<1x1x256xf32> to vector<1x256xf32>
    %663 = arith.mulf %662, %635 : vector<1x256xf32>
    %664 = arith.subf %660, %663 : vector<1x256xf32>
    %c2_411 = arith.constant 2 : index
    %c3_412 = arith.constant 3 : index
    %c0_413 = arith.constant 0 : index
    %665 = vector.load %arg5[%c2_411, %c3_412, %c0_413] : memref<10x10x256xf32, #tpu.memory_space<vmem>>, vector<1x1x256xf32>
    %666 = vector.shape_cast %665 : vector<1x1x256xf32> to vector<1x256xf32>
    %667 = arith.mulf %666, %651 : vector<1x256xf32>
    %668 = arith.subf %664, %667 : vector<1x256xf32>
    %c3_414 = arith.constant 3 : index
    %c3_415 = arith.constant 3 : index
    %c0_416 = arith.constant 0 : index
    %669 = vector.load %arg5[%c3_414, %c3_415, %c0_416] : memref<10x10x256xf32, #tpu.memory_space<vmem>>, vector<1x1x256xf32>
    %670 = vector.shape_cast %669 : vector<1x1x256xf32> to vector<1x256xf32>
    %671 = arith.mulf %668, %670 : vector<1x256xf32>
    %672 = arith.mulf %671, %671 : vector<1x256xf32>
    %673 = arith.addf %653, %672 : vector<1x256xf32>
    %c4_417 = arith.constant 4 : index
    %c0_418 = arith.constant 0 : index
    %674 = vector.load %arg1[%c4_417, %c0_418] : memref<10x256xf32, #tpu.memory_space<vmem>>, vector<1x256xf32>
    %c4_419 = arith.constant 4 : index
    %c0_420 = arith.constant 0 : index
    %675 = vector.load %arg3[%c4_419, %c0_420] : memref<10x256xf32, #tpu.memory_space<vmem>>, vector<1x256xf32>
    %676 = arith.subf %674, %675 : vector<1x256xf32>
    %c0_421 = arith.constant 0 : index
    %c4_422 = arith.constant 4 : index
    %c0_423 = arith.constant 0 : index
    %677 = vector.load %arg5[%c0_421, %c4_422, %c0_423] : memref<10x10x256xf32, #tpu.memory_space<vmem>>, vector<1x1x256xf32>
    %678 = vector.shape_cast %677 : vector<1x1x256xf32> to vector<1x256xf32>
    %679 = arith.mulf %678, %623 : vector<1x256xf32>
    %680 = arith.subf %676, %679 : vector<1x256xf32>
    %c1_424 = arith.constant 1 : index
    %c4_425 = arith.constant 4 : index
    %c0_426 = arith.constant 0 : index
    %681 = vector.load %arg5[%c1_424, %c4_425, %c0_426] : memref<10x10x256xf32, #tpu.memory_space<vmem>>, vector<1x1x256xf32>
    %682 = vector.shape_cast %681 : vector<1x1x256xf32> to vector<1x256xf32>
    %683 = arith.mulf %682, %635 : vector<1x256xf32>
    %684 = arith.subf %680, %683 : vector<1x256xf32>
    %c2_427 = arith.constant 2 : index
    %c4_428 = arith.constant 4 : index
    %c0_429 = arith.constant 0 : index
    %685 = vector.load %arg5[%c2_427, %c4_428, %c0_429] : memref<10x10x256xf32, #tpu.memory_space<vmem>>, vector<1x1x256xf32>
    %686 = vector.shape_cast %685 : vector<1x1x256xf32> to vector<1x256xf32>
    %687 = arith.mulf %686, %651 : vector<1x256xf32>
    %688 = arith.subf %684, %687 : vector<1x256xf32>
    %c3_430 = arith.constant 3 : index
    %c4_431 = arith.constant 4 : index
    %c0_432 = arith.constant 0 : index
    %689 = vector.load %arg5[%c3_430, %c4_431, %c0_432] : memref<10x10x256xf32, #tpu.memory_space<vmem>>, vector<1x1x256xf32>
    %690 = vector.shape_cast %689 : vector<1x1x256xf32> to vector<1x256xf32>
    %691 = arith.mulf %690, %671 : vector<1x256xf32>
    %692 = arith.subf %688, %691 : vector<1x256xf32>
    %c4_433 = arith.constant 4 : index
    %c4_434 = arith.constant 4 : index
    %c0_435 = arith.constant 0 : index
    %693 = vector.load %arg5[%c4_433, %c4_434, %c0_435] : memref<10x10x256xf32, #tpu.memory_space<vmem>>, vector<1x1x256xf32>
    %694 = vector.shape_cast %693 : vector<1x1x256xf32> to vector<1x256xf32>
    %695 = arith.mulf %692, %694 : vector<1x256xf32>
    %696 = arith.mulf %695, %695 : vector<1x256xf32>
    %697 = arith.addf %673, %696 : vector<1x256xf32>
    %c5_436 = arith.constant 5 : index
    %c0_437 = arith.constant 0 : index
    %698 = vector.load %arg1[%c5_436, %c0_437] : memref<10x256xf32, #tpu.memory_space<vmem>>, vector<1x256xf32>
    %c5_438 = arith.constant 5 : index
    %c0_439 = arith.constant 0 : index
    %699 = vector.load %arg3[%c5_438, %c0_439] : memref<10x256xf32, #tpu.memory_space<vmem>>, vector<1x256xf32>
    %700 = arith.subf %698, %699 : vector<1x256xf32>
    %c0_440 = arith.constant 0 : index
    %c5_441 = arith.constant 5 : index
    %c0_442 = arith.constant 0 : index
    %701 = vector.load %arg5[%c0_440, %c5_441, %c0_442] : memref<10x10x256xf32, #tpu.memory_space<vmem>>, vector<1x1x256xf32>
    %702 = vector.shape_cast %701 : vector<1x1x256xf32> to vector<1x256xf32>
    %703 = arith.mulf %702, %623 : vector<1x256xf32>
    %704 = arith.subf %700, %703 : vector<1x256xf32>
    %c1_443 = arith.constant 1 : index
    %c5_444 = arith.constant 5 : index
    %c0_445 = arith.constant 0 : index
    %705 = vector.load %arg5[%c1_443, %c5_444, %c0_445] : memref<10x10x256xf32, #tpu.memory_space<vmem>>, vector<1x1x256xf32>
    %706 = vector.shape_cast %705 : vector<1x1x256xf32> to vector<1x256xf32>
    %707 = arith.mulf %706, %635 : vector<1x256xf32>
    %708 = arith.subf %704, %707 : vector<1x256xf32>
    %c2_446 = arith.constant 2 : index
    %c5_447 = arith.constant 5 : index
    %c0_448 = arith.constant 0 : index
    %709 = vector.load %arg5[%c2_446, %c5_447, %c0_448] : memref<10x10x256xf32, #tpu.memory_space<vmem>>, vector<1x1x256xf32>
    %710 = vector.shape_cast %709 : vector<1x1x256xf32> to vector<1x256xf32>
    %711 = arith.mulf %710, %651 : vector<1x256xf32>
    %712 = arith.subf %708, %711 : vector<1x256xf32>
    %c3_449 = arith.constant 3 : index
    %c5_450 = arith.constant 5 : index
    %c0_451 = arith.constant 0 : index
    %713 = vector.load %arg5[%c3_449, %c5_450, %c0_451] : memref<10x10x256xf32, #tpu.memory_space<vmem>>, vector<1x1x256xf32>
    %714 = vector.shape_cast %713 : vector<1x1x256xf32> to vector<1x256xf32>
    %715 = arith.mulf %714, %671 : vector<1x256xf32>
    %716 = arith.subf %712, %715 : vector<1x256xf32>
    %c4_452 = arith.constant 4 : index
    %c5_453 = arith.constant 5 : index
    %c0_454 = arith.constant 0 : index
    %717 = vector.load %arg5[%c4_452, %c5_453, %c0_454] : memref<10x10x256xf32, #tpu.memory_space<vmem>>, vector<1x1x256xf32>
    %718 = vector.shape_cast %717 : vector<1x1x256xf32> to vector<1x256xf32>
    %719 = arith.mulf %718, %695 : vector<1x256xf32>
    %720 = arith.subf %716, %719 : vector<1x256xf32>
    %c5_455 = arith.constant 5 : index
    %c5_456 = arith.constant 5 : index
    %c0_457 = arith.constant 0 : index
    %721 = vector.load %arg5[%c5_455, %c5_456, %c0_457] : memref<10x10x256xf32, #tpu.memory_space<vmem>>, vector<1x1x256xf32>
    %722 = vector.shape_cast %721 : vector<1x1x256xf32> to vector<1x256xf32>
    %723 = arith.mulf %720, %722 : vector<1x256xf32>
    %724 = arith.mulf %723, %723 : vector<1x256xf32>
    %725 = arith.addf %697, %724 : vector<1x256xf32>
    %c6_458 = arith.constant 6 : index
    %c0_459 = arith.constant 0 : index
    %726 = vector.load %arg1[%c6_458, %c0_459] : memref<10x256xf32, #tpu.memory_space<vmem>>, vector<1x256xf32>
    %c6_460 = arith.constant 6 : index
    %c0_461 = arith.constant 0 : index
    %727 = vector.load %arg3[%c6_460, %c0_461] : memref<10x256xf32, #tpu.memory_space<vmem>>, vector<1x256xf32>
    %728 = arith.subf %726, %727 : vector<1x256xf32>
    %c0_462 = arith.constant 0 : index
    %c6_463 = arith.constant 6 : index
    %c0_464 = arith.constant 0 : index
    %729 = vector.load %arg5[%c0_462, %c6_463, %c0_464] : memref<10x10x256xf32, #tpu.memory_space<vmem>>, vector<1x1x256xf32>
    %730 = vector.shape_cast %729 : vector<1x1x256xf32> to vector<1x256xf32>
    %731 = arith.mulf %730, %623 : vector<1x256xf32>
    %732 = arith.subf %728, %731 : vector<1x256xf32>
    %c1_465 = arith.constant 1 : index
    %c6_466 = arith.constant 6 : index
    %c0_467 = arith.constant 0 : index
    %733 = vector.load %arg5[%c1_465, %c6_466, %c0_467] : memref<10x10x256xf32, #tpu.memory_space<vmem>>, vector<1x1x256xf32>
    %734 = vector.shape_cast %733 : vector<1x1x256xf32> to vector<1x256xf32>
    %735 = arith.mulf %734, %635 : vector<1x256xf32>
    %736 = arith.subf %732, %735 : vector<1x256xf32>
    %c2_468 = arith.constant 2 : index
    %c6_469 = arith.constant 6 : index
    %c0_470 = arith.constant 0 : index
    %737 = vector.load %arg5[%c2_468, %c6_469, %c0_470] : memref<10x10x256xf32, #tpu.memory_space<vmem>>, vector<1x1x256xf32>
    %738 = vector.shape_cast %737 : vector<1x1x256xf32> to vector<1x256xf32>
    %739 = arith.mulf %738, %651 : vector<1x256xf32>
    %740 = arith.subf %736, %739 : vector<1x256xf32>
    %c3_471 = arith.constant 3 : index
    %c6_472 = arith.constant 6 : index
    %c0_473 = arith.constant 0 : index
    %741 = vector.load %arg5[%c3_471, %c6_472, %c0_473] : memref<10x10x256xf32, #tpu.memory_space<vmem>>, vector<1x1x256xf32>
    %742 = vector.shape_cast %741 : vector<1x1x256xf32> to vector<1x256xf32>
    %743 = arith.mulf %742, %671 : vector<1x256xf32>
    %744 = arith.subf %740, %743 : vector<1x256xf32>
    %c4_474 = arith.constant 4 : index
    %c6_475 = arith.constant 6 : index
    %c0_476 = arith.constant 0 : index
    %745 = vector.load %arg5[%c4_474, %c6_475, %c0_476] : memref<10x10x256xf32, #tpu.memory_space<vmem>>, vector<1x1x256xf32>
    %746 = vector.shape_cast %745 : vector<1x1x256xf32> to vector<1x256xf32>
    %747 = arith.mulf %746, %695 : vector<1x256xf32>
    %748 = arith.subf %744, %747 : vector<1x256xf32>
    %c5_477 = arith.constant 5 : index
    %c6_478 = arith.constant 6 : index
    %c0_479 = arith.constant 0 : index
    %749 = vector.load %arg5[%c5_477, %c6_478, %c0_479] : memref<10x10x256xf32, #tpu.memory_space<vmem>>, vector<1x1x256xf32>
    %750 = vector.shape_cast %749 : vector<1x1x256xf32> to vector<1x256xf32>
    %751 = arith.mulf %750, %723 : vector<1x256xf32>
    %752 = arith.subf %748, %751 : vector<1x256xf32>
    %c6_480 = arith.constant 6 : index
    %c6_481 = arith.constant 6 : index
    %c0_482 = arith.constant 0 : index
    %753 = vector.load %arg5[%c6_480, %c6_481, %c0_482] : memref<10x10x256xf32, #tpu.memory_space<vmem>>, vector<1x1x256xf32>
    %754 = vector.shape_cast %753 : vector<1x1x256xf32> to vector<1x256xf32>
    %755 = arith.mulf %752, %754 : vector<1x256xf32>
    %756 = arith.mulf %755, %755 : vector<1x256xf32>
    %757 = arith.addf %725, %756 : vector<1x256xf32>
    %c7_483 = arith.constant 7 : index
    %c0_484 = arith.constant 0 : index
    %758 = vector.load %arg1[%c7_483, %c0_484] : memref<10x256xf32, #tpu.memory_space<vmem>>, vector<1x256xf32>
    %c7_485 = arith.constant 7 : index
    %c0_486 = arith.constant 0 : index
    %759 = vector.load %arg3[%c7_485, %c0_486] : memref<10x256xf32, #tpu.memory_space<vmem>>, vector<1x256xf32>
    %760 = arith.subf %758, %759 : vector<1x256xf32>
    %c0_487 = arith.constant 0 : index
    %c7_488 = arith.constant 7 : index
    %c0_489 = arith.constant 0 : index
    %761 = vector.load %arg5[%c0_487, %c7_488, %c0_489] : memref<10x10x256xf32, #tpu.memory_space<vmem>>, vector<1x1x256xf32>
    %762 = vector.shape_cast %761 : vector<1x1x256xf32> to vector<1x256xf32>
    %763 = arith.mulf %762, %623 : vector<1x256xf32>
    %764 = arith.subf %760, %763 : vector<1x256xf32>
    %c1_490 = arith.constant 1 : index
    %c7_491 = arith.constant 7 : index
    %c0_492 = arith.constant 0 : index
    %765 = vector.load %arg5[%c1_490, %c7_491, %c0_492] : memref<10x10x256xf32, #tpu.memory_space<vmem>>, vector<1x1x256xf32>
    %766 = vector.shape_cast %765 : vector<1x1x256xf32> to vector<1x256xf32>
    %767 = arith.mulf %766, %635 : vector<1x256xf32>
    %768 = arith.subf %764, %767 : vector<1x256xf32>
    %c2_493 = arith.constant 2 : index
    %c7_494 = arith.constant 7 : index
    %c0_495 = arith.constant 0 : index
    %769 = vector.load %arg5[%c2_493, %c7_494, %c0_495] : memref<10x10x256xf32, #tpu.memory_space<vmem>>, vector<1x1x256xf32>
    %770 = vector.shape_cast %769 : vector<1x1x256xf32> to vector<1x256xf32>
    %771 = arith.mulf %770, %651 : vector<1x256xf32>
    %772 = arith.subf %768, %771 : vector<1x256xf32>
    %c3_496 = arith.constant 3 : index
    %c7_497 = arith.constant 7 : index
    %c0_498 = arith.constant 0 : index
    %773 = vector.load %arg5[%c3_496, %c7_497, %c0_498] : memref<10x10x256xf32, #tpu.memory_space<vmem>>, vector<1x1x256xf32>
    %774 = vector.shape_cast %773 : vector<1x1x256xf32> to vector<1x256xf32>
    %775 = arith.mulf %774, %671 : vector<1x256xf32>
    %776 = arith.subf %772, %775 : vector<1x256xf32>
    %c4_499 = arith.constant 4 : index
    %c7_500 = arith.constant 7 : index
    %c0_501 = arith.constant 0 : index
    %777 = vector.load %arg5[%c4_499, %c7_500, %c0_501] : memref<10x10x256xf32, #tpu.memory_space<vmem>>, vector<1x1x256xf32>
    %778 = vector.shape_cast %777 : vector<1x1x256xf32> to vector<1x256xf32>
    %779 = arith.mulf %778, %695 : vector<1x256xf32>
    %780 = arith.subf %776, %779 : vector<1x256xf32>
    %c5_502 = arith.constant 5 : index
    %c7_503 = arith.constant 7 : index
    %c0_504 = arith.constant 0 : index
    %781 = vector.load %arg5[%c5_502, %c7_503, %c0_504] : memref<10x10x256xf32, #tpu.memory_space<vmem>>, vector<1x1x256xf32>
    %782 = vector.shape_cast %781 : vector<1x1x256xf32> to vector<1x256xf32>
    %783 = arith.mulf %782, %723 : vector<1x256xf32>
    %784 = arith.subf %780, %783 : vector<1x256xf32>
    %c6_505 = arith.constant 6 : index
    %c7_506 = arith.constant 7 : index
    %c0_507 = arith.constant 0 : index
    %785 = vector.load %arg5[%c6_505, %c7_506, %c0_507] : memref<10x10x256xf32, #tpu.memory_space<vmem>>, vector<1x1x256xf32>
    %786 = vector.shape_cast %785 : vector<1x1x256xf32> to vector<1x256xf32>
    %787 = arith.mulf %786, %755 : vector<1x256xf32>
    %788 = arith.subf %784, %787 : vector<1x256xf32>
    %c7_508 = arith.constant 7 : index
    %c7_509 = arith.constant 7 : index
    %c0_510 = arith.constant 0 : index
    %789 = vector.load %arg5[%c7_508, %c7_509, %c0_510] : memref<10x10x256xf32, #tpu.memory_space<vmem>>, vector<1x1x256xf32>
    %790 = vector.shape_cast %789 : vector<1x1x256xf32> to vector<1x256xf32>
    %791 = arith.mulf %788, %790 : vector<1x256xf32>
    %792 = arith.mulf %791, %791 : vector<1x256xf32>
    %793 = arith.addf %757, %792 : vector<1x256xf32>
    %c8_511 = arith.constant 8 : index
    %c0_512 = arith.constant 0 : index
    %794 = vector.load %arg1[%c8_511, %c0_512] : memref<10x256xf32, #tpu.memory_space<vmem>>, vector<1x256xf32>
    %c8_513 = arith.constant 8 : index
    %c0_514 = arith.constant 0 : index
    %795 = vector.load %arg3[%c8_513, %c0_514] : memref<10x256xf32, #tpu.memory_space<vmem>>, vector<1x256xf32>
    %796 = arith.subf %794, %795 : vector<1x256xf32>
    %c0_515 = arith.constant 0 : index
    %c8_516 = arith.constant 8 : index
    %c0_517 = arith.constant 0 : index
    %797 = vector.load %arg5[%c0_515, %c8_516, %c0_517] : memref<10x10x256xf32, #tpu.memory_space<vmem>>, vector<1x1x256xf32>
    %798 = vector.shape_cast %797 : vector<1x1x256xf32> to vector<1x256xf32>
    %799 = arith.mulf %798, %623 : vector<1x256xf32>
    %800 = arith.subf %796, %799 : vector<1x256xf32>
    %c1_518 = arith.constant 1 : index
    %c8_519 = arith.constant 8 : index
    %c0_520 = arith.constant 0 : index
    %801 = vector.load %arg5[%c1_518, %c8_519, %c0_520] : memref<10x10x256xf32, #tpu.memory_space<vmem>>, vector<1x1x256xf32>
    %802 = vector.shape_cast %801 : vector<1x1x256xf32> to vector<1x256xf32>
    %803 = arith.mulf %802, %635 : vector<1x256xf32>
    %804 = arith.subf %800, %803 : vector<1x256xf32>
    %c2_521 = arith.constant 2 : index
    %c8_522 = arith.constant 8 : index
    %c0_523 = arith.constant 0 : index
    %805 = vector.load %arg5[%c2_521, %c8_522, %c0_523] : memref<10x10x256xf32, #tpu.memory_space<vmem>>, vector<1x1x256xf32>
    %806 = vector.shape_cast %805 : vector<1x1x256xf32> to vector<1x256xf32>
    %807 = arith.mulf %806, %651 : vector<1x256xf32>
    %808 = arith.subf %804, %807 : vector<1x256xf32>
    %c3_524 = arith.constant 3 : index
    %c8_525 = arith.constant 8 : index
    %c0_526 = arith.constant 0 : index
    %809 = vector.load %arg5[%c3_524, %c8_525, %c0_526] : memref<10x10x256xf32, #tpu.memory_space<vmem>>, vector<1x1x256xf32>
    %810 = vector.shape_cast %809 : vector<1x1x256xf32> to vector<1x256xf32>
    %811 = arith.mulf %810, %671 : vector<1x256xf32>
    %812 = arith.subf %808, %811 : vector<1x256xf32>
    %c4_527 = arith.constant 4 : index
    %c8_528 = arith.constant 8 : index
    %c0_529 = arith.constant 0 : index
    %813 = vector.load %arg5[%c4_527, %c8_528, %c0_529] : memref<10x10x256xf32, #tpu.memory_space<vmem>>, vector<1x1x256xf32>
    %814 = vector.shape_cast %813 : vector<1x1x256xf32> to vector<1x256xf32>
    %815 = arith.mulf %814, %695 : vector<1x256xf32>
    %816 = arith.subf %812, %815 : vector<1x256xf32>
    %c5_530 = arith.constant 5 : index
    %c8_531 = arith.constant 8 : index
    %c0_532 = arith.constant 0 : index
    %817 = vector.load %arg5[%c5_530, %c8_531, %c0_532] : memref<10x10x256xf32, #tpu.memory_space<vmem>>, vector<1x1x256xf32>
    %818 = vector.shape_cast %817 : vector<1x1x256xf32> to vector<1x256xf32>
    %819 = arith.mulf %818, %723 : vector<1x256xf32>
    %820 = arith.subf %816, %819 : vector<1x256xf32>
    %c6_533 = arith.constant 6 : index
    %c8_534 = arith.constant 8 : index
    %c0_535 = arith.constant 0 : index
    %821 = vector.load %arg5[%c6_533, %c8_534, %c0_535] : memref<10x10x256xf32, #tpu.memory_space<vmem>>, vector<1x1x256xf32>
    %822 = vector.shape_cast %821 : vector<1x1x256xf32> to vector<1x256xf32>
    %823 = arith.mulf %822, %755 : vector<1x256xf32>
    %824 = arith.subf %820, %823 : vector<1x256xf32>
    %c7_536 = arith.constant 7 : index
    %c8_537 = arith.constant 8 : index
    %c0_538 = arith.constant 0 : index
    %825 = vector.load %arg5[%c7_536, %c8_537, %c0_538] : memref<10x10x256xf32, #tpu.memory_space<vmem>>, vector<1x1x256xf32>
    %826 = vector.shape_cast %825 : vector<1x1x256xf32> to vector<1x256xf32>
    %827 = arith.mulf %826, %791 : vector<1x256xf32>
    %828 = arith.subf %824, %827 : vector<1x256xf32>
    %c8_539 = arith.constant 8 : index
    %c8_540 = arith.constant 8 : index
    %c0_541 = arith.constant 0 : index
    %829 = vector.load %arg5[%c8_539, %c8_540, %c0_541] : memref<10x10x256xf32, #tpu.memory_space<vmem>>, vector<1x1x256xf32>
    %830 = vector.shape_cast %829 : vector<1x1x256xf32> to vector<1x256xf32>
    %831 = arith.mulf %828, %830 : vector<1x256xf32>
    %832 = arith.mulf %831, %831 : vector<1x256xf32>
    %833 = arith.addf %793, %832 : vector<1x256xf32>
    %c9_542 = arith.constant 9 : index
    %c0_543 = arith.constant 0 : index
    %834 = vector.load %arg1[%c9_542, %c0_543] : memref<10x256xf32, #tpu.memory_space<vmem>>, vector<1x256xf32>
    %c9_544 = arith.constant 9 : index
    %c0_545 = arith.constant 0 : index
    %835 = vector.load %arg3[%c9_544, %c0_545] : memref<10x256xf32, #tpu.memory_space<vmem>>, vector<1x256xf32>
    %836 = arith.subf %834, %835 : vector<1x256xf32>
    %c0_546 = arith.constant 0 : index
    %c9_547 = arith.constant 9 : index
    %c0_548 = arith.constant 0 : index
    %837 = vector.load %arg5[%c0_546, %c9_547, %c0_548] : memref<10x10x256xf32, #tpu.memory_space<vmem>>, vector<1x1x256xf32>
    %838 = vector.shape_cast %837 : vector<1x1x256xf32> to vector<1x256xf32>
    %839 = arith.mulf %838, %623 : vector<1x256xf32>
    %840 = arith.subf %836, %839 : vector<1x256xf32>
    %c1_549 = arith.constant 1 : index
    %c9_550 = arith.constant 9 : index
    %c0_551 = arith.constant 0 : index
    %841 = vector.load %arg5[%c1_549, %c9_550, %c0_551] : memref<10x10x256xf32, #tpu.memory_space<vmem>>, vector<1x1x256xf32>
    %842 = vector.shape_cast %841 : vector<1x1x256xf32> to vector<1x256xf32>
    %843 = arith.mulf %842, %635 : vector<1x256xf32>
    %844 = arith.subf %840, %843 : vector<1x256xf32>
    %c2_552 = arith.constant 2 : index
    %c9_553 = arith.constant 9 : index
    %c0_554 = arith.constant 0 : index
    %845 = vector.load %arg5[%c2_552, %c9_553, %c0_554] : memref<10x10x256xf32, #tpu.memory_space<vmem>>, vector<1x1x256xf32>
    %846 = vector.shape_cast %845 : vector<1x1x256xf32> to vector<1x256xf32>
    %847 = arith.mulf %846, %651 : vector<1x256xf32>
    %848 = arith.subf %844, %847 : vector<1x256xf32>
    %c3_555 = arith.constant 3 : index
    %c9_556 = arith.constant 9 : index
    %c0_557 = arith.constant 0 : index
    %849 = vector.load %arg5[%c3_555, %c9_556, %c0_557] : memref<10x10x256xf32, #tpu.memory_space<vmem>>, vector<1x1x256xf32>
    %850 = vector.shape_cast %849 : vector<1x1x256xf32> to vector<1x256xf32>
    %851 = arith.mulf %850, %671 : vector<1x256xf32>
    %852 = arith.subf %848, %851 : vector<1x256xf32>
    %c4_558 = arith.constant 4 : index
    %c9_559 = arith.constant 9 : index
    %c0_560 = arith.constant 0 : index
    %853 = vector.load %arg5[%c4_558, %c9_559, %c0_560] : memref<10x10x256xf32, #tpu.memory_space<vmem>>, vector<1x1x256xf32>
    %854 = vector.shape_cast %853 : vector<1x1x256xf32> to vector<1x256xf32>
    %855 = arith.mulf %854, %695 : vector<1x256xf32>
    %856 = arith.subf %852, %855 : vector<1x256xf32>
    %c5_561 = arith.constant 5 : index
    %c9_562 = arith.constant 9 : index
    %c0_563 = arith.constant 0 : index
    %857 = vector.load %arg5[%c5_561, %c9_562, %c0_563] : memref<10x10x256xf32, #tpu.memory_space<vmem>>, vector<1x1x256xf32>
    %858 = vector.shape_cast %857 : vector<1x1x256xf32> to vector<1x256xf32>
    %859 = arith.mulf %858, %723 : vector<1x256xf32>
    %860 = arith.subf %856, %859 : vector<1x256xf32>
    %c6_564 = arith.constant 6 : index
    %c9_565 = arith.constant 9 : index
    %c0_566 = arith.constant 0 : index
    %861 = vector.load %arg5[%c6_564, %c9_565, %c0_566] : memref<10x10x256xf32, #tpu.memory_space<vmem>>, vector<1x1x256xf32>
    %862 = vector.shape_cast %861 : vector<1x1x256xf32> to vector<1x256xf32>
    %863 = arith.mulf %862, %755 : vector<1x256xf32>
    %864 = arith.subf %860, %863 : vector<1x256xf32>
    %c7_567 = arith.constant 7 : index
    %c9_568 = arith.constant 9 : index
    %c0_569 = arith.constant 0 : index
    %865 = vector.load %arg5[%c7_567, %c9_568, %c0_569] : memref<10x10x256xf32, #tpu.memory_space<vmem>>, vector<1x1x256xf32>
    %866 = vector.shape_cast %865 : vector<1x1x256xf32> to vector<1x256xf32>
    %867 = arith.mulf %866, %791 : vector<1x256xf32>
    %868 = arith.subf %864, %867 : vector<1x256xf32>
    %c8_570 = arith.constant 8 : index
    %c9_571 = arith.constant 9 : index
    %c0_572 = arith.constant 0 : index
    %869 = vector.load %arg5[%c8_570, %c9_571, %c0_572] : memref<10x10x256xf32, #tpu.memory_space<vmem>>, vector<1x1x256xf32>
    %870 = vector.shape_cast %869 : vector<1x1x256xf32> to vector<1x256xf32>
    %871 = arith.mulf %870, %831 : vector<1x256xf32>
    %872 = arith.subf %868, %871 : vector<1x256xf32>
    %c9_573 = arith.constant 9 : index
    %c9_574 = arith.constant 9 : index
    %c0_575 = arith.constant 0 : index
    %873 = vector.load %arg5[%c9_573, %c9_574, %c0_575] : memref<10x10x256xf32, #tpu.memory_space<vmem>>, vector<1x1x256xf32>
    %874 = vector.shape_cast %873 : vector<1x1x256xf32> to vector<1x256xf32>
    %875 = arith.mulf %872, %874 : vector<1x256xf32>
    %876 = arith.mulf %875, %875 : vector<1x256xf32>
    %877 = arith.addf %833, %876 : vector<1x256xf32>
    %cst_576 = arith.constant 1.000000e+00 : f32
    %878 = vector.broadcast %cst_576 : f32 to vector<1x256xf32>
    %879 = arith.mulf %878, %602 : vector<1x256xf32>
    %880 = arith.addf %877, %879 : vector<1x256xf32>
    %c0_577 = arith.constant 0 : index
    %c0_578 = arith.constant 0 : index
    %881 = vector.load %arg4[%c0_577, %c0_578] : memref<1x256xf32, #tpu.memory_space<vmem>>, vector<1x256xf32>
    tpu.vector_store %arg4[%c0_577, %c0_578], %880 {strides = array<i32>} : memref<1x256xf32, #tpu.memory_space<vmem>>, vector<1x256xf32>,
    return
  }
  func.func @transform_0(%arg0: i32) -> (i32, i32) {
    %c0_i32 = arith.constant 0 : i32
    %c0_i32_0 = arith.constant 0 : i32
    return %c0_i32, %arg0 : i32, i32
  }
  func.func @transform_1(%arg0: i32) -> (i32, i32, i32) {
    %c0_i32 = arith.constant 0 : i32
    %c0_i32_0 = arith.constant 0 : i32
    %c0_i32_1 = arith.constant 0 : i32
    return %c0_i32, %c0_i32_0, %arg0 : i32, i32, i32
  }
  func.func @transform_2(%arg0: i32) -> (i32, i32) {
    %c0_i32 = arith.constant 0 : i32
    %c0_i32_0 = arith.constant 0 : i32
    return %c0_i32, %arg0 : i32, i32
  }
  func.func @transform_3(%arg0: i32) -> (i32, i32) {
    %c0_i32 = arith.constant 0 : i32
    %c0_i32_0 = arith.constant 0 : i32
    return %c0_i32, %arg0 : i32, i32
  }
}

</mosaic_0001>

<llo_original>
// kernel: tpu_custom_call.1
$region0: #{tpu_custom_call.1}
  #allocation0 [shape = 'u32[]', space=smem, size = 0x4, offset = 0x4, fixed_abs, tag = 'smem constant byte address 0x4 - core index']
  #allocation1 [shape = 'u32[144,128]{1,0:T(1,128)}', space=vmem, size = 0x12000, scoped, tag = 'internal scratch']
  #allocation2 [shape = 'f32[10,10,256]{2,1,0:T(8,128)}', space=vmem, size = 0x28000, scoped, tag = 'scratch operand']
  %s0 = inlined_call_operand.hbm [shape: f32[10,512], index: 0, kind: input, shape index: {}]
  %s1 = inlined_call_operand.hbm [shape: f32[10,10,512], index: 1, kind: input, shape index: {}]
  %s2 = inlined_call_operand.hbm [shape: f32[10,512], index: 2, kind: input, shape index: {}]
  %s3 = inlined_call_operand.hbm [shape: f32[1,512], index: 3, kind: output, shape index: {}]
  %s4 = sld [smem:[#allocation0]]
  $region57: #{tpu_custom_call.1} parent=0
    _
  %s6 = ssub.s32 1, %s4
  %s7 = scalar_select 0, %s6, %s4
  $region1: #{tpu_custom_call.1} parent=0
    #allocation3 [shape = 'u8[32768]{0}', space=vmem, size = 0x8000, scoped, tag = 'input window, operand 0']
    #allocation4 [shape = 's32[2]{0}', space=sflag, size = 0x8, scoped, tag = 'scoped memory for tpu_custom_call.1']
    #allocation5 [shape = 's32[2]{0}', space=sflag, size = 0x8, scoped, tag = 'scoped memory for tpu_custom_call.1']
    #allocation6 [shape = 'u8[327680]{0}', space=vmem, size = 0x50000, scoped, tag = 'input window, operand 1']
    #allocation7 [shape = 's32[2]{0}', space=sflag, size = 0x8, scoped, tag = 'scoped memory for tpu_custom_call.1']
    #allocation8 [shape = 'u8[32768]{0}', space=vmem, size = 0x8000, scoped, tag = 'input window, operand 2']
    #allocation9 [shape = 'u8[2048]{0}', space=vmem, size = 0x800, scoped, tag = 'output window, operand 0']
    %8 = vsyncpa [#allocation4], 0
    %s9 = scalar_lea.sflag [#allocation4], 1
    %10 = vsyncpa %s9, 0
    %11 = vsyncpa [#allocation7], 0
    %s12 = scalar_lea.sflag [#allocation7], 1
    %13 = vsyncpa %s12, 0
    %14 = vsyncpa [#allocation5], 0
    %s15 = scalar_lea.sflag [#allocation5], 1
    %16 = vsyncpa %s15, 0
    loop: start=0, step=1, limit=4
    $region2: #{tpu_custom_call.1} parent=1 // loop_pre_header
      _
    $region3: #{tpu_custom_call.1} parent=1 // loop_header
      %s18 = sphi 0, %s22
      %p19 = scmp.ge.s32.totalorder %s18, 4
      %s28 = sphi 0, %s30
      %s31 = sphi 0, %s28
      %s32 = sphi 0, %s31
      %s48 = sphi 0, %s32
      %s54 = sphi 0, %s56
      %s57 = sphi 0, %s54
      %s58 = sphi 0, %s57
      %s74 = sphi 0, %s58
      %s80 = sphi 0, %s82
      %s83 = sphi 0, %s80
      %s84 = sphi 0, %s83
      %s100 = sphi 0, %s84
      %s106 = sphi 0, %s108
      %s109 = sphi 0, %s106
      %s110 = sphi 0, %s109
      %s126 = sphi 0, %s110
    $region4: #{tpu_custom_call.1} parent=1 // loop_header_branch
      %21 = sbr.rel (%p19) target = $region8
    $region5: #{tpu_custom_call.1} parent=1 // loop_body
      %s23 = ssub.s32 %s18, 1
      %s24 = ssub.s32 %s18, 2
      %s25 = sadd.s32 %s18, 1
      %s26 = ssub.s32 %s18, %s25
      %p27 = scmp.eq.s32.totalorder %s26, 0
      %s29 = sadd.s32 %s28, 1
      %s30 = scalar_select %p27, %s28, %s29
      %p33 = pneg %p27
      %p34 = scmp.eq.s32.totalorder %s18, 1
      %p35 = por %p33, %p34
      %p36 = scmp.ne.s32.totalorder %s28, %s31
      %p37 = scmp.eq.s32.totalorder %s18, 0
      %p38 = por %p36, %p37
      %p39 = scmp.ne.s32.totalorder %s28, %s31
      %p40 = scmp.eq.s32.totalorder %s23, 1
      %p41 = por %p39, %p40
      %p42 = scmp.ne.s32.totalorder %s31, %s32
      %p43 = scmp.eq.s32.totalorder %s23, 0
      %p44 = por %p42, %p43
      %p45 = scmp.ne.s32.totalorder %s31, %s32
      %p46 = scmp.eq.s32.totalorder %s24, 1
      %p47 = por %p45, %p46
      %p49 = scmp.ne.s32.totalorder %s32, %s48
      %p50 = scmp.eq.s32.totalorder %s24, 0
      %p51 = por %p49, %p50
      %s52 = ssub.s32 %s18, %s25
      %p53 = scmp.eq.s32.totalorder %s52, 0
      %s55 = sadd.s32 %s54, 1
      %s56 = scalar_select %p53, %s54, %s55
      %p59 = pneg %p53
      %p60 = scmp.eq.s32.totalorder %s18, 1
      %p61 = por %p59, %p60
      %p62 = scmp.ne.s32.totalorder %s54, %s57
      %p63 = scmp.eq.s32.totalorder %s18, 0
      %p64 = por %p62, %p63
      %p65 = scmp.ne.s32.totalorder %s54, %s57
      %p66 = scmp.eq.s32.totalorder %s23, 1
      %p67 = por %p65, %p66
      %p68 = scmp.ne.s32.totalorder %s57, %s58
      %p69 = scmp.eq.s32.totalorder %s23, 0
      %p70 = por %p68, %p69
      %p71 = scmp.ne.s32.totalorder %s57, %s58
      %p72 = scmp.eq.s32.totalorder %s24, 1
      %p73 = por %p71, %p72
      %p75 = scmp.ne.s32.totalorder %s58, %s74
      %p76 = scmp.eq.s32.totalorder %s24, 0
      %p77 = por %p75, %p76
      %s78 = ssub.s32 %s18, %s25
      %p79 = scmp.eq.s32.totalorder %s78, 0
      %s81 = sadd.s32 %s80, 1
      %s82 = scalar_select %p79, %s80, %s81
      %p85 = pneg %p79
      %p86 = scmp.eq.s32.totalorder %s18, 1
      %p87 = por %p85, %p86
      %p88 = scmp.ne.s32.totalorder %s80, %s83
      %p89 = scmp.eq.s32.totalorder %s18, 0
      %p90 = por %p88, %p89
      %p91 = scmp.ne.s32.totalorder %s80, %s83
      %p92 = scmp.eq.s32.totalorder %s23, 1
      %p93 = por %p91, %p92
      %p94 = scmp.ne.s32.totalorder %s83, %s84
      %p95 = scmp.eq.s32.totalorder %s23, 0
      %p96 = por %p94, %p95
      %p97 = scmp.ne.s32.totalorder %s83, %s84
      %p98 = scmp.eq.s32.totalorder %s24, 1
      %p99 = por %p97, %p98
      %p101 = scmp.ne.s32.totalorder %s84, %s100
      %p102 = scmp.eq.s32.totalorder %s24, 0
      %p103 = por %p101, %p102
      %s104 = ssub.s32 %s18, %s25
      %p105 = scmp.eq.s32.totalorder %s104, 0
      %s107 = sadd.s32 %s106, 1
      %s108 = scalar_select %p105, %s106, %s107
      %p111 = pneg %p105
      %p112 = scmp.eq.s32.totalorder %s18, 1
      %p113 = por %p111, %p112
      %p114 = scmp.ne.s32.totalorder %s106, %s109
      %p115 = scmp.eq.s32.totalorder %s18, 0
      %p116 = por %p114, %p115
      %p117 = scmp.ne.s32.totalorder %s106, %s109
      %p118 = scmp.eq.s32.totalorder %s23, 1
      %p119 = por %p117, %p118
      %p120 = scmp.ne.s32.totalorder %s109, %s110
      %p121 = scmp.eq.s32.totalorder %s23, 0
      %p122 = por %p120, %p121
      %p123 = scmp.ne.s32.totalorder %s109, %s110
      %p124 = scmp.eq.s32.totalorder %s24, 1
      %p125 = por %p123, %p124
      %p127 = scmp.ne.s32.totalorder %s110, %s126
      %p128 = scmp.eq.s32.totalorder %s24, 0
      %p129 = por %p127, %p128
      %p130 = scmp.le.s32.totalorder 1, %s18
      %p131 = scmp.lt.s32.totalorder %s18, 3
      %p132 = pnand %p130, %p131
      %p133 = pneg %p132
      // Predicated region
      $region9: #{tpu_custom_call.1} parent=5 // pred_check
        _
      $region10: #{tpu_custom_call.1} parent=5 // pred_check_branch
        %135 = sbr.rel (%p132) target = $region12
      $region11: #{tpu_custom_call.1} parent=5 // pred_region
        %s136 = ssub.s32 %s18, 1
      $region12: #{tpu_custom_call.1} parent=5 // pred_fallthru
        _
      %p137 = scmp.lt.s32.totalorder %s18, 2
      // Predicated region
      $region13: #{tpu_custom_call.1} parent=5 // pred_check
        %p138 = pneg %p137
      $region14: #{tpu_custom_call.1} parent=5 // pred_check_branch
        %140 = sbr.rel (%p138) target = $region16
      $region15: #{tpu_custom_call.1} parent=5 // pred_region
        // Predicated region
        $region17: #{tpu_custom_call.1} parent=15 // pred_check
          %p141 = pneg %p38
        $region18: #{tpu_custom_call.1} parent=15 // pred_check_branch
          %143 = sbr.rel (%p141) target = $region20
        $region19: #{tpu_custom_call.1} parent=15 // pred_region
          %s144 = sand.u32 %s28, 1
          %s145 = scalar_lea.sflag [#allocation4], %s144
          %s146 = sand.u32 %s28, 1
          %s147 = smul.addr %s146, 32
          %s148 = scalar_lea.vmem [#allocation3], %s147
          %s149 = smul.u32 2, %s18
          %s151 = ssub.s32 512, 512
          %152 = vsyncadd %s145, %s151
          %s153 = smul.addr %s149, 128
          %s154 = scalar_lea.hbm %s0, %s153
          %s155 = sshll.u32 %s148, 4
          %s156 = int_to_ptr.vmem [resolvable:$true] %s155
          %161 = dma.hbm_to_vmem [thread:$0]  %s154, 512, %s156, %s145, 512, 256, 16
        $region20: #{tpu_custom_call.1} parent=15 // pred_fallthru
          _
        // Predicated region
        $region21: #{tpu_custom_call.1} parent=15 // pred_check
          %p162 = pneg %p64
        $region22: #{tpu_custom_call.1} parent=15 // pred_check_branch
          %164 = sbr.rel (%p162) target = $region24
        $region23: #{tpu_custom_call.1} parent=15 // pred_region
          %s165 = sand.u32 %s18, 1
          %s166 = scalar_lea.sflag [#allocation7], %s165
          %s167 = sand.u32 %s54, 1
          %s168 = smul.addr %s167, 320
          %s169 = scalar_lea.vmem [#allocation6], %s168
          %s170 = smul.u32 2, %s18
          %s172 = ssub.s32 5120, 5120
          %173 = vsyncadd %s166, %s172
          %s174 = smul.addr %s170, 128
          %s175 = scalar_lea.hbm %s1, %s174
          %s176 = sshll.u32 %s169, 4
          %s177 = int_to_ptr.vmem [resolvable:$true] %s176
          %182 = dma.hbm_to_vmem [thread:$0]  %s175, 5120, %s177, %s166, 512, 256, 16
        $region24: #{tpu_custom_call.1} parent=15 // pred_fallthru
          _
        // Predicated region
        $region25: #{tpu_custom_call.1} parent=15 // pred_check
          %p183 = pneg %p90
        $region26: #{tpu_custom_call.1} parent=15 // pred_check_branch
          %185 = sbr.rel (%p183) target = $region28
        $region27: #{tpu_custom_call.1} parent=15 // pred_region
          %s186 = sand.u32 %s18, 1
          %s187 = scalar_lea.sflag [#allocation7], %s186
          %s188 = sand.u32 %s80, 1
          %s189 = smul.addr %s188, 32
          %s190 = scalar_lea.vmem [#allocation8], %s189
          %s191 = smul.u32 2, %s18
          %s193 = ssub.s32 512, 512
          %194 = vsyncadd %s187, %s193
          %s195 = smul.addr %s191, 128
          %s196 = scalar_lea.hbm %s2, %s195
          %s197 = sshll.u32 %s190, 4
          %s198 = int_to_ptr.vmem [resolvable:$true] %s197
          %203 = dma.hbm_to_vmem [thread:$0]  %s196, 512, %s198, %s187, 512, 256, 16
        $region28: #{tpu_custom_call.1} parent=15 // pred_fallthru
          _
      $region16: #{tpu_custom_call.1} parent=5 // pred_fallthru
        _
      %p204 = scmp.le.s32.totalorder 1, %s18
      %p205 = scmp.lt.s32.totalorder %s18, 3
      %p206 = pnand %p204, %p205
      %p207 = pneg %p206
      // Predicated region
      $region29: #{tpu_custom_call.1} parent=5 // pred_check
        _
      $region30: #{tpu_custom_call.1} parent=5 // pred_check_branch
        %209 = sbr.rel (%p206) target = $region32
      $region31: #{tpu_custom_call.1} parent=5 // pred_region
        %s210 = ssub.s32 %s18, 1
        %s211 = sand.u32 %s31, 1
        %s212 = scalar_lea.sflag [#allocation4], %s211
        %s213 = sand.u32 %s31, 1
        %s214 = smul.addr %s213, 32
        %s215 = scalar_lea.vmem [#allocation3], %s214
        // Predicated region
        $region33: #{tpu_custom_call.1} parent=31 // pred_check
          %p216 = pneg %p44
        $region34: #{tpu_custom_call.1} parent=31 // pred_check_branch
          %218 = sbr.rel (%p216) target = $region36
        $region35: #{tpu_custom_call.1} parent=31 // pred_region
          %219 = dma.done %s212, 512
        $region36: #{tpu_custom_call.1} parent=31 // pred_fallthru
          _
        %s220 = sand.u32 %s23, 1
        %s221 = scalar_lea.sflag [#allocation7], %s220
        %s222 = sand.u32 %s57, 1
        %s223 = smul.addr %s222, 320
        %s224 = scalar_lea.vmem [#allocation6], %s223
        // Predicated region
        $region37: #{tpu_custom_call.1} parent=31 // pred_check
          %p225 = pneg %p70
        $region38: #{tpu_custom_call.1} parent=31 // pred_check_branch
          %227 = sbr.rel (%p225) target = $region40
        $region39: #{tpu_custom_call.1} parent=31 // pred_region
          %228 = dma.done %s221, 5120
        $region40: #{tpu_custom_call.1} parent=31 // pred_fallthru
          _
        %s229 = sand.u32 %s23, 1
        %s230 = scalar_lea.sflag [#allocation7], %s229
        %s231 = sand.u32 %s83, 1
        %s232 = smul.addr %s231, 32
        %s233 = scalar_lea.vmem [#allocation8], %s232
        // Predicated region
        $region41: #{tpu_custom_call.1} parent=31 // pred_check
          %p234 = pneg %p96
        $region42: #{tpu_custom_call.1} parent=31 // pred_check_branch
          %236 = sbr.rel (%p234) target = $region44
        $region43: #{tpu_custom_call.1} parent=31 // pred_region
          %237 = dma.done %s230, 512
        $region44: #{tpu_custom_call.1} parent=31 // pred_fallthru
          _
        %s238 = sand.u32 %s31, 1
        %s239 = scalar_lea.sflag [#allocation4], %s238
        %s240 = sand.u32 %s31, 1
        %s241 = smul.addr %s240, 32
        %s242 = scalar_lea.vmem [#allocation3], %s241
        %p243 = pneg %p44
        %p244 = pneg %p41
        %s245 = sand.u32 %s23, 1
        %s246 = scalar_lea.sflag [#allocation7], %s245
        %s247 = sand.u32 %s57, 1
        %s248 = smul.addr %s247, 320
        %s249 = scalar_lea.vmem [#allocation6], %s248
        %p250 = pneg %p70
        %p251 = pneg %p67
        %s252 = sand.u32 %s23, 1
        %s253 = scalar_lea.sflag [#allocation7], %s252
        %s254 = sand.u32 %s83, 1
        %s255 = smul.addr %s254, 32
        %s256 = scalar_lea.vmem [#allocation8], %s255
        %p257 = pneg %p96
        %p258 = pneg %p93
        %p259 = pneg %p122
        %p260 = pneg %p119
        %s261 = sand.u32 %s109, 1
        %s262 = scalar_lea.sflag [#allocation5], %s261
        %s263 = sand.u32 %s109, 1
        %s264 = smul.addr %s263, 2
        %s265 = scalar_lea.vmem [#allocation9], %s264
        %s266 = smul.u32 2, %s23
        %s267 = smul.u32 2, %s23
        %s268 = smul.u32 2, %s23
        %s269 = smul.u32 2, %s23
        %v270 = vlaneseq
        %v271 = vshrl.u32 %v270, 7
        %v272 = vadd.s32 %v271, 8
        %v273 = vld [vmem:[%s224] sm:$0xff]
        %v274 = vld [vmem:[%s224 + $0x8] sm:$0xff]
        %v275 = vld [vmem:[%s224 + $0x10] sm:$0x3]
        %v276 = vld [vmem:[%s224 + $0x18] sm:$0x3]
        %v277 = vld [vmem:[%s224] ss:$8 sm:$0x3]
        %v278 = vrsqrt.pop %v277
        %v279 = vlog2.pop %v277
        %v280 = vmul.f32 %v279, 0.6931472
        %v281 = vadd.f32 %v280, 0.0
        %vm282 = vcmp.gt.s32.totalorder %v271, 0
        %vm283 = vcmp.gt.s32.totalorder %v272, 0
        %v285 = vlaneseq
        %v286 = vshrl.u32 %v285, 7
        %v287 = vsub.s32 0, %v286
        %v288 = vrot.slane %v278, %v287
        %v289 = vlaneseq
        %v290 = vshrl.u32 %v289, 7
        %v291 = vsub.s32 1, %v290
        %v292 = vrot.slane %v278, %v291
        %v295 = vmul.f32 %v273, %v288
        %v296 = vmul.f32 %v274, %v292
        %v297 = vmul.f32 %v275, %v288
        %v298 = vmul.f32 %v276, %v292
        %vm299 = vcmp.eq.s32.totalorder %v271, 0
        %vm300 = vcmp.eq.s32.totalorder %v272, 0
        %v301 = vsel %vm299, %v288, 0.0
        %v302 = vsel %vm299, %v292, 0.0
        %v303 = vsel %vm300, %v288, 0.0
        %v304 = vsel %vm300, %v292, 0.0
        %v305 = vsel %vm282, %v295, %v301
        %v306 = vsel %vm282, %v296, %v302
        %v307 = vsel %vm283, %v297, %v303
        %v308 = vsel %vm283, %v298, %v304
        %309 = vst [vmem:[#allocation2] sm:$0xff] %v305
        %310 = vst [vmem:[#allocation2 + $0x8] sm:$0xff] %v306
        %311 = vst [vmem:[#allocation2 + $0x10] sm:$0x3] %v307
        %312 = vst [vmem:[#allocation2 + $0x18] sm:$0x3] %v308
        %s313 = scalar_lea.vmem %s224, 32 [#allocation6]
        %v314 = vld [vmem:[%s313] sm:$0xff]
        %v315 = vld [vmem:[%s313 + $0x8] sm:$0xff]
        %v316 = vld [vmem:[%s313 + $0x10] sm:$0x3]
        %v317 = vld [vmem:[%s313 + $0x18] sm:$0x3]
        %s318 = scalar_lea.vmem %s313, 1 [#allocation6]
        %v319 = vld [vmem:[%s318] ss:$8 sm:$0x3]
        %v320 = vld [vmem:[#allocation2] sm:$0xff]
        %v321 = vld [vmem:[#allocation2 + $0x8] sm:$0xff]
        %v322 = vld [vmem:[#allocation2 + $0x10] sm:$0x3]
        %v323 = vld [vmem:[#allocation2 + $0x18] sm:$0x3]
        %s324 = scalar_lea.vmem [#allocation2], 1
        %v325 = vld [vmem:[%s324] ss:$8 sm:$0x3]
        %v327 = vlaneseq
        %v328 = vshrl.u32 %v327, 7
        %v329 = vsub.s32 0, %v328
        %v330 = vrot.slane %v325, %v329
        %v331 = vlaneseq
        %v332 = vshrl.u32 %v331, 7
        %v333 = vsub.s32 1, %v332
        %v334 = vrot.slane %v325, %v333
        %v337 = vmul.f32 %v320, %v330
        %v338 = vmul.f32 %v321, %v334
        %v339 = vmul.f32 %v322, %v330
        %v340 = vmul.f32 %v323, %v334
        %v341 = vsub.f32 %v314, %v337
        %v342 = vsub.f32 %v315, %v338
        %v343 = vsub.f32 %v316, %v339
        %v344 = vsub.f32 %v317, %v340
        %v345 = vmul.f32 %v325, %v325
        %v346 = vsub.f32 %v319, %v345
        %v347 = vrsqrt.pop %v346
        %v348 = vlog2.pop %v346
        %v349 = vmul.f32 %v348, 0.6931472
        %v350 = vadd.f32 %v281, %v349
        %vm351 = vcmp.gt.s32.totalorder %v271, 1
        %vm352 = vcmp.gt.s32.totalorder %v272, 1
        %v354 = vlaneseq
        %v355 = vshrl.u32 %v354, 7
        %v356 = vsub.s32 0, %v355
        %v357 = vrot.slane %v347, %v356
        %v358 = vlaneseq
        %v359 = vshrl.u32 %v358, 7
        %v360 = vsub.s32 1, %v359
        %v361 = vrot.slane %v347, %v360
        %v364 = vmul.f32 %v341, %v357
        %v365 = vmul.f32 %v342, %v361
        %v366 = vmul.f32 %v343, %v357
        %v367 = vmul.f32 %v344, %v361
        %vm368 = vcmp.eq.s32.totalorder %v271, 1
        %vm369 = vcmp.eq.s32.totalorder %v272, 1
        %v370 = vsel %vm368, %v357, 0.0
        %v371 = vsel %vm368, %v361, 0.0
        %v372 = vsel %vm369, %v357, 0.0
        %v373 = vsel %vm369, %v361, 0.0
        %v374 = vsel %vm351, %v364, %v370
        %v375 = vsel %vm351, %v365, %v371
        %v376 = vsel %vm352, %v366, %v372
        %v377 = vsel %vm352, %v367, %v373
        %s378 = scalar_lea.vmem [#allocation2], 32
        %379 = vst [vmem:[%s378] sm:$0xff] %v374
        %380 = vst [vmem:[%s378 + $0x8] sm:$0xff] %v375
        %381 = vst [vmem:[%s378 + $0x10] sm:$0x3] %v376
        %382 = vst [vmem:[%s378 + $0x18] sm:$0x3] %v377
        %s383 = scalar_lea.vmem %s224, 64 [#allocation6]
        %v384 = vld [vmem:[%s383] sm:$0xff]
        %v385 = vld [vmem:[%s383 + $0x8] sm:$0xff]
        %v386 = vld [vmem:[%s383 + $0x10] sm:$0x3]
        %v387 = vld [vmem:[%s383 + $0x18] sm:$0x3]
        %s388 = scalar_lea.vmem %s383, 2 [#allocation6]
        %v389 = vld [vmem:[%s388] ss:$8 sm:$0x3]
        %v390 = vld [vmem:[#allocation2] sm:$0xff]
        %v391 = vld [vmem:[#allocation2 + $0x8] sm:$0xff]
        %v392 = vld [vmem:[#allocation2 + $0x10] sm:$0x3]
        %v393 = vld [vmem:[#allocation2 + $0x18] sm:$0x3]
        %s394 = scalar_lea.vmem [#allocation2], 2
        %v395 = vld [vmem:[%s394] ss:$8 sm:$0x3]
        %v397 = vlaneseq
        %v398 = vshrl.u32 %v397, 7
        %v399 = vsub.s32 0, %v398
        %v400 = vrot.slane %v395, %v399
        %v401 = vlaneseq
        %v402 = vshrl.u32 %v401, 7
        %v403 = vsub.s32 1, %v402
        %v404 = vrot.slane %v395, %v403
        %v407 = vmul.f32 %v390, %v400
        %v408 = vmul.f32 %v391, %v404
        %v409 = vmul.f32 %v392, %v400
        %v410 = vmul.f32 %v393, %v404
        %v411 = vsub.f32 %v384, %v407
        %v412 = vsub.f32 %v385, %v408
        %v413 = vsub.f32 %v386, %v409
        %v414 = vsub.f32 %v387, %v410
        %v415 = vmul.f32 %v395, %v395
        %v416 = vsub.f32 %v389, %v415
        %v417 = vld [vmem:[%s378] sm:$0xff]
        %v418 = vld [vmem:[%s378 + $0x8] sm:$0xff]
        %v419 = vld [vmem:[%s378 + $0x10] sm:$0x3]
        %v420 = vld [vmem:[%s378 + $0x18] sm:$0x3]
        %s421 = scalar_lea.vmem %s378, 2 [#allocation2]
        %v422 = vld [vmem:[%s421] ss:$8 sm:$0x3]
        %v424 = vlaneseq
        %v425 = vshrl.u32 %v424, 7
        %v426 = vsub.s32 0, %v425
        %v427 = vrot.slane %v422, %v426
        %v428 = vlaneseq
        %v429 = vshrl.u32 %v428, 7
        %v430 = vsub.s32 1, %v429
        %v431 = vrot.slane %v422, %v430
        %v434 = vmul.f32 %v417, %v427
        %v435 = vmul.f32 %v418, %v431
        %v436 = vmul.f32 %v419, %v427
        %v437 = vmul.f32 %v420, %v431
        %v438 = vsub.f32 %v411, %v434
        %v439 = vsub.f32 %v412, %v435
        %v440 = vsub.f32 %v413, %v436
        %v441 = vsub.f32 %v414, %v437
        %v442 = vmul.f32 %v422, %v422
        %v443 = vsub.f32 %v416, %v442
        %v444 = vrsqrt.pop %v443
        %v445 = vlog2.pop %v443
        %v446 = vmul.f32 %v445, 0.6931472
        %v447 = vadd.f32 %v350, %v446
        %vm448 = vcmp.gt.s32.totalorder %v271, 2
        %vm449 = vcmp.gt.s32.totalorder %v272, 2
        %v451 = vlaneseq
        %v452 = vshrl.u32 %v451, 7
        %v453 = vsub.s32 0, %v452
        %v454 = vrot.slane %v444, %v453
        %v455 = vlaneseq
        %v456 = vshrl.u32 %v455, 7
        %v457 = vsub.s32 1, %v456
        %v458 = vrot.slane %v444, %v457
        %v461 = vmul.f32 %v438, %v454
        %v462 = vmul.f32 %v439, %v458
        %v463 = vmul.f32 %v440, %v454
        %v464 = vmul.f32 %v441, %v458
        %vm465 = vcmp.eq.s32.totalorder %v271, 2
        %vm466 = vcmp.eq.s32.totalorder %v272, 2
        %v467 = vsel %vm465, %v454, 0.0
        %v468 = vsel %vm465, %v458, 0.0
        %v469 = vsel %vm466, %v454, 0.0
        %v470 = vsel %vm466, %v458, 0.0
        %v471 = vsel %vm448, %v461, %v467
        %v472 = vsel %vm448, %v462, %v468
        %v473 = vsel %vm449, %v463, %v469
        %v474 = vsel %vm449, %v464, %v470
        %s475 = scalar_lea.vmem [#allocation2], 64
        %476 = vst [vmem:[%s475] sm:$0xff] %v471
        %477 = vst [vmem:[%s475 + $0x8] sm:$0xff] %v472
        %478 = vst [vmem:[%s475 + $0x10] sm:$0x3] %v473
        %479 = vst [vmem:[%s475 + $0x18] sm:$0x3] %v474
        %s480 = scalar_lea.vmem %s224, 96 [#allocation6]
        %v481 = vld [vmem:[%s480] sm:$0xff]
        %v482 = vld [vmem:[%s480 + $0x8] sm:$0xff]
        %v483 = vld [vmem:[%s480 + $0x10] sm:$0x3]
        %v484 = vld [vmem:[%s480 + $0x18] sm:$0x3]
        %s485 = scalar_lea.vmem %s480, 3 [#allocation6]
        %v486 = vld [vmem:[%s485] ss:$8 sm:$0x3]
        %v487 = vld [vmem:[#allocation2] sm:$0xff]
        %v488 = vld [vmem:[#allocation2 + $0x8] sm:$0xff]
        %v489 = vld [vmem:[#allocation2 + $0x10] sm:$0x3]
        %v490 = vld [vmem:[#allocation2 + $0x18] sm:$0x3]
        %s491 = scalar_lea.vmem [#allocation2], 3
        %v492 = vld [vmem:[%s491] ss:$8 sm:$0x3]
        %v494 = vlaneseq
        %v495 = vshrl.u32 %v494, 7
        %v496 = vsub.s32 0, %v495
        %v497 = vrot.slane %v492, %v496
        %v498 = vlaneseq
        %v499 = vshrl.u32 %v498, 7
        %v500 = vsub.s32 1, %v499
        %v501 = vrot.slane %v492, %v500
        %v504 = vmul.f32 %v487, %v497
        %v505 = vmul.f32 %v488, %v501
        %v506 = vmul.f32 %v489, %v497
        %v507 = vmul.f32 %v490, %v501
        %v508 = vsub.f32 %v481, %v504
        %v509 = vsub.f32 %v482, %v505
        %v510 = vsub.f32 %v483, %v506
        %v511 = vsub.f32 %v484, %v507
        %v512 = vmul.f32 %v492, %v492
        %v513 = vsub.f32 %v486, %v512
        %v514 = vld [vmem:[%s378] sm:$0xff]
        %v515 = vld [vmem:[%s378 + $0x8] sm:$0xff]
        %v516 = vld [vmem:[%s378 + $0x10] sm:$0x3]
        %v517 = vld [vmem:[%s378 + $0x18] sm:$0x3]
        %s518 = scalar_lea.vmem %s378, 3 [#allocation2]
        %v519 = vld [vmem:[%s518] ss:$8 sm:$0x3]
        %v521 = vlaneseq
        %v522 = vshrl.u32 %v521, 7
        %v523 = vsub.s32 0, %v522
        %v524 = vrot.slane %v519, %v523
        %v525 = vlaneseq
        %v526 = vshrl.u32 %v525, 7
        %v527 = vsub.s32 1, %v526
        %v528 = vrot.slane %v519, %v527
        %v531 = vmul.f32 %v514, %v524
        %v532 = vmul.f32 %v515, %v528
        %v533 = vmul.f32 %v516, %v524
        %v534 = vmul.f32 %v517, %v528
        %v535 = vsub.f32 %v508, %v531
        %v536 = vsub.f32 %v509, %v532
        %v537 = vsub.f32 %v510, %v533
        %v538 = vsub.f32 %v511, %v534
        %v539 = vmul.f32 %v519, %v519
        %v540 = vsub.f32 %v513, %v539
        %v541 = vld [vmem:[%s475] sm:$0xff]
        %v542 = vld [vmem:[%s475 + $0x8] sm:$0xff]
        %v543 = vld [vmem:[%s475 + $0x10] sm:$0x3]
        %v544 = vld [vmem:[%s475 + $0x18] sm:$0x3]
        %s545 = scalar_lea.vmem %s475, 3 [#allocation2]
        %v546 = vld [vmem:[%s545] ss:$8 sm:$0x3]
        %v548 = vlaneseq
        %v549 = vshrl.u32 %v548, 7
        %v550 = vsub.s32 0, %v549
        %v551 = vrot.slane %v546, %v550
        %v552 = vlaneseq
        %v553 = vshrl.u32 %v552, 7
        %v554 = vsub.s32 1, %v553
        %v555 = vrot.slane %v546, %v554
        %v558 = vmul.f32 %v541, %v551
        %v559 = vmul.f32 %v542, %v555
        %v560 = vmul.f32 %v543, %v551
        %v561 = vmul.f32 %v544, %v555
        %v562 = vsub.f32 %v535, %v558
        %v563 = vsub.f32 %v536, %v559
        %v564 = vsub.f32 %v537, %v560
        %v565 = vsub.f32 %v538, %v561
        %v566 = vmul.f32 %v546, %v546
        %v567 = vsub.f32 %v540, %v566
        %v568 = vrsqrt.pop %v567
        %v569 = vlog2.pop %v567
        %v570 = vmul.f32 %v569, 0.6931472
        %v571 = vadd.f32 %v447, %v570
        %vm572 = vcmp.gt.s32.totalorder %v271, 3
        %vm573 = vcmp.gt.s32.totalorder %v272, 3
        %v575 = vlaneseq
        %v576 = vshrl.u32 %v575, 7
        %v577 = vsub.s32 0, %v576
        %v578 = vrot.slane %v568, %v577
        %v579 = vlaneseq
        %v580 = vshrl.u32 %v579, 7
        %v581 = vsub.s32 1, %v580
        %v582 = vrot.slane %v568, %v581
        %v585 = vmul.f32 %v562, %v578
        %v586 = vmul.f32 %v563, %v582
        %v587 = vmul.f32 %v564, %v578
        %v588 = vmul.f32 %v565, %v582
        %vm589 = vcmp.eq.s32.totalorder %v271, 3
        %vm590 = vcmp.eq.s32.totalorder %v272, 3
        %v591 = vsel %vm589, %v578, 0.0
        %v592 = vsel %vm589, %v582, 0.0
        %v593 = vsel %vm590, %v578, 0.0
        %v594 = vsel %vm590, %v582, 0.0
        %v595 = vsel %vm572, %v585, %v591
        %v596 = vsel %vm572, %v586, %v592
        %v597 = vsel %vm573, %v587, %v593
        %v598 = vsel %vm573, %v588, %v594
        %s599 = scalar_lea.vmem [#allocation2], 96
        %600 = vst [vmem:[%s599] sm:$0xff] %v595
        %601 = vst [vmem:[%s599 + $0x8] sm:$0xff] %v596
        %602 = vst [vmem:[%s599 + $0x10] sm:$0x3] %v597
        %603 = vst [vmem:[%s599 + $0x18] sm:$0x3] %v598
        %s604 = scalar_lea.vmem %s224, 128 [#allocation6]
        %v605 = vld [vmem:[%s604] sm:$0xff]
        %v606 = vld [vmem:[%s604 + $0x8] sm:$0xff]
        %v607 = vld [vmem:[%s604 + $0x10] sm:$0x3]
        %v608 = vld [vmem:[%s604 + $0x18] sm:$0x3]
        %s609 = scalar_lea.vmem %s604, 4 [#allocation6]
        %v610 = vld [vmem:[%s609] ss:$8 sm:$0x3]
        %v611 = vld [vmem:[#allocation2] sm:$0xff]
        %v612 = vld [vmem:[#allocation2 + $0x8] sm:$0xff]
        %v613 = vld [vmem:[#allocation2 + $0x10] sm:$0x3]
        %v614 = vld [vmem:[#allocation2 + $0x18] sm:$0x3]
        %s615 = scalar_lea.vmem [#allocation2], 4
        %v616 = vld [vmem:[%s615] ss:$8 sm:$0x3]
        %v618 = vlaneseq
        %v619 = vshrl.u32 %v618, 7
        %v620 = vsub.s32 0, %v619
        %v621 = vrot.slane %v616, %v620
        %v622 = vlaneseq
        %v623 = vshrl.u32 %v622, 7
        %v624 = vsub.s32 1, %v623
        %v625 = vrot.slane %v616, %v624
        %v628 = vmul.f32 %v611, %v621
        %v629 = vmul.f32 %v612, %v625
        %v630 = vmul.f32 %v613, %v621
        %v631 = vmul.f32 %v614, %v625
        %v632 = vsub.f32 %v605, %v628
        %v633 = vsub.f32 %v606, %v629
        %v634 = vsub.f32 %v607, %v630
        %v635 = vsub.f32 %v608, %v631
        %v636 = vmul.f32 %v616, %v616
        %v637 = vsub.f32 %v610, %v636
        %v638 = vld [vmem:[%s378] sm:$0xff]
        %v639 = vld [vmem:[%s378 + $0x8] sm:$0xff]
        %v640 = vld [vmem:[%s378 + $0x10] sm:$0x3]
        %v641 = vld [vmem:[%s378 + $0x18] sm:$0x3]
        %s642 = scalar_lea.vmem %s378, 4 [#allocation2]
        %v643 = vld [vmem:[%s642] ss:$8 sm:$0x3]
        %v645 = vlaneseq
        %v646 = vshrl.u32 %v645, 7
        %v647 = vsub.s32 0, %v646
        %v648 = vrot.slane %v643, %v647
        %v649 = vlaneseq
        %v650 = vshrl.u32 %v649, 7
        %v651 = vsub.s32 1, %v650
        %v652 = vrot.slane %v643, %v651
        %v655 = vmul.f32 %v638, %v648
        %v656 = vmul.f32 %v639, %v652
        %v657 = vmul.f32 %v640, %v648
        %v658 = vmul.f32 %v641, %v652
        %v659 = vsub.f32 %v632, %v655
        %v660 = vsub.f32 %v633, %v656
        %v661 = vsub.f32 %v634, %v657
        %v662 = vsub.f32 %v635, %v658
        %v663 = vmul.f32 %v643, %v643
        %v664 = vsub.f32 %v637, %v663
        %v665 = vld [vmem:[%s475] sm:$0xff]
        %v666 = vld [vmem:[%s475 + $0x8] sm:$0xff]
        %v667 = vld [vmem:[%s475 + $0x10] sm:$0x3]
        %v668 = vld [vmem:[%s475 + $0x18] sm:$0x3]
        %s669 = scalar_lea.vmem %s475, 4 [#allocation2]
        %v670 = vld [vmem:[%s669] ss:$8 sm:$0x3]
        %v672 = vlaneseq
        %v673 = vshrl.u32 %v672, 7
        %v674 = vsub.s32 0, %v673
        %v675 = vrot.slane %v670, %v674
        %v676 = vlaneseq
        %v677 = vshrl.u32 %v676, 7
        %v678 = vsub.s32 1, %v677
        %v679 = vrot.slane %v670, %v678
        %v682 = vmul.f32 %v665, %v675
        %v683 = vmul.f32 %v666, %v679
        %v684 = vmul.f32 %v667, %v675
        %v685 = vmul.f32 %v668, %v679
        %v686 = vsub.f32 %v659, %v682
        %v687 = vsub.f32 %v660, %v683
        %v688 = vsub.f32 %v661, %v684
        %v689 = vsub.f32 %v662, %v685
        %v690 = vmul.f32 %v670, %v670
        %v691 = vsub.f32 %v664, %v690
        %v692 = vld [vmem:[%s599] sm:$0xff]
        %v693 = vld [vmem:[%s599 + $0x8] sm:$0xff]
        %v694 = vld [vmem:[%s599 + $0x10] sm:$0x3]
        %v695 = vld [vmem:[%s599 + $0x18] sm:$0x3]
        %s696 = scalar_lea.vmem %s599, 4 [#allocation2]
        %v697 = vld [vmem:[%s696] ss:$8 sm:$0x3]
        %v699 = vlaneseq
        %v700 = vshrl.u32 %v699, 7
        %v701 = vsub.s32 0, %v700
        %v702 = vrot.slane %v697, %v701
        %v703 = vlaneseq
        %v704 = vshrl.u32 %v703, 7
        %v705 = vsub.s32 1, %v704
        %v706 = vrot.slane %v697, %v705
        %v709 = vmul.f32 %v692, %v702
        %v710 = vmul.f32 %v693, %v706
        %v711 = vmul.f32 %v694, %v702
        %v712 = vmul.f32 %v695, %v706
        %v713 = vsub.f32 %v686, %v709
        %v714 = vsub.f32 %v687, %v710
        %v715 = vsub.f32 %v688, %v711
        %v716 = vsub.f32 %v689, %v712
        %v717 = vmul.f32 %v697, %v697
        %v718 = vsub.f32 %v691, %v717
        %v719 = vrsqrt.pop %v718
        %v720 = vlog2.pop %v718
        %v721 = vmul.f32 %v720, 0.6931472
        %v722 = vadd.f32 %v571, %v721
        %vm723 = vcmp.gt.s32.totalorder %v271, 4
        %vm724 = vcmp.gt.s32.totalorder %v272, 4
        %v726 = vlaneseq
        %v727 = vshrl.u32 %v726, 7
        %v728 = vsub.s32 0, %v727
        %v729 = vrot.slane %v719, %v728
        %v730 = vlaneseq
        %v731 = vshrl.u32 %v730, 7
        %v732 = vsub.s32 1, %v731
        %v733 = vrot.slane %v719, %v732
        %v736 = vmul.f32 %v713, %v729
        %v737 = vmul.f32 %v714, %v733
        %v738 = vmul.f32 %v715, %v729
        %v739 = vmul.f32 %v716, %v733
        %vm740 = vcmp.eq.s32.totalorder %v271, 4
        %vm741 = vcmp.eq.s32.totalorder %v272, 4
        %v742 = vsel %vm740, %v729, 0.0
        %v743 = vsel %vm740, %v733, 0.0
        %v744 = vsel %vm741, %v729, 0.0
        %v745 = vsel %vm741, %v733, 0.0
        %v746 = vsel %vm723, %v736, %v742
        %v747 = vsel %vm723, %v737, %v743
        %v748 = vsel %vm724, %v738, %v744
        %v749 = vsel %vm724, %v739, %v745
        %s750 = scalar_lea.vmem [#allocation2], 128
        %751 = vst [vmem:[%s750] sm:$0xff] %v746
        %752 = vst [vmem:[%s750 + $0x8] sm:$0xff] %v747
        %753 = vst [vmem:[%s750 + $0x10] sm:$0x3] %v748
        %754 = vst [vmem:[%s750 + $0x18] sm:$0x3] %v749
        %s755 = scalar_lea.vmem %s224, 160 [#allocation6]
        %v756 = vld [vmem:[%s755] sm:$0xff]
        %v757 = vld [vmem:[%s755 + $0x8] sm:$0xff]
        %v758 = vld [vmem:[%s755 + $0x10] sm:$0x3]
        %v759 = vld [vmem:[%s755 + $0x18] sm:$0x3]
        %s760 = scalar_lea.vmem %s755, 5 [#allocation6]
        %v761 = vld [vmem:[%s760] ss:$8 sm:$0x3]
        %v762 = vld [vmem:[#allocation2] sm:$0xff]
        %v763 = vld [vmem:[#allocation2 + $0x8] sm:$0xff]
        %v764 = vld [vmem:[#allocation2 + $0x10] sm:$0x3]
        %v765 = vld [vmem:[#allocation2 + $0x18] sm:$0x3]
        %s766 = scalar_lea.vmem [#allocation2], 5
        %v767 = vld [vmem:[%s766] ss:$8 sm:$0x3]
        %v769 = vlaneseq
        %v770 = vshrl.u32 %v769, 7
        %v771 = vsub.s32 0, %v770
        %v772 = vrot.slane %v767, %v771
        %v773 = vlaneseq
        %v774 = vshrl.u32 %v773, 7
        %v775 = vsub.s32 1, %v774
        %v776 = vrot.slane %v767, %v775
        %v779 = vmul.f32 %v762, %v772
        %v780 = vmul.f32 %v763, %v776
        %v781 = vmul.f32 %v764, %v772
        %v782 = vmul.f32 %v765, %v776
        %v783 = vsub.f32 %v756, %v779
        %v784 = vsub.f32 %v757, %v780
        %v785 = vsub.f32 %v758, %v781
        %v786 = vsub.f32 %v759, %v782
        %v787 = vmul.f32 %v767, %v767
        %v788 = vsub.f32 %v761, %v787
        %v789 = vld [vmem:[%s378] sm:$0xff]
        %v790 = vld [vmem:[%s378 + $0x8] sm:$0xff]
        %v791 = vld [vmem:[%s378 + $0x10] sm:$0x3]
        %v792 = vld [vmem:[%s378 + $0x18] sm:$0x3]
        %s793 = scalar_lea.vmem %s378, 5 [#allocation2]
        %v794 = vld [vmem:[%s793] ss:$8 sm:$0x3]
        %v796 = vlaneseq
        %v797 = vshrl.u32 %v796, 7
        %v798 = vsub.s32 0, %v797
        %v799 = vrot.slane %v794, %v798
        %v800 = vlaneseq
        %v801 = vshrl.u32 %v800, 7
        %v802 = vsub.s32 1, %v801
        %v803 = vrot.slane %v794, %v802
        %v806 = vmul.f32 %v789, %v799
        %v807 = vmul.f32 %v790, %v803
        %v808 = vmul.f32 %v791, %v799
        %v809 = vmul.f32 %v792, %v803
        %v810 = vsub.f32 %v783, %v806
        %v811 = vsub.f32 %v784, %v807
        %v812 = vsub.f32 %v785, %v808
        %v813 = vsub.f32 %v786, %v809
        %v814 = vmul.f32 %v794, %v794
        %v815 = vsub.f32 %v788, %v814
        %v816 = vld [vmem:[%s475] sm:$0xff]
        %v817 = vld [vmem:[%s475 + $0x8] sm:$0xff]
        %v818 = vld [vmem:[%s475 + $0x10] sm:$0x3]
        %v819 = vld [vmem:[%s475 + $0x18] sm:$0x3]
        %s820 = scalar_lea.vmem %s475, 5 [#allocation2]
        %v821 = vld [vmem:[%s820] ss:$8 sm:$0x3]
        %v823 = vlaneseq
        %v824 = vshrl.u32 %v823, 7
        %v825 = vsub.s32 0, %v824
        %v826 = vrot.slane %v821, %v825
        %v827 = vlaneseq
        %v828 = vshrl.u32 %v827, 7
        %v829 = vsub.s32 1, %v828
        %v830 = vrot.slane %v821, %v829
        %v833 = vmul.f32 %v816, %v826
        %v834 = vmul.f32 %v817, %v830
        %v835 = vmul.f32 %v818, %v826
        %v836 = vmul.f32 %v819, %v830
        %v837 = vsub.f32 %v810, %v833
        %v838 = vsub.f32 %v811, %v834
        %v839 = vsub.f32 %v812, %v835
        %v840 = vsub.f32 %v813, %v836
        %v841 = vmul.f32 %v821, %v821
        %v842 = vsub.f32 %v815, %v841
        %v843 = vld [vmem:[%s599] sm:$0xff]
        %v844 = vld [vmem:[%s599 + $0x8] sm:$0xff]
        %v845 = vld [vmem:[%s599 + $0x10] sm:$0x3]
        %v846 = vld [vmem:[%s599 + $0x18] sm:$0x3]
        %s847 = scalar_lea.vmem %s599, 5 [#allocation2]
        %v848 = vld [vmem:[%s847] ss:$8 sm:$0x3]
        %v850 = vlaneseq
        %v851 = vshrl.u32 %v850, 7
        %v852 = vsub.s32 0, %v851
        %v853 = vrot.slane %v848, %v852
        %v854 = vlaneseq
        %v855 = vshrl.u32 %v854, 7
        %v856 = vsub.s32 1, %v855
        %v857 = vrot.slane %v848, %v856
        %v860 = vmul.f32 %v843, %v853
        %v861 = vmul.f32 %v844, %v857
        %v862 = vmul.f32 %v845, %v853
        %v863 = vmul.f32 %v846, %v857
        %v864 = vsub.f32 %v837, %v860
        %v865 = vsub.f32 %v838, %v861
        %v866 = vsub.f32 %v839, %v862
        %v867 = vsub.f32 %v840, %v863
        %v868 = vmul.f32 %v848, %v848
        %v869 = vsub.f32 %v842, %v868
        %v870 = vld [vmem:[%s750] sm:$0xff]
        %v871 = vld [vmem:[%s750 + $0x8] sm:$0xff]
        %v872 = vld [vmem:[%s750 + $0x10] sm:$0x3]
        %v873 = vld [vmem:[%s750 + $0x18] sm:$0x3]
        %s874 = scalar_lea.vmem %s750, 5 [#allocation2]
        %v875 = vld [vmem:[%s874] ss:$8 sm:$0x3]
        %v877 = vlaneseq
        %v878 = vshrl.u32 %v877, 7
        %v879 = vsub.s32 0, %v878
        %v880 = vrot.slane %v875, %v879
        %v881 = vlaneseq
        %v882 = vshrl.u32 %v881, 7
        %v883 = vsub.s32 1, %v882
        %v884 = vrot.slane %v875, %v883
        %v887 = vmul.f32 %v870, %v880
        %v888 = vmul.f32 %v871, %v884
        %v889 = vmul.f32 %v872, %v880
        %v890 = vmul.f32 %v873, %v884
        %v891 = vsub.f32 %v864, %v887
        %v892 = vsub.f32 %v865, %v888
        %v893 = vsub.f32 %v866, %v889
        %v894 = vsub.f32 %v867, %v890
        %v895 = vmul.f32 %v875, %v875
        %v896 = vsub.f32 %v869, %v895
        %v897 = vrsqrt.pop %v896
        %v898 = vlog2.pop %v896
        %v899 = vmul.f32 %v898, 0.6931472
        %v900 = vadd.f32 %v722, %v899
        %vm901 = vcmp.gt.s32.totalorder %v271, 5
        %vm902 = vcmp.gt.s32.totalorder %v272, 5
        %v904 = vlaneseq
        %v905 = vshrl.u32 %v904, 7
        %v906 = vsub.s32 0, %v905
        %v907 = vrot.slane %v897, %v906
        %v908 = vlaneseq
        %v909 = vshrl.u32 %v908, 7
        %v910 = vsub.s32 1, %v909
        %v911 = vrot.slane %v897, %v910
        %v914 = vmul.f32 %v891, %v907
        %v915 = vmul.f32 %v892, %v911
        %v916 = vmul.f32 %v893, %v907
        %v917 = vmul.f32 %v894, %v911
        %vm918 = vcmp.eq.s32.totalorder %v271, 5
        %vm919 = vcmp.eq.s32.totalorder %v272, 5
        %v920 = vsel %vm918, %v907, 0.0
        %v921 = vsel %vm918, %v911, 0.0
        %v922 = vsel %vm919, %v907, 0.0
        %v923 = vsel %vm919, %v911, 0.0
        %v924 = vsel %vm901, %v914, %v920
        %v925 = vsel %vm901, %v915, %v921
        %v926 = vsel %vm902, %v916, %v922
        %v927 = vsel %vm902, %v917, %v923
        %s928 = scalar_lea.vmem [#allocation2], 160
        %929 = vst [vmem:[%s928] sm:$0xff] %v924
        %930 = vst [vmem:[%s928 + $0x8] sm:$0xff] %v925
        %931 = vst [vmem:[%s928 + $0x10] sm:$0x3] %v926
        %932 = vst [vmem:[%s928 + $0x18] sm:$0x3] %v927
        %s933 = scalar_lea.vmem %s224, 192 [#allocation6]
        %v934 = vld [vmem:[%s933] sm:$0xff]
        %v935 = vld [vmem:[%s933 + $0x8] sm:$0xff]
        %v936 = vld [vmem:[%s933 + $0x10] sm:$0x3]
        %v937 = vld [vmem:[%s933 + $0x18] sm:$0x3]
        %s938 = scalar_lea.vmem %s933, 6 [#allocation6]
        %v939 = vld [vmem:[%s938] ss:$8 sm:$0x3]
        %v940 = vld [vmem:[#allocation2] sm:$0xff]
        %v941 = vld [vmem:[#allocation2 + $0x8] sm:$0xff]
        %v942 = vld [vmem:[#allocation2 + $0x10] sm:$0x3]
        %v943 = vld [vmem:[#allocation2 + $0x18] sm:$0x3]
        %s944 = scalar_lea.vmem [#allocation2], 6
        %v945 = vld [vmem:[%s944] ss:$8 sm:$0x3]
        %v947 = vlaneseq
        %v948 = vshrl.u32 %v947, 7
        %v949 = vsub.s32 0, %v948
        %v950 = vrot.slane %v945, %v949
        %v951 = vlaneseq
        %v952 = vshrl.u32 %v951, 7
        %v953 = vsub.s32 1, %v952
        %v954 = vrot.slane %v945, %v953
        %v957 = vmul.f32 %v940, %v950
        %v958 = vmul.f32 %v941, %v954
        %v959 = vmul.f32 %v942, %v950
        %v960 = vmul.f32 %v943, %v954
        %v961 = vsub.f32 %v934, %v957
        %v962 = vsub.f32 %v935, %v958
        %v963 = vsub.f32 %v936, %v959
        %v964 = vsub.f32 %v937, %v960
        %v965 = vmul.f32 %v945, %v945
        %v966 = vsub.f32 %v939, %v965
        %v967 = vld [vmem:[%s378] sm:$0xff]
        %v968 = vld [vmem:[%s378 + $0x8] sm:$0xff]
        %v969 = vld [vmem:[%s378 + $0x10] sm:$0x3]
        %v970 = vld [vmem:[%s378 + $0x18] sm:$0x3]
        %s971 = scalar_lea.vmem %s378, 6 [#allocation2]
        %v972 = vld [vmem:[%s971] ss:$8 sm:$0x3]
        %v974 = vlaneseq
        %v975 = vshrl.u32 %v974, 7
        %v976 = vsub.s32 0, %v975
        %v977 = vrot.slane %v972, %v976
        %v978 = vlaneseq
        %v979 = vshrl.u32 %v978, 7
        %v980 = vsub.s32 1, %v979
        %v981 = vrot.slane %v972, %v980
        %v984 = vmul.f32 %v967, %v977
        %v985 = vmul.f32 %v968, %v981
        %v986 = vmul.f32 %v969, %v977
        %v987 = vmul.f32 %v970, %v981
        %v988 = vsub.f32 %v961, %v984
        %v989 = vsub.f32 %v962, %v985
        %v990 = vsub.f32 %v963, %v986
        %v991 = vsub.f32 %v964, %v987
        %v992 = vmul.f32 %v972, %v972
        %v993 = vsub.f32 %v966, %v992
        %v994 = vld [vmem:[%s475] sm:$0xff]
        %v995 = vld [vmem:[%s475 + $0x8] sm:$0xff]
        %v996 = vld [vmem:[%s475 + $0x10] sm:$0x3]
        %v997 = vld [vmem:[%s475 + $0x18] sm:$0x3]
        %s998 = scalar_lea.vmem %s475, 6 [#allocation2]
        %v999 = vld [vmem:[%s998] ss:$8 sm:$0x3]
        %v1001 = vlaneseq
        %v1002 = vshrl.u32 %v1001, 7
        %v1003 = vsub.s32 0, %v1002
        %v1004 = vrot.slane %v999, %v1003
        %v1005 = vlaneseq
        %v1006 = vshrl.u32 %v1005, 7
        %v1007 = vsub.s32 1, %v1006
        %v1008 = vrot.slane %v999, %v1007
        %v1011 = vmul.f32 %v994, %v1004
        %v1012 = vmul.f32 %v995, %v1008
        %v1013 = vmul.f32 %v996, %v1004
        %v1014 = vmul.f32 %v997, %v1008
        %v1015 = vsub.f32 %v988, %v1011
        %v1016 = vsub.f32 %v989, %v1012
        %v1017 = vsub.f32 %v990, %v1013
        %v1018 = vsub.f32 %v991, %v1014
        %v1019 = vmul.f32 %v999, %v999
        %v1020 = vsub.f32 %v993, %v1019
        %v1021 = vld [vmem:[%s599] sm:$0xff]
        %v1022 = vld [vmem:[%s599 + $0x8] sm:$0xff]
        %v1023 = vld [vmem:[%s599 + $0x10] sm:$0x3]
        %v1024 = vld [vmem:[%s599 + $0x18] sm:$0x3]
        %s1025 = scalar_lea.vmem %s599, 6 [#allocation2]
        %v1026 = vld [vmem:[%s1025] ss:$8 sm:$0x3]
        %v1028 = vlaneseq
        %v1029 = vshrl.u32 %v1028, 7
        %v1030 = vsub.s32 0, %v1029
        %v1031 = vrot.slane %v1026, %v1030
        %v1032 = vlaneseq
        %v1033 = vshrl.u32 %v1032, 7
        %v1034 = vsub.s32 1, %v1033
        %v1035 = vrot.slane %v1026, %v1034
        %v1038 = vmul.f32 %v1021, %v1031
        %v1039 = vmul.f32 %v1022, %v1035
        %v1040 = vmul.f32 %v1023, %v1031
        %v1041 = vmul.f32 %v1024, %v1035
        %v1042 = vsub.f32 %v1015, %v1038
        %v1043 = vsub.f32 %v1016, %v1039
        %v1044 = vsub.f32 %v1017, %v1040
        %v1045 = vsub.f32 %v1018, %v1041
        %v1046 = vmul.f32 %v1026, %v1026
        %v1047 = vsub.f32 %v1020, %v1046
        %v1048 = vld [vmem:[%s750] sm:$0xff]
        %v1049 = vld [vmem:[%s750 + $0x8] sm:$0xff]
        %v1050 = vld [vmem:[%s750 + $0x10] sm:$0x3]
        %v1051 = vld [vmem:[%s750 + $0x18] sm:$0x3]
        %s1052 = scalar_lea.vmem %s750, 6 [#allocation2]
        %v1053 = vld [vmem:[%s1052] ss:$8 sm:$0x3]
        %v1055 = vlaneseq
        %v1056 = vshrl.u32 %v1055, 7
        %v1057 = vsub.s32 0, %v1056
        %v1058 = vrot.slane %v1053, %v1057
        %v1059 = vlaneseq
        %v1060 = vshrl.u32 %v1059, 7
        %v1061 = vsub.s32 1, %v1060
        %v1062 = vrot.slane %v1053, %v1061
        %v1065 = vmul.f32 %v1048, %v1058
        %v1066 = vmul.f32 %v1049, %v1062
        %v1067 = vmul.f32 %v1050, %v1058
        %v1068 = vmul.f32 %v1051, %v1062
        %v1069 = vsub.f32 %v1042, %v1065
        %v1070 = vsub.f32 %v1043, %v1066
        %v1071 = vsub.f32 %v1044, %v1067
        %v1072 = vsub.f32 %v1045, %v1068
        %v1073 = vmul.f32 %v1053, %v1053
        %v1074 = vsub.f32 %v1047, %v1073
        %v1075 = vld [vmem:[%s928] sm:$0xff]
        %v1076 = vld [vmem:[%s928 + $0x8] sm:$0xff]
        %v1077 = vld [vmem:[%s928 + $0x10] sm:$0x3]
        %v1078 = vld [vmem:[%s928 + $0x18] sm:$0x3]
        %s1079 = scalar_lea.vmem %s928, 6 [#allocation2]
        %v1080 = vld [vmem:[%s1079] ss:$8 sm:$0x3]
        %v1082 = vlaneseq
        %v1083 = vshrl.u32 %v1082, 7
        %v1084 = vsub.s32 0, %v1083
        %v1085 = vrot.slane %v1080, %v1084
        %v1086 = vlaneseq
        %v1087 = vshrl.u32 %v1086, 7
        %v1088 = vsub.s32 1, %v1087
        %v1089 = vrot.slane %v1080, %v1088
        %v1092 = vmul.f32 %v1075, %v1085
        %v1093 = vmul.f32 %v1076, %v1089
        %v1094 = vmul.f32 %v1077, %v1085
        %v1095 = vmul.f32 %v1078, %v1089
        %v1096 = vsub.f32 %v1069, %v1092
        %v1097 = vsub.f32 %v1070, %v1093
        %v1098 = vsub.f32 %v1071, %v1094
        %v1099 = vsub.f32 %v1072, %v1095
        %v1100 = vmul.f32 %v1080, %v1080
        %v1101 = vsub.f32 %v1074, %v1100
        %v1102 = vrsqrt.pop %v1101
        %v1103 = vlog2.pop %v1101
        %v1104 = vmul.f32 %v1103, 0.6931472
        %v1105 = vadd.f32 %v900, %v1104
        %vm1106 = vcmp.gt.s32.totalorder %v271, 6
        %vm1107 = vcmp.gt.s32.totalorder %v272, 6
        %v1109 = vlaneseq
        %v1110 = vshrl.u32 %v1109, 7
        %v1111 = vsub.s32 0, %v1110
        %v1112 = vrot.slane %v1102, %v1111
        %v1113 = vlaneseq
        %v1114 = vshrl.u32 %v1113, 7
        %v1115 = vsub.s32 1, %v1114
        %v1116 = vrot.slane %v1102, %v1115
        %v1119 = vmul.f32 %v1096, %v1112
        %v1120 = vmul.f32 %v1097, %v1116
        %v1121 = vmul.f32 %v1098, %v1112
        %v1122 = vmul.f32 %v1099, %v1116
        %vm1123 = vcmp.eq.s32.totalorder %v271, 6
        %vm1124 = vcmp.eq.s32.totalorder %v272, 6
        %v1125 = vsel %vm1123, %v1112, 0.0
        %v1126 = vsel %vm1123, %v1116, 0.0
        %v1127 = vsel %vm1124, %v1112, 0.0
        %v1128 = vsel %vm1124, %v1116, 0.0
        %v1129 = vsel %vm1106, %v1119, %v1125
        %v1130 = vsel %vm1106, %v1120, %v1126
        %v1131 = vsel %vm1107, %v1121, %v1127
        %v1132 = vsel %vm1107, %v1122, %v1128
        %s1133 = scalar_lea.vmem [#allocation2], 192
        %1134 = vst [vmem:[%s1133] sm:$0xff] %v1129
        %1135 = vst [vmem:[%s1133 + $0x8] sm:$0xff] %v1130
        %1136 = vst [vmem:[%s1133 + $0x10] sm:$0x3] %v1131
        %1137 = vst [vmem:[%s1133 + $0x18] sm:$0x3] %v1132
        %s1138 = scalar_lea.vmem %s224, 224 [#allocation6]
        %v1139 = vld [vmem:[%s1138] sm:$0xff]
        %v1140 = vld [vmem:[%s1138 + $0x8] sm:$0xff]
        %v1141 = vld [vmem:[%s1138 + $0x10] sm:$0x3]
        %v1142 = vld [vmem:[%s1138 + $0x18] sm:$0x3]
        %s1143 = scalar_lea.vmem %s1138, 7 [#allocation6]
        %v1144 = vld [vmem:[%s1143] ss:$8 sm:$0x3]
        %v1145 = vld [vmem:[#allocation2] sm:$0xff]
        %v1146 = vld [vmem:[#allocation2 + $0x8] sm:$0xff]
        %v1147 = vld [vmem:[#allocation2 + $0x10] sm:$0x3]
        %v1148 = vld [vmem:[#allocation2 + $0x18] sm:$0x3]
        %s1149 = scalar_lea.vmem [#allocation2], 7
        %v1150 = vld [vmem:[%s1149] ss:$8 sm:$0x3]
        %v1152 = vlaneseq
        %v1153 = vshrl.u32 %v1152, 7
        %v1154 = vsub.s32 0, %v1153
        %v1155 = vrot.slane %v1150, %v1154
        %v1156 = vlaneseq
        %v1157 = vshrl.u32 %v1156, 7
        %v1158 = vsub.s32 1, %v1157
        %v1159 = vrot.slane %v1150, %v1158
        %v1162 = vmul.f32 %v1145, %v1155
        %v1163 = vmul.f32 %v1146, %v1159
        %v1164 = vmul.f32 %v1147, %v1155
        %v1165 = vmul.f32 %v1148, %v1159
        %v1166 = vsub.f32 %v1139, %v1162
        %v1167 = vsub.f32 %v1140, %v1163
        %v1168 = vsub.f32 %v1141, %v1164
        %v1169 = vsub.f32 %v1142, %v1165
        %v1170 = vmul.f32 %v1150, %v1150
        %v1171 = vsub.f32 %v1144, %v1170
        %v1172 = vld [vmem:[%s378] sm:$0xff]
        %v1173 = vld [vmem:[%s378 + $0x8] sm:$0xff]
        %v1174 = vld [vmem:[%s378 + $0x10] sm:$0x3]
        %v1175 = vld [vmem:[%s378 + $0x18] sm:$0x3]
        %s1176 = scalar_lea.vmem %s378, 7 [#allocation2]
        %v1177 = vld [vmem:[%s1176] ss:$8 sm:$0x3]
        %v1179 = vlaneseq
        %v1180 = vshrl.u32 %v1179, 7
        %v1181 = vsub.s32 0, %v1180
        %v1182 = vrot.slane %v1177, %v1181
        %v1183 = vlaneseq
        %v1184 = vshrl.u32 %v1183, 7
        %v1185 = vsub.s32 1, %v1184
        %v1186 = vrot.slane %v1177, %v1185
        %v1189 = vmul.f32 %v1172, %v1182
        %v1190 = vmul.f32 %v1173, %v1186
        %v1191 = vmul.f32 %v1174, %v1182
        %v1192 = vmul.f32 %v1175, %v1186
        %v1193 = vsub.f32 %v1166, %v1189
        %v1194 = vsub.f32 %v1167, %v1190
        %v1195 = vsub.f32 %v1168, %v1191
        %v1196 = vsub.f32 %v1169, %v1192
        %v1197 = vmul.f32 %v1177, %v1177
        %v1198 = vsub.f32 %v1171, %v1197
        %v1199 = vld [vmem:[%s475] sm:$0xff]
        %v1200 = vld [vmem:[%s475 + $0x8] sm:$0xff]
        %v1201 = vld [vmem:[%s475 + $0x10] sm:$0x3]
        %v1202 = vld [vmem:[%s475 + $0x18] sm:$0x3]
        %s1203 = scalar_lea.vmem %s475, 7 [#allocation2]
        %v1204 = vld [vmem:[%s1203] ss:$8 sm:$0x3]
        %v1206 = vlaneseq
        %v1207 = vshrl.u32 %v1206, 7
        %v1208 = vsub.s32 0, %v1207
        %v1209 = vrot.slane %v1204, %v1208
        %v1210 = vlaneseq
        %v1211 = vshrl.u32 %v1210, 7
        %v1212 = vsub.s32 1, %v1211
        %v1213 = vrot.slane %v1204, %v1212
        %v1216 = vmul.f32 %v1199, %v1209
        %v1217 = vmul.f32 %v1200, %v1213
        %v1218 = vmul.f32 %v1201, %v1209
        %v1219 = vmul.f32 %v1202, %v1213
        %v1220 = vsub.f32 %v1193, %v1216
        %v1221 = vsub.f32 %v1194, %v1217
        %v1222 = vsub.f32 %v1195, %v1218
        %v1223 = vsub.f32 %v1196, %v1219
        %v1224 = vmul.f32 %v1204, %v1204
        %v1225 = vsub.f32 %v1198, %v1224
        %v1226 = vld [vmem:[%s599] sm:$0xff]
        %v1227 = vld [vmem:[%s599 + $0x8] sm:$0xff]
        %v1228 = vld [vmem:[%s599 + $0x10] sm:$0x3]
        %v1229 = vld [vmem:[%s599 + $0x18] sm:$0x3]
        %s1230 = scalar_lea.vmem %s599, 7 [#allocation2]
        %v1231 = vld [vmem:[%s1230] ss:$8 sm:$0x3]
        %v1233 = vlaneseq
        %v1234 = vshrl.u32 %v1233, 7
        %v1235 = vsub.s32 0, %v1234
        %v1236 = vrot.slane %v1231, %v1235
        %v1237 = vlaneseq
        %v1238 = vshrl.u32 %v1237, 7
        %v1239 = vsub.s32 1, %v1238
        %v1240 = vrot.slane %v1231, %v1239
        %v1243 = vmul.f32 %v1226, %v1236
        %v1244 = vmul.f32 %v1227, %v1240
        %v1245 = vmul.f32 %v1228, %v1236
        %v1246 = vmul.f32 %v1229, %v1240
        %v1247 = vsub.f32 %v1220, %v1243
        %v1248 = vsub.f32 %v1221, %v1244
        %v1249 = vsub.f32 %v1222, %v1245
        %v1250 = vsub.f32 %v1223, %v1246
        %v1251 = vmul.f32 %v1231, %v1231
        %v1252 = vsub.f32 %v1225, %v1251
        %v1253 = vld [vmem:[%s750] sm:$0xff]
        %v1254 = vld [vmem:[%s750 + $0x8] sm:$0xff]
        %v1255 = vld [vmem:[%s750 + $0x10] sm:$0x3]
        %v1256 = vld [vmem:[%s750 + $0x18] sm:$0x3]
        %s1257 = scalar_lea.vmem %s750, 7 [#allocation2]
        %v1258 = vld [vmem:[%s1257] ss:$8 sm:$0x3]
        %v1260 = vlaneseq
        %v1261 = vshrl.u32 %v1260, 7
        %v1262 = vsub.s32 0, %v1261
        %v1263 = vrot.slane %v1258, %v1262
        %v1264 = vlaneseq
        %v1265 = vshrl.u32 %v1264, 7
        %v1266 = vsub.s32 1, %v1265
        %v1267 = vrot.slane %v1258, %v1266
        %v1270 = vmul.f32 %v1253, %v1263
        %v1271 = vmul.f32 %v1254, %v1267
        %v1272 = vmul.f32 %v1255, %v1263
        %v1273 = vmul.f32 %v1256, %v1267
        %v1274 = vsub.f32 %v1247, %v1270
        %v1275 = vsub.f32 %v1248, %v1271
        %v1276 = vsub.f32 %v1249, %v1272
        %v1277 = vsub.f32 %v1250, %v1273
        %v1278 = vmul.f32 %v1258, %v1258
        %v1279 = vsub.f32 %v1252, %v1278
        %v1280 = vld [vmem:[%s928] sm:$0xff]
        %v1281 = vld [vmem:[%s928 + $0x8] sm:$0xff]
        %v1282 = vld [vmem:[%s928 + $0x10] sm:$0x3]
        %v1283 = vld [vmem:[%s928 + $0x18] sm:$0x3]
        %s1284 = scalar_lea.vmem %s928, 7 [#allocation2]
        %v1285 = vld [vmem:[%s1284] ss:$8 sm:$0x3]
        %v1287 = vlaneseq
        %v1288 = vshrl.u32 %v1287, 7
        %v1289 = vsub.s32 0, %v1288
        %v1290 = vrot.slane %v1285, %v1289
        %v1291 = vlaneseq
        %v1292 = vshrl.u32 %v1291, 7
        %v1293 = vsub.s32 1, %v1292
        %v1294 = vrot.slane %v1285, %v1293
        %v1297 = vmul.f32 %v1280, %v1290
        %v1298 = vmul.f32 %v1281, %v1294
        %v1299 = vmul.f32 %v1282, %v1290
        %v1300 = vmul.f32 %v1283, %v1294
        %v1301 = vsub.f32 %v1274, %v1297
        %v1302 = vsub.f32 %v1275, %v1298
        %v1303 = vsub.f32 %v1276, %v1299
        %v1304 = vsub.f32 %v1277, %v1300
        %v1305 = vmul.f32 %v1285, %v1285
        %v1306 = vsub.f32 %v1279, %v1305
        %v1307 = vld [vmem:[%s1133] sm:$0xff]
        %v1308 = vld [vmem:[%s1133 + $0x8] sm:$0xff]
        %v1309 = vld [vmem:[%s1133 + $0x10] sm:$0x3]
        %v1310 = vld [vmem:[%s1133 + $0x18] sm:$0x3]
        %s1311 = scalar_lea.vmem %s1133, 7 [#allocation2]
        %v1312 = vld [vmem:[%s1311] ss:$8 sm:$0x3]
        %v1314 = vlaneseq
        %v1315 = vshrl.u32 %v1314, 7
        %v1316 = vsub.s32 0, %v1315
        %v1317 = vrot.slane %v1312, %v1316
        %v1318 = vlaneseq
        %v1319 = vshrl.u32 %v1318, 7
        %v1320 = vsub.s32 1, %v1319
        %v1321 = vrot.slane %v1312, %v1320
        %v1324 = vmul.f32 %v1307, %v1317
        %v1325 = vmul.f32 %v1308, %v1321
        %v1326 = vmul.f32 %v1309, %v1317
        %v1327 = vmul.f32 %v1310, %v1321
        %v1328 = vsub.f32 %v1301, %v1324
        %v1329 = vsub.f32 %v1302, %v1325
        %v1330 = vsub.f32 %v1303, %v1326
        %v1331 = vsub.f32 %v1304, %v1327
        %v1332 = vmul.f32 %v1312, %v1312
        %v1333 = vsub.f32 %v1306, %v1332
        %v1334 = vrsqrt.pop %v1333
        %v1335 = vlog2.pop %v1333
        %v1336 = vmul.f32 %v1335, 0.6931472
        %v1337 = vadd.f32 %v1105, %v1336
        %vm1338 = vcmp.gt.s32.totalorder %v271, 7
        %vm1339 = vcmp.gt.s32.totalorder %v272, 7
        %v1341 = vlaneseq
        %v1342 = vshrl.u32 %v1341, 7
        %v1343 = vsub.s32 0, %v1342
        %v1344 = vrot.slane %v1334, %v1343
        %v1345 = vlaneseq
        %v1346 = vshrl.u32 %v1345, 7
        %v1347 = vsub.s32 1, %v1346
        %v1348 = vrot.slane %v1334, %v1347
        %v1351 = vmul.f32 %v1328, %v1344
        %v1352 = vmul.f32 %v1329, %v1348
        %v1353 = vmul.f32 %v1330, %v1344
        %v1354 = vmul.f32 %v1331, %v1348
        %vm1355 = vcmp.eq.s32.totalorder %v271, 7
        %vm1356 = vcmp.eq.s32.totalorder %v272, 7
        %v1357 = vsel %vm1355, %v1344, 0.0
        %v1358 = vsel %vm1355, %v1348, 0.0
        %v1359 = vsel %vm1356, %v1344, 0.0
        %v1360 = vsel %vm1356, %v1348, 0.0
        %v1361 = vsel %vm1338, %v1351, %v1357
        %v1362 = vsel %vm1338, %v1352, %v1358
        %v1363 = vsel %vm1339, %v1353, %v1359
        %v1364 = vsel %vm1339, %v1354, %v1360
        %s1365 = scalar_lea.vmem [#allocation2], 224
        %1366 = vst [vmem:[%s1365] sm:$0xff] %v1361
        %1367 = vst [vmem:[%s1365 + $0x8] sm:$0xff] %v1362
        %1368 = vst [vmem:[%s1365 + $0x10] sm:$0x3] %v1363
        %1369 = vst [vmem:[%s1365 + $0x18] sm:$0x3] %v1364
        %s1370 = scalar_lea.vmem %s224, 256 [#allocation6]
        %v1371 = vld [vmem:[%s1370] sm:$0xff]
        %v1372 = vld [vmem:[%s1370 + $0x8] sm:$0xff]
        %v1373 = vld [vmem:[%s1370 + $0x10] sm:$0x3]
        %v1374 = vld [vmem:[%s1370 + $0x18] sm:$0x3]
        %s1375 = scalar_lea.vmem %s1370, 16 [#allocation6]
        %v1376 = vld [vmem:[%s1375] ss:$8 sm:$0x3]
        %v1377 = vld [vmem:[#allocation2] sm:$0xff]
        %v1378 = vld [vmem:[#allocation2 + $0x8] sm:$0xff]
        %v1379 = vld [vmem:[#allocation2 + $0x10] sm:$0x3]
        %v1380 = vld [vmem:[#allocation2 + $0x18] sm:$0x3]
        %s1381 = scalar_lea.vmem [#allocation2], 16
        %v1382 = vld [vmem:[%s1381] ss:$8 sm:$0x3]
        %v1384 = vlaneseq
        %v1385 = vshrl.u32 %v1384, 7
        %v1386 = vsub.s32 0, %v1385
        %v1387 = vrot.slane %v1382, %v1386
        %v1388 = vlaneseq
        %v1389 = vshrl.u32 %v1388, 7
        %v1390 = vsub.s32 1, %v1389
        %v1391 = vrot.slane %v1382, %v1390
        %v1394 = vmul.f32 %v1377, %v1387
        %v1395 = vmul.f32 %v1378, %v1391
        %v1396 = vmul.f32 %v1379, %v1387
        %v1397 = vmul.f32 %v1380, %v1391
        %v1398 = vsub.f32 %v1371, %v1394
        %v1399 = vsub.f32 %v1372, %v1395
        %v1400 = vsub.f32 %v1373, %v1396
        %v1401 = vsub.f32 %v1374, %v1397
        %v1402 = vmul.f32 %v1382, %v1382
        %v1403 = vsub.f32 %v1376, %v1402
        %v1404 = vld [vmem:[%s378] sm:$0xff]
        %v1405 = vld [vmem:[%s378 + $0x8] sm:$0xff]
        %v1406 = vld [vmem:[%s378 + $0x10] sm:$0x3]
        %v1407 = vld [vmem:[%s378 + $0x18] sm:$0x3]
        %s1408 = scalar_lea.vmem %s378, 16 [#allocation2]
        %v1409 = vld [vmem:[%s1408] ss:$8 sm:$0x3]
        %v1411 = vlaneseq
        %v1412 = vshrl.u32 %v1411, 7
        %v1413 = vsub.s32 0, %v1412
        %v1414 = vrot.slane %v1409, %v1413
        %v1415 = vlaneseq
        %v1416 = vshrl.u32 %v1415, 7
        %v1417 = vsub.s32 1, %v1416
        %v1418 = vrot.slane %v1409, %v1417
        %v1421 = vmul.f32 %v1404, %v1414
        %v1422 = vmul.f32 %v1405, %v1418
        %v1423 = vmul.f32 %v1406, %v1414
        %v1424 = vmul.f32 %v1407, %v1418
        %v1425 = vsub.f32 %v1398, %v1421
        %v1426 = vsub.f32 %v1399, %v1422
        %v1427 = vsub.f32 %v1400, %v1423
        %v1428 = vsub.f32 %v1401, %v1424
        %v1429 = vmul.f32 %v1409, %v1409
        %v1430 = vsub.f32 %v1403, %v1429
        %v1431 = vld [vmem:[%s475] sm:$0xff]
        %v1432 = vld [vmem:[%s475 + $0x8] sm:$0xff]
        %v1433 = vld [vmem:[%s475 + $0x10] sm:$0x3]
        %v1434 = vld [vmem:[%s475 + $0x18] sm:$0x3]
        %s1435 = scalar_lea.vmem %s475, 16 [#allocation2]
        %v1436 = vld [vmem:[%s1435] ss:$8 sm:$0x3]
        %v1438 = vlaneseq
        %v1439 = vshrl.u32 %v1438, 7
        %v1440 = vsub.s32 0, %v1439
        %v1441 = vrot.slane %v1436, %v1440
        %v1442 = vlaneseq
        %v1443 = vshrl.u32 %v1442, 7
        %v1444 = vsub.s32 1, %v1443
        %v1445 = vrot.slane %v1436, %v1444
        %v1448 = vmul.f32 %v1431, %v1441
        %v1449 = vmul.f32 %v1432, %v1445
        %v1450 = vmul.f32 %v1433, %v1441
        %v1451 = vmul.f32 %v1434, %v1445
        %v1452 = vsub.f32 %v1425, %v1448
        %v1453 = vsub.f32 %v1426, %v1449
        %v1454 = vsub.f32 %v1427, %v1450
        %v1455 = vsub.f32 %v1428, %v1451
        %v1456 = vmul.f32 %v1436, %v1436
        %v1457 = vsub.f32 %v1430, %v1456
        %v1458 = vld [vmem:[%s599] sm:$0xff]
        %v1459 = vld [vmem:[%s599 + $0x8] sm:$0xff]
        %v1460 = vld [vmem:[%s599 + $0x10] sm:$0x3]
        %v1461 = vld [vmem:[%s599 + $0x18] sm:$0x3]
        %s1462 = scalar_lea.vmem %s599, 16 [#allocation2]
        %v1463 = vld [vmem:[%s1462] ss:$8 sm:$0x3]
        %v1465 = vlaneseq
        %v1466 = vshrl.u32 %v1465, 7
        %v1467 = vsub.s32 0, %v1466
        %v1468 = vrot.slane %v1463, %v1467
        %v1469 = vlaneseq
        %v1470 = vshrl.u32 %v1469, 7
        %v1471 = vsub.s32 1, %v1470
        %v1472 = vrot.slane %v1463, %v1471
        %v1475 = vmul.f32 %v1458, %v1468
        %v1476 = vmul.f32 %v1459, %v1472
        %v1477 = vmul.f32 %v1460, %v1468
        %v1478 = vmul.f32 %v1461, %v1472
        %v1479 = vsub.f32 %v1452, %v1475
        %v1480 = vsub.f32 %v1453, %v1476
        %v1481 = vsub.f32 %v1454, %v1477
        %v1482 = vsub.f32 %v1455, %v1478
        %v1483 = vmul.f32 %v1463, %v1463
        %v1484 = vsub.f32 %v1457, %v1483
        %v1485 = vld [vmem:[%s750] sm:$0xff]
        %v1486 = vld [vmem:[%s750 + $0x8] sm:$0xff]
        %v1487 = vld [vmem:[%s750 + $0x10] sm:$0x3]
        %v1488 = vld [vmem:[%s750 + $0x18] sm:$0x3]
        %s1489 = scalar_lea.vmem %s750, 16 [#allocation2]
        %v1490 = vld [vmem:[%s1489] ss:$8 sm:$0x3]
        %v1492 = vlaneseq
        %v1493 = vshrl.u32 %v1492, 7
        %v1494 = vsub.s32 0, %v1493
        %v1495 = vrot.slane %v1490, %v1494
        %v1496 = vlaneseq
        %v1497 = vshrl.u32 %v1496, 7
        %v1498 = vsub.s32 1, %v1497
        %v1499 = vrot.slane %v1490, %v1498
        %v1502 = vmul.f32 %v1485, %v1495
        %v1503 = vmul.f32 %v1486, %v1499
        %v1504 = vmul.f32 %v1487, %v1495
        %v1505 = vmul.f32 %v1488, %v1499
        %v1506 = vsub.f32 %v1479, %v1502
        %v1507 = vsub.f32 %v1480, %v1503
        %v1508 = vsub.f32 %v1481, %v1504
        %v1509 = vsub.f32 %v1482, %v1505
        %v1510 = vmul.f32 %v1490, %v1490
        %v1511 = vsub.f32 %v1484, %v1510
        %v1512 = vld [vmem:[%s928] sm:$0xff]
        %v1513 = vld [vmem:[%s928 + $0x8] sm:$0xff]
        %v1514 = vld [vmem:[%s928 + $0x10] sm:$0x3]
        %v1515 = vld [vmem:[%s928 + $0x18] sm:$0x3]
        %s1516 = scalar_lea.vmem %s928, 16 [#allocation2]
        %v1517 = vld [vmem:[%s1516] ss:$8 sm:$0x3]
        %v1519 = vlaneseq
        %v1520 = vshrl.u32 %v1519, 7
        %v1521 = vsub.s32 0, %v1520
        %v1522 = vrot.slane %v1517, %v1521
        %v1523 = vlaneseq
        %v1524 = vshrl.u32 %v1523, 7
        %v1525 = vsub.s32 1, %v1524
        %v1526 = vrot.slane %v1517, %v1525
        %v1529 = vmul.f32 %v1512, %v1522
        %v1530 = vmul.f32 %v1513, %v1526
        %v1531 = vmul.f32 %v1514, %v1522
        %v1532 = vmul.f32 %v1515, %v1526
        %v1533 = vsub.f32 %v1506, %v1529
        %v1534 = vsub.f32 %v1507, %v1530
        %v1535 = vsub.f32 %v1508, %v1531
        %v1536 = vsub.f32 %v1509, %v1532
        %v1537 = vmul.f32 %v1517, %v1517
        %v1538 = vsub.f32 %v1511, %v1537
        %v1539 = vld [vmem:[%s1133] sm:$0xff]
        %v1540 = vld [vmem:[%s1133 + $0x8] sm:$0xff]
        %v1541 = vld [vmem:[%s1133 + $0x10] sm:$0x3]
        %v1542 = vld [vmem:[%s1133 + $0x18] sm:$0x3]
        %s1543 = scalar_lea.vmem %s1133, 16 [#allocation2]
        %v1544 = vld [vmem:[%s1543] ss:$8 sm:$0x3]
        %v1546 = vlaneseq
        %v1547 = vshrl.u32 %v1546, 7
        %v1548 = vsub.s32 0, %v1547
        %v1549 = vrot.slane %v1544, %v1548
        %v1550 = vlaneseq
        %v1551 = vshrl.u32 %v1550, 7
        %v1552 = vsub.s32 1, %v1551
        %v1553 = vrot.slane %v1544, %v1552
        %v1556 = vmul.f32 %v1539, %v1549
        %v1557 = vmul.f32 %v1540, %v1553
        %v1558 = vmul.f32 %v1541, %v1549
        %v1559 = vmul.f32 %v1542, %v1553
        %v1560 = vsub.f32 %v1533, %v1556
        %v1561 = vsub.f32 %v1534, %v1557
        %v1562 = vsub.f32 %v1535, %v1558
        %v1563 = vsub.f32 %v1536, %v1559
        %v1564 = vmul.f32 %v1544, %v1544
        %v1565 = vsub.f32 %v1538, %v1564
        %v1566 = vld [vmem:[%s1365] sm:$0xff]
        %v1567 = vld [vmem:[%s1365 + $0x8] sm:$0xff]
        %v1568 = vld [vmem:[%s1365 + $0x10] sm:$0x3]
        %v1569 = vld [vmem:[%s1365 + $0x18] sm:$0x3]
        %s1570 = scalar_lea.vmem %s1365, 16 [#allocation2]
        %v1571 = vld [vmem:[%s1570] ss:$8 sm:$0x3]
        %v1573 = vlaneseq
        %v1574 = vshrl.u32 %v1573, 7
        %v1575 = vsub.s32 0, %v1574
        %v1576 = vrot.slane %v1571, %v1575
        %v1577 = vlaneseq
        %v1578 = vshrl.u32 %v1577, 7
        %v1579 = vsub.s32 1, %v1578
        %v1580 = vrot.slane %v1571, %v1579
        %v1583 = vmul.f32 %v1566, %v1576
        %v1584 = vmul.f32 %v1567, %v1580
        %v1585 = vmul.f32 %v1568, %v1576
        %v1586 = vmul.f32 %v1569, %v1580
        %v1587 = vsub.f32 %v1560, %v1583
        %v1588 = vsub.f32 %v1561, %v1584
        %v1589 = vsub.f32 %v1562, %v1585
        %v1590 = vsub.f32 %v1563, %v1586
        %v1591 = vmul.f32 %v1571, %v1571
        %v1592 = vsub.f32 %v1565, %v1591
        %v1593 = vrsqrt.pop %v1592
        %v1594 = vlog2.pop %v1592
        %v1595 = vmul.f32 %v1594, 0.6931472
        %v1596 = vadd.f32 %v1337, %v1595
        %vm1597 = vcmp.gt.s32.totalorder %v271, 8
        %vm1598 = vcmp.gt.s32.totalorder %v272, 8
        %v1600 = vlaneseq
        %v1601 = vshrl.u32 %v1600, 7
        %v1602 = vsub.s32 0, %v1601
        %v1603 = vrot.slane %v1593, %v1602
        %v1604 = vlaneseq
        %v1605 = vshrl.u32 %v1604, 7
        %v1606 = vsub.s32 1, %v1605
        %v1607 = vrot.slane %v1593, %v1606
        %v1610 = vmul.f32 %v1587, %v1603
        %v1611 = vmul.f32 %v1588, %v1607
        %v1612 = vmul.f32 %v1589, %v1603
        %v1613 = vmul.f32 %v1590, %v1607
        %vm1614 = vcmp.eq.s32.totalorder %v271, 8
        %vm1615 = vcmp.eq.s32.totalorder %v272, 8
        %v1616 = vsel %vm1614, %v1603, 0.0
        %v1617 = vsel %vm1614, %v1607, 0.0
        %v1618 = vsel %vm1615, %v1603, 0.0
        %v1619 = vsel %vm1615, %v1607, 0.0
        %v1620 = vsel %vm1597, %v1610, %v1616
        %v1621 = vsel %vm1597, %v1611, %v1617
        %v1622 = vsel %vm1598, %v1612, %v1618
        %v1623 = vsel %vm1598, %v1613, %v1619
        %s1624 = scalar_lea.vmem [#allocation2], 256
        %1625 = vst [vmem:[%s1624] sm:$0xff] %v1620
        %1626 = vst [vmem:[%s1624 + $0x8] sm:$0xff] %v1621
        %1627 = vst [vmem:[%s1624 + $0x10] sm:$0x3] %v1622
        %1628 = vst [vmem:[%s1624 + $0x18] sm:$0x3] %v1623
        %s1629 = scalar_lea.vmem %s224, 288 [#allocation6]
        %v1630 = vld [vmem:[%s1629] sm:$0xff]
        %v1631 = vld [vmem:[%s1629 + $0x8] sm:$0xff]
        %v1632 = vld [vmem:[%s1629 + $0x10] sm:$0x3]
        %v1633 = vld [vmem:[%s1629 + $0x18] sm:$0x3]
        %s1634 = scalar_lea.vmem %s1629, 17 [#allocation6]
        %v1635 = vld [vmem:[%s1634] ss:$8 sm:$0x3]
        %v1636 = vld [vmem:[#allocation2] sm:$0xff]
        %v1637 = vld [vmem:[#allocation2 + $0x8] sm:$0xff]
        %v1638 = vld [vmem:[#allocation2 + $0x10] sm:$0x3]
        %v1639 = vld [vmem:[#allocation2 + $0x18] sm:$0x3]
        %s1640 = scalar_lea.vmem [#allocation2], 17
        %v1641 = vld [vmem:[%s1640] ss:$8 sm:$0x3]
        %v1643 = vlaneseq
        %v1644 = vshrl.u32 %v1643, 7
        %v1645 = vsub.s32 0, %v1644
        %v1646 = vrot.slane %v1641, %v1645
        %v1647 = vlaneseq
        %v1648 = vshrl.u32 %v1647, 7
        %v1649 = vsub.s32 1, %v1648
        %v1650 = vrot.slane %v1641, %v1649
        %v1653 = vmul.f32 %v1636, %v1646
        %v1654 = vmul.f32 %v1637, %v1650
        %v1655 = vmul.f32 %v1638, %v1646
        %v1656 = vmul.f32 %v1639, %v1650
        %v1657 = vsub.f32 %v1630, %v1653
        %v1658 = vsub.f32 %v1631, %v1654
        %v1659 = vsub.f32 %v1632, %v1655
        %v1660 = vsub.f32 %v1633, %v1656
        %v1661 = vmul.f32 %v1641, %v1641
        %v1662 = vsub.f32 %v1635, %v1661
        %v1663 = vld [vmem:[%s378] sm:$0xff]
        %v1664 = vld [vmem:[%s378 + $0x8] sm:$0xff]
        %v1665 = vld [vmem:[%s378 + $0x10] sm:$0x3]
        %v1666 = vld [vmem:[%s378 + $0x18] sm:$0x3]
        %s1667 = scalar_lea.vmem %s378, 17 [#allocation2]
        %v1668 = vld [vmem:[%s1667] ss:$8 sm:$0x3]
        %v1670 = vlaneseq
        %v1671 = vshrl.u32 %v1670, 7
        %v1672 = vsub.s32 0, %v1671
        %v1673 = vrot.slane %v1668, %v1672
        %v1674 = vlaneseq
        %v1675 = vshrl.u32 %v1674, 7
        %v1676 = vsub.s32 1, %v1675
        %v1677 = vrot.slane %v1668, %v1676
        %v1680 = vmul.f32 %v1663, %v1673
        %v1681 = vmul.f32 %v1664, %v1677
        %v1682 = vmul.f32 %v1665, %v1673
        %v1683 = vmul.f32 %v1666, %v1677
        %v1684 = vsub.f32 %v1657, %v1680
        %v1685 = vsub.f32 %v1658, %v1681
        %v1686 = vsub.f32 %v1659, %v1682
        %v1687 = vsub.f32 %v1660, %v1683
        %v1688 = vmul.f32 %v1668, %v1668
        %v1689 = vsub.f32 %v1662, %v1688
        %v1690 = vld [vmem:[%s475] sm:$0xff]
        %v1691 = vld [vmem:[%s475 + $0x8] sm:$0xff]
        %v1692 = vld [vmem:[%s475 + $0x10] sm:$0x3]
        %v1693 = vld [vmem:[%s475 + $0x18] sm:$0x3]
        %s1694 = scalar_lea.vmem %s475, 17 [#allocation2]
        %v1695 = vld [vmem:[%s1694] ss:$8 sm:$0x3]
        %v1697 = vlaneseq
        %v1698 = vshrl.u32 %v1697, 7
        %v1699 = vsub.s32 0, %v1698
        %v1700 = vrot.slane %v1695, %v1699
        %v1701 = vlaneseq
        %v1702 = vshrl.u32 %v1701, 7
        %v1703 = vsub.s32 1, %v1702
        %v1704 = vrot.slane %v1695, %v1703
        %v1707 = vmul.f32 %v1690, %v1700
        %v1708 = vmul.f32 %v1691, %v1704
        %v1709 = vmul.f32 %v1692, %v1700
        %v1710 = vmul.f32 %v1693, %v1704
        %v1711 = vsub.f32 %v1684, %v1707
        %v1712 = vsub.f32 %v1685, %v1708
        %v1713 = vsub.f32 %v1686, %v1709
        %v1714 = vsub.f32 %v1687, %v1710
        %v1715 = vmul.f32 %v1695, %v1695
        %v1716 = vsub.f32 %v1689, %v1715
        %v1717 = vld [vmem:[%s599] sm:$0xff]
        %v1718 = vld [vmem:[%s599 + $0x8] sm:$0xff]
        %v1719 = vld [vmem:[%s599 + $0x10] sm:$0x3]
        %v1720 = vld [vmem:[%s599 + $0x18] sm:$0x3]
        %s1721 = scalar_lea.vmem %s599, 17 [#allocation2]
        %v1722 = vld [vmem:[%s1721] ss:$8 sm:$0x3]
        %v1724 = vlaneseq
        %v1725 = vshrl.u32 %v1724, 7
        %v1726 = vsub.s32 0, %v1725
        %v1727 = vrot.slane %v1722, %v1726
        %v1728 = vlaneseq
        %v1729 = vshrl.u32 %v1728, 7
        %v1730 = vsub.s32 1, %v1729
        %v1731 = vrot.slane %v1722, %v1730
        %v1734 = vmul.f32 %v1717, %v1727
        %v1735 = vmul.f32 %v1718, %v1731
        %v1736 = vmul.f32 %v1719, %v1727
        %v1737 = vmul.f32 %v1720, %v1731
        %v1738 = vsub.f32 %v1711, %v1734
        %v1739 = vsub.f32 %v1712, %v1735
        %v1740 = vsub.f32 %v1713, %v1736
        %v1741 = vsub.f32 %v1714, %v1737
        %v1742 = vmul.f32 %v1722, %v1722
        %v1743 = vsub.f32 %v1716, %v1742
        %v1744 = vld [vmem:[%s750] sm:$0xff]
        %v1745 = vld [vmem:[%s750 + $0x8] sm:$0xff]
        %v1746 = vld [vmem:[%s750 + $0x10] sm:$0x3]
        %v1747 = vld [vmem:[%s750 + $0x18] sm:$0x3]
        %s1748 = scalar_lea.vmem %s750, 17 [#allocation2]
        %v1749 = vld [vmem:[%s1748] ss:$8 sm:$0x3]
        %v1751 = vlaneseq
        %v1752 = vshrl.u32 %v1751, 7
        %v1753 = vsub.s32 0, %v1752
        %v1754 = vrot.slane %v1749, %v1753
        %v1755 = vlaneseq
        %v1756 = vshrl.u32 %v1755, 7
        %v1757 = vsub.s32 1, %v1756
        %v1758 = vrot.slane %v1749, %v1757
        %v1761 = vmul.f32 %v1744, %v1754
        %v1762 = vmul.f32 %v1745, %v1758
        %v1763 = vmul.f32 %v1746, %v1754
        %v1764 = vmul.f32 %v1747, %v1758
        %v1765 = vsub.f32 %v1738, %v1761
        %v1766 = vsub.f32 %v1739, %v1762
        %v1767 = vsub.f32 %v1740, %v1763
        %v1768 = vsub.f32 %v1741, %v1764
        %v1769 = vmul.f32 %v1749, %v1749
        %v1770 = vsub.f32 %v1743, %v1769
        %v1771 = vld [vmem:[%s928] sm:$0xff]
        %v1772 = vld [vmem:[%s928 + $0x8] sm:$0xff]
        %v1773 = vld [vmem:[%s928 + $0x10] sm:$0x3]
        %v1774 = vld [vmem:[%s928 + $0x18] sm:$0x3]
        %s1775 = scalar_lea.vmem %s928, 17 [#allocation2]
        %v1776 = vld [vmem:[%s1775] ss:$8 sm:$0x3]
        %v1778 = vlaneseq
        %v1779 = vshrl.u32 %v1778, 7
        %v1780 = vsub.s32 0, %v1779
        %v1781 = vrot.slane %v1776, %v1780
        %v1782 = vlaneseq
        %v1783 = vshrl.u32 %v1782, 7
        %v1784 = vsub.s32 1, %v1783
        %v1785 = vrot.slane %v1776, %v1784
        %v1788 = vmul.f32 %v1771, %v1781
        %v1789 = vmul.f32 %v1772, %v1785
        %v1790 = vmul.f32 %v1773, %v1781
        %v1791 = vmul.f32 %v1774, %v1785
        %v1792 = vsub.f32 %v1765, %v1788
        %v1793 = vsub.f32 %v1766, %v1789
        %v1794 = vsub.f32 %v1767, %v1790
        %v1795 = vsub.f32 %v1768, %v1791
        %v1796 = vmul.f32 %v1776, %v1776
        %v1797 = vsub.f32 %v1770, %v1796
        %v1798 = vld [vmem:[%s1133] sm:$0xff]
        %v1799 = vld [vmem:[%s1133 + $0x8] sm:$0xff]
        %v1800 = vld [vmem:[%s1133 + $0x10] sm:$0x3]
        %v1801 = vld [vmem:[%s1133 + $0x18] sm:$0x3]
        %s1802 = scalar_lea.vmem %s1133, 17 [#allocation2]
        %v1803 = vld [vmem:[%s1802] ss:$8 sm:$0x3]
        %v1805 = vlaneseq
        %v1806 = vshrl.u32 %v1805, 7
        %v1807 = vsub.s32 0, %v1806
        %v1808 = vrot.slane %v1803, %v1807
        %v1809 = vlaneseq
        %v1810 = vshrl.u32 %v1809, 7
        %v1811 = vsub.s32 1, %v1810
        %v1812 = vrot.slane %v1803, %v1811
        %v1815 = vmul.f32 %v1798, %v1808
        %v1816 = vmul.f32 %v1799, %v1812
        %v1817 = vmul.f32 %v1800, %v1808
        %v1818 = vmul.f32 %v1801, %v1812
        %v1819 = vsub.f32 %v1792, %v1815
        %v1820 = vsub.f32 %v1793, %v1816
        %v1821 = vsub.f32 %v1794, %v1817
        %v1822 = vsub.f32 %v1795, %v1818
        %v1823 = vmul.f32 %v1803, %v1803
        %v1824 = vsub.f32 %v1797, %v1823
        %v1825 = vld [vmem:[%s1365] sm:$0xff]
        %v1826 = vld [vmem:[%s1365 + $0x8] sm:$0xff]
        %v1827 = vld [vmem:[%s1365 + $0x10] sm:$0x3]
        %v1828 = vld [vmem:[%s1365 + $0x18] sm:$0x3]
        %s1829 = scalar_lea.vmem %s1365, 17 [#allocation2]
        %v1830 = vld [vmem:[%s1829] ss:$8 sm:$0x3]
        %v1832 = vlaneseq
        %v1833 = vshrl.u32 %v1832, 7
        %v1834 = vsub.s32 0, %v1833
        %v1835 = vrot.slane %v1830, %v1834
        %v1836 = vlaneseq
        %v1837 = vshrl.u32 %v1836, 7
        %v1838 = vsub.s32 1, %v1837
        %v1839 = vrot.slane %v1830, %v1838
        %v1842 = vmul.f32 %v1825, %v1835
        %v1843 = vmul.f32 %v1826, %v1839
        %v1844 = vmul.f32 %v1827, %v1835
        %v1845 = vmul.f32 %v1828, %v1839
        %v1846 = vsub.f32 %v1819, %v1842
        %v1847 = vsub.f32 %v1820, %v1843
        %v1848 = vsub.f32 %v1821, %v1844
        %v1849 = vsub.f32 %v1822, %v1845
        %v1850 = vmul.f32 %v1830, %v1830
        %v1851 = vsub.f32 %v1824, %v1850
        %v1852 = vld [vmem:[%s1624] sm:$0xff]
        %v1853 = vld [vmem:[%s1624 + $0x8] sm:$0xff]
        %v1854 = vld [vmem:[%s1624 + $0x10] sm:$0x3]
        %v1855 = vld [vmem:[%s1624 + $0x18] sm:$0x3]
        %s1856 = scalar_lea.vmem %s1624, 17 [#allocation2]
        %v1857 = vld [vmem:[%s1856] ss:$8 sm:$0x3]
        %v1859 = vlaneseq
        %v1860 = vshrl.u32 %v1859, 7
        %v1861 = vsub.s32 0, %v1860
        %v1862 = vrot.slane %v1857, %v1861
        %v1863 = vlaneseq
        %v1864 = vshrl.u32 %v1863, 7
        %v1865 = vsub.s32 1, %v1864
        %v1866 = vrot.slane %v1857, %v1865
        %v1869 = vmul.f32 %v1852, %v1862
        %v1870 = vmul.f32 %v1853, %v1866
        %v1871 = vmul.f32 %v1854, %v1862
        %v1872 = vmul.f32 %v1855, %v1866
        %v1873 = vsub.f32 %v1846, %v1869
        %v1874 = vsub.f32 %v1847, %v1870
        %v1875 = vsub.f32 %v1848, %v1871
        %v1876 = vsub.f32 %v1849, %v1872
        %v1877 = vmul.f32 %v1857, %v1857
        %v1878 = vsub.f32 %v1851, %v1877
        %v1879 = vrsqrt.pop %v1878
        %v1880 = vlog2.pop %v1878
        %v1881 = vmul.f32 %v1880, 0.6931472
        %v1882 = vadd.f32 %v1596, %v1881
        %vm1883 = vcmp.gt.s32.totalorder %v271, 9
        %vm1884 = vcmp.gt.s32.totalorder %v272, 9
        %v1886 = vlaneseq
        %v1887 = vshrl.u32 %v1886, 7
        %v1888 = vsub.s32 0, %v1887
        %v1889 = vrot.slane %v1879, %v1888
        %v1890 = vlaneseq
        %v1891 = vshrl.u32 %v1890, 7
        %v1892 = vsub.s32 1, %v1891
        %v1893 = vrot.slane %v1879, %v1892
        %v1896 = vmul.f32 %v1873, %v1889
        %v1897 = vmul.f32 %v1874, %v1893
        %v1898 = vmul.f32 %v1875, %v1889
        %v1899 = vmul.f32 %v1876, %v1893
        %vm1900 = vcmp.eq.s32.totalorder %v271, 9
        %vm1901 = vcmp.eq.s32.totalorder %v272, 9
        %v1902 = vsel %vm1900, %v1889, 0.0
        %v1903 = vsel %vm1900, %v1893, 0.0
        %v1904 = vsel %vm1901, %v1889, 0.0
        %v1905 = vsel %vm1901, %v1893, 0.0
        %v1906 = vsel %vm1883, %v1896, %v1902
        %v1907 = vsel %vm1883, %v1897, %v1903
        %v1908 = vsel %vm1884, %v1898, %v1904
        %v1909 = vsel %vm1884, %v1899, %v1905
        %s1910 = scalar_lea.vmem [#allocation2], 288
        %1911 = vst [vmem:[%s1910] sm:$0xff] %v1906
        %1912 = vst [vmem:[%s1910 + $0x8] sm:$0xff] %v1907
        %1913 = vst [vmem:[%s1910 + $0x10] sm:$0x3] %v1908
        %1914 = vst [vmem:[%s1910 + $0x18] sm:$0x3] %v1909
        %v1915 = vld [vmem:[%s215] ss:$8 sm:$0x3]
        %v1916 = vld [vmem:[%s233] ss:$8 sm:$0x3]
        %v1917 = vsub.f32 %v1915, %v1916
        %v1918 = vld [vmem:[#allocation2] ss:$8 sm:$0x3]
        %v1919 = vmul.f32 %v1917, %v1918
        %v1920 = vmul.f32 %v1919, %v1919
        %v1921 = vadd.f32 %v1920, 0.0
        %s1922 = scalar_lea.vmem %s215, 1 [#allocation3]
        %v1923 = vld [vmem:[%s1922] ss:$8 sm:$0x3]
        %s1924 = scalar_lea.vmem %s233, 1 [#allocation8]
        %v1925 = vld [vmem:[%s1924] ss:$8 sm:$0x3]
        %v1926 = vsub.f32 %v1923, %v1925
        %v1927 = vld [vmem:[%s324] ss:$8 sm:$0x3]
        %v1928 = vmul.f32 %v1927, %v1919
        %v1929 = vsub.f32 %v1926, %v1928
        %s1930 = scalar_lea.vmem %s378, 1 [#allocation2]
        %v1931 = vld [vmem:[%s1930] ss:$8 sm:$0x3]
        %v1932 = vmul.f32 %v1929, %v1931
        %v1933 = vmul.f32 %v1932, %v1932
        %v1934 = vadd.f32 %v1921, %v1933
        %s1935 = scalar_lea.vmem %s215, 2 [#allocation3]
        %v1936 = vld [vmem:[%s1935] ss:$8 sm:$0x3]
        %s1937 = scalar_lea.vmem %s233, 2 [#allocation8]
        %v1938 = vld [vmem:[%s1937] ss:$8 sm:$0x3]
        %v1939 = vsub.f32 %v1936, %v1938
        %v1940 = vld [vmem:[%s394] ss:$8 sm:$0x3]
        %v1941 = vmul.f32 %v1940, %v1919
        %v1942 = vsub.f32 %v1939, %v1941
        %v1943 = vld [vmem:[%s421] ss:$8 sm:$0x3]
        %v1944 = vmul.f32 %v1943, %v1932
        %v1945 = vsub.f32 %v1942, %v1944
        %s1946 = scalar_lea.vmem %s475, 2 [#allocation2]
        %v1947 = vld [vmem:[%s1946] ss:$8 sm:$0x3]
        %v1948 = vmul.f32 %v1945, %v1947
        %v1949 = vmul.f32 %v1948, %v1948
        %v1950 = vadd.f32 %v1934, %v1949
        %s1951 = scalar_lea.vmem %s215, 3 [#allocation3]
        %v1952 = vld [vmem:[%s1951] ss:$8 sm:$0x3]
        %s1953 = scalar_lea.vmem %s233, 3 [#allocation8]
        %v1954 = vld [vmem:[%s1953] ss:$8 sm:$0x3]
        %v1955 = vsub.f32 %v1952, %v1954
        %v1956 = vld [vmem:[%s491] ss:$8 sm:$0x3]
        %v1957 = vmul.f32 %v1956, %v1919
        %v1958 = vsub.f32 %v1955, %v1957
        %v1959 = vld [vmem:[%s518] ss:$8 sm:$0x3]
        %v1960 = vmul.f32 %v1959, %v1932
        %v1961 = vsub.f32 %v1958, %v1960
        %v1962 = vld [vmem:[%s545] ss:$8 sm:$0x3]
        %v1963 = vmul.f32 %v1962, %v1948
        %v1964 = vsub.f32 %v1961, %v1963
        %s1965 = scalar_lea.vmem %s599, 3 [#allocation2]
        %v1966 = vld [vmem:[%s1965] ss:$8 sm:$0x3]
        %v1967 = vmul.f32 %v1964, %v1966
        %v1968 = vmul.f32 %v1967, %v1967
        %v1969 = vadd.f32 %v1950, %v1968
        %s1970 = scalar_lea.vmem %s215, 4 [#allocation3]
        %v1971 = vld [vmem:[%s1970] ss:$8 sm:$0x3]
        %s1972 = scalar_lea.vmem %s233, 4 [#allocation8]
        %v1973 = vld [vmem:[%s1972] ss:$8 sm:$0x3]
        %v1974 = vsub.f32 %v1971, %v1973
        %v1975 = vld [vmem:[%s615] ss:$8 sm:$0x3]
        %v1976 = vmul.f32 %v1975, %v1919
        %v1977 = vsub.f32 %v1974, %v1976
        %v1978 = vld [vmem:[%s642] ss:$8 sm:$0x3]
        %v1979 = vmul.f32 %v1978, %v1932
        %v1980 = vsub.f32 %v1977, %v1979
        %v1981 = vld [vmem:[%s669] ss:$8 sm:$0x3]
        %v1982 = vmul.f32 %v1981, %v1948
        %v1983 = vsub.f32 %v1980, %v1982
        %v1984 = vld [vmem:[%s696] ss:$8 sm:$0x3]
        %v1985 = vmul.f32 %v1984, %v1967
        %v1986 = vsub.f32 %v1983, %v1985
        %s1987 = scalar_lea.vmem %s750, 4 [#allocation2]
        %v1988 = vld [vmem:[%s1987] ss:$8 sm:$0x3]
        %v1989 = vmul.f32 %v1986, %v1988
        %v1990 = vmul.f32 %v1989, %v1989
        %v1991 = vadd.f32 %v1969, %v1990
        %s1992 = scalar_lea.vmem %s215, 5 [#allocation3]
        %v1993 = vld [vmem:[%s1992] ss:$8 sm:$0x3]
        %s1994 = scalar_lea.vmem %s233, 5 [#allocation8]
        %v1995 = vld [vmem:[%s1994] ss:$8 sm:$0x3]
        %v1996 = vsub.f32 %v1993, %v1995
        %v1997 = vld [vmem:[%s766] ss:$8 sm:$0x3]
        %v1998 = vmul.f32 %v1997, %v1919
        %v1999 = vsub.f32 %v1996, %v1998
        %v2000 = vld [vmem:[%s793] ss:$8 sm:$0x3]
        %v2001 = vmul.f32 %v2000, %v1932
        %v2002 = vsub.f32 %v1999, %v2001
        %v2003 = vld [vmem:[%s820] ss:$8 sm:$0x3]
        %v2004 = vmul.f32 %v2003, %v1948
        %v2005 = vsub.f32 %v2002, %v2004
        %v2006 = vld [vmem:[%s847] ss:$8 sm:$0x3]
        %v2007 = vmul.f32 %v2006, %v1967
        %v2008 = vsub.f32 %v2005, %v2007
        %v2009 = vld [vmem:[%s874] ss:$8 sm:$0x3]
        %v2010 = vmul.f32 %v2009, %v1989
        %v2011 = vsub.f32 %v2008, %v2010
        %s2012 = scalar_lea.vmem %s928, 5 [#allocation2]
        %v2013 = vld [vmem:[%s2012] ss:$8 sm:$0x3]
        %v2014 = vmul.f32 %v2011, %v2013
        %v2015 = vmul.f32 %v2014, %v2014
        %v2016 = vadd.f32 %v1991, %v2015
        %s2017 = scalar_lea.vmem %s215, 6 [#allocation3]
        %v2018 = vld [vmem:[%s2017] ss:$8 sm:$0x3]
        %s2019 = scalar_lea.vmem %s233, 6 [#allocation8]
        %v2020 = vld [vmem:[%s2019] ss:$8 sm:$0x3]
        %v2021 = vsub.f32 %v2018, %v2020
        %v2022 = vld [vmem:[%s944] ss:$8 sm:$0x3]
        %v2023 = vmul.f32 %v2022, %v1919
        %v2024 = vsub.f32 %v2021, %v2023
        %v2025 = vld [vmem:[%s971] ss:$8 sm:$0x3]
        %v2026 = vmul.f32 %v2025, %v1932
        %v2027 = vsub.f32 %v2024, %v2026
        %v2028 = vld [vmem:[%s998] ss:$8 sm:$0x3]
        %v2029 = vmul.f32 %v2028, %v1948
        %v2030 = vsub.f32 %v2027, %v2029
        %v2031 = vld [vmem:[%s1025] ss:$8 sm:$0x3]
        %v2032 = vmul.f32 %v2031, %v1967
        %v2033 = vsub.f32 %v2030, %v2032
        %v2034 = vld [vmem:[%s1052] ss:$8 sm:$0x3]
        %v2035 = vmul.f32 %v2034, %v1989
        %v2036 = vsub.f32 %v2033, %v2035
        %v2037 = vld [vmem:[%s1079] ss:$8 sm:$0x3]
        %v2038 = vmul.f32 %v2037, %v2014
        %v2039 = vsub.f32 %v2036, %v2038
        %s2040 = scalar_lea.vmem %s1133, 6 [#allocation2]
        %v2041 = vld [vmem:[%s2040] ss:$8 sm:$0x3]
        %v2042 = vmul.f32 %v2039, %v2041
        %v2043 = vmul.f32 %v2042, %v2042
        %v2044 = vadd.f32 %v2016, %v2043
        %s2045 = scalar_lea.vmem %s215, 7 [#allocation3]
        %v2046 = vld [vmem:[%s2045] ss:$8 sm:$0x3]
        %s2047 = scalar_lea.vmem %s233, 7 [#allocation8]
        %v2048 = vld [vmem:[%s2047] ss:$8 sm:$0x3]
        %v2049 = vsub.f32 %v2046, %v2048
        %v2050 = vld [vmem:[%s1149] ss:$8 sm:$0x3]
        %v2051 = vmul.f32 %v2050, %v1919
        %v2052 = vsub.f32 %v2049, %v2051
        %v2053 = vld [vmem:[%s1176] ss:$8 sm:$0x3]
        %v2054 = vmul.f32 %v2053, %v1932
        %v2055 = vsub.f32 %v2052, %v2054
        %v2056 = vld [vmem:[%s1203] ss:$8 sm:$0x3]
        %v2057 = vmul.f32 %v2056, %v1948
        %v2058 = vsub.f32 %v2055, %v2057
        %v2059 = vld [vmem:[%s1230] ss:$8 sm:$0x3]
        %v2060 = vmul.f32 %v2059, %v1967
        %v2061 = vsub.f32 %v2058, %v2060
        %v2062 = vld [vmem:[%s1257] ss:$8 sm:$0x3]
        %v2063 = vmul.f32 %v2062, %v1989
        %v2064 = vsub.f32 %v2061, %v2063
        %v2065 = vld [vmem:[%s1284] ss:$8 sm:$0x3]
        %v2066 = vmul.f32 %v2065, %v2014
        %v2067 = vsub.f32 %v2064, %v2066
        %v2068 = vld [vmem:[%s1311] ss:$8 sm:$0x3]
        %v2069 = vmul.f32 %v2068, %v2042
        %v2070 = vsub.f32 %v2067, %v2069
        %s2071 = scalar_lea.vmem %s1365, 7 [#allocation2]
        %v2072 = vld [vmem:[%s2071] ss:$8 sm:$0x3]
        %v2073 = vmul.f32 %v2070, %v2072
        %v2074 = vmul.f32 %v2073, %v2073
        %v2075 = vadd.f32 %v2044, %v2074
        %s2076 = scalar_lea.vmem %s215, 16 [#allocation3]
        %v2077 = vld [vmem:[%s2076] ss:$8 sm:$0x3]
        %s2078 = scalar_lea.vmem %s233, 16 [#allocation8]
        %v2079 = vld [vmem:[%s2078] ss:$8 sm:$0x3]
        %v2080 = vsub.f32 %v2077, %v2079
        %v2081 = vld [vmem:[%s1381] ss:$8 sm:$0x3]
        %v2082 = vmul.f32 %v2081, %v1919
        %v2083 = vsub.f32 %v2080, %v2082
        %v2084 = vld [vmem:[%s1408] ss:$8 sm:$0x3]
        %v2085 = vmul.f32 %v2084, %v1932
        %v2086 = vsub.f32 %v2083, %v2085
        %v2087 = vld [vmem:[%s1435] ss:$8 sm:$0x3]
        %v2088 = vmul.f32 %v2087, %v1948
        %v2089 = vsub.f32 %v2086, %v2088
        %v2090 = vld [vmem:[%s1462] ss:$8 sm:$0x3]
        %v2091 = vmul.f32 %v2090, %v1967
        %v2092 = vsub.f32 %v2089, %v2091
        %v2093 = vld [vmem:[%s1489] ss:$8 sm:$0x3]
        %v2094 = vmul.f32 %v2093, %v1989
        %v2095 = vsub.f32 %v2092, %v2094
        %v2096 = vld [vmem:[%s1516] ss:$8 sm:$0x3]
        %v2097 = vmul.f32 %v2096, %v2014
        %v2098 = vsub.f32 %v2095, %v2097
        %v2099 = vld [vmem:[%s1543] ss:$8 sm:$0x3]
        %v2100 = vmul.f32 %v2099, %v2042
        %v2101 = vsub.f32 %v2098, %v2100
        %v2102 = vld [vmem:[%s1570] ss:$8 sm:$0x3]
        %v2103 = vmul.f32 %v2102, %v2073
        %v2104 = vsub.f32 %v2101, %v2103
        %s2105 = scalar_lea.vmem %s1624, 16 [#allocation2]
        %v2106 = vld [vmem:[%s2105] ss:$8 sm:$0x3]
        %v2107 = vmul.f32 %v2104, %v2106
        %v2108 = vmul.f32 %v2107, %v2107
        %v2109 = vadd.f32 %v2075, %v2108
        %s2110 = scalar_lea.vmem %s215, 17 [#allocation3]
        %v2111 = vld [vmem:[%s2110] ss:$8 sm:$0x3]
        %s2112 = scalar_lea.vmem %s233, 17 [#allocation8]
        %v2113 = vld [vmem:[%s2112] ss:$8 sm:$0x3]
        %v2114 = vsub.f32 %v2111, %v2113
        %v2115 = vld [vmem:[%s1640] ss:$8 sm:$0x3]
        %v2116 = vmul.f32 %v2115, %v1919
        %v2117 = vsub.f32 %v2114, %v2116
        %v2118 = vld [vmem:[%s1667] ss:$8 sm:$0x3]
        %v2119 = vmul.f32 %v2118, %v1932
        %v2120 = vsub.f32 %v2117, %v2119
        %v2121 = vld [vmem:[%s1694] ss:$8 sm:$0x3]
        %v2122 = vmul.f32 %v2121, %v1948
        %v2123 = vsub.f32 %v2120, %v2122
        %v2124 = vld [vmem:[%s1721] ss:$8 sm:$0x3]
        %v2125 = vmul.f32 %v2124, %v1967
        %v2126 = vsub.f32 %v2123, %v2125
        %v2127 = vld [vmem:[%s1748] ss:$8 sm:$0x3]
        %v2128 = vmul.f32 %v2127, %v1989
        %v2129 = vsub.f32 %v2126, %v2128
        %v2130 = vld [vmem:[%s1775] ss:$8 sm:$0x3]
        %v2131 = vmul.f32 %v2130, %v2014
        %v2132 = vsub.f32 %v2129, %v2131
        %v2133 = vld [vmem:[%s1802] ss:$8 sm:$0x3]
        %v2134 = vmul.f32 %v2133, %v2042
        %v2135 = vsub.f32 %v2132, %v2134
        %v2136 = vld [vmem:[%s1829] ss:$8 sm:$0x3]
        %v2137 = vmul.f32 %v2136, %v2073
        %v2138 = vsub.f32 %v2135, %v2137
        %v2139 = vld [vmem:[%s1856] ss:$8 sm:$0x3]
        %v2140 = vmul.f32 %v2139, %v2107
        %v2141 = vsub.f32 %v2138, %v2140
        %s2142 = scalar_lea.vmem %s1910, 17 [#allocation2]
        %v2143 = vld [vmem:[%s2142] ss:$8 sm:$0x3]
        %v2144 = vmul.f32 %v2141, %v2143
        %v2145 = vmul.f32 %v2144, %v2144
        %v2146 = vadd.f32 %v2109, %v2145
        %v2147 = vadd.f32 %v2146, %v1882
        %v2148 = vlaneseq
        %vm2149 = vcmp.ge.s32.totalorder %v2148, 0
        %vm2150 = vcmp.lt.s32.totalorder %v2148, 256
        %vm2151 = vmand %vm2149, %vm2150
        %2152 = vst.msk [vmem:[%s265] sm:$0x3] %vm2151, %v2147
        %s2153 = sand.u32 %s109, 1
        %s2154 = scalar_lea.sflag [#allocation5], %s2153
        %s2155 = sand.u32 %s109, 1
        %s2156 = smul.addr %s2155, 2
        %s2157 = scalar_lea.vmem [#allocation9], %s2156
        // Predicated region
        $region45: #{tpu_custom_call.1} parent=31 // pred_check
          %p2158 = pneg %p119
        $region46: #{tpu_custom_call.1} parent=31 // pred_check_branch
          %2160 = sbr.rel (%p2158) target = $region48
        $region47: #{tpu_custom_call.1} parent=31 // pred_region
          %s2161 = smul.u32 2, %s23
          %s2163 = ssub.s32 32, 32
          %2164 = vsyncadd %s2154, %s2163
          %s2165 = smul.addr %s2161, 16
          %s2166 = scalar_lea.hbm %s3, %s2165
          %s2168 = sshll.u32 %s2157, 4
          %s2169 = int_to_ptr.vmem [resolvable:$true] %s2168
          %2171 = dma.vmem_to_hbm [thread:$0]  %s2169, 32, %s2166, %s2154
        $region48: #{tpu_custom_call.1} parent=31 // pred_fallthru
          _
      $region32: #{tpu_custom_call.1} parent=5 // pred_fallthru
        _
      %p2172 = scmp.le.s32.totalorder 2, %s18
      // Predicated region
      $region49: #{tpu_custom_call.1} parent=5 // pred_check
        %p2173 = pneg %p2172
      $region50: #{tpu_custom_call.1} parent=5 // pred_check_branch
        %2175 = sbr.rel (%p2173) target = $region52
      $region51: #{tpu_custom_call.1} parent=5 // pred_region
        %s2176 = ssub.s32 %s18, 2
        // Predicated region
        $region53: #{tpu_custom_call.1} parent=51 // pred_check
          %p2177 = pneg %p125
        $region54: #{tpu_custom_call.1} parent=51 // pred_check_branch
          %2179 = sbr.rel (%p2177) target = $region56
        $region55: #{tpu_custom_call.1} parent=51 // pred_region
          %s2180 = sand.u32 %s110, 1
          %s2181 = scalar_lea.sflag [#allocation5], %s2180
          %s2182 = sand.u32 %s110, 1
          %s2183 = smul.addr %s2182, 2
          %s2184 = scalar_lea.vmem [#allocation9], %s2183
          %2185 = dma.done %s2181, 32
        $region56: #{tpu_custom_call.1} parent=51 // pred_fallthru
          _
      $region52: #{tpu_custom_call.1} parent=5 // pred_fallthru
        _
    $region6: #{tpu_custom_call.1} parent=1 // loop_footer
      %s22 = sadd.s32 1, %s18
    $region7: #{tpu_custom_call.1} parent=1 // loop_footer_branch
      %17 = sbr.rel target = $region3
    $region8: #{tpu_custom_call.1} parent=1 // loop_exit
      _
    %2186 = vsyncpa [#allocation4], 1
    %s2187 = scalar_lea.sflag [#allocation4], 1
    %2188 = vsyncpa %s2187, 1
    %2189 = vsyncpa [#allocation7], 1
    %s2190 = scalar_lea.sflag [#allocation7], 1
    %2191 = vsyncpa %s2190, 1
    %2192 = vsyncpa [#allocation5], 1
    %s2193 = scalar_lea.sflag [#allocation5], 1
    %2194 = vsyncpa %s2193, 1

</llo_original>
